<compile_context>
chip_gen: v6e
topology: v6e:2x2x1
jax: 0.10.0
libtpu: 0.0.40
codegen_flags: <defaults>
</compile_context>

<pallas_src>
import numpy as np
import jax
import jax.numpy as jnp
from jax.experimental import pallas as pl
from jax.experimental.pallas import tpu as pltpu

_TILE = 128  # multiple of 8 (JPEG block) and of the (32,128) uint8 / (8,128) f32 tiling

# Standard JPEG (Annex K) quantization tables.
_LUMA_Q = np.array(
    [[16, 11, 10, 16, 24, 40, 51, 61],
     [12, 12, 14, 19, 26, 58, 60, 55],
     [14, 13, 16, 24, 40, 57, 69, 56],
     [14, 17, 22, 29, 51, 87, 80, 62],
     [18, 22, 37, 56, 68, 109, 103, 77],
     [24, 35, 55, 64, 81, 104, 113, 92],
     [49, 64, 78, 87, 103, 121, 120, 101],
     [72, 92, 95, 98, 112, 100, 103, 99]], dtype=np.float64)

_CHROMA_Q = np.array(
    [[17, 18, 24, 47, 99, 99, 99, 99],
     [18, 21, 26, 66, 99, 99, 99, 99],
     [24, 26, 56, 99, 99, 99, 99, 99],
     [47, 66, 99, 99, 99, 99, 99, 99],
     [99, 99, 99, 99, 99, 99, 99, 99],
     [99, 99, 99, 99, 99, 99, 99, 99],
     [99, 99, 99, 99, 99, 99, 99, 99],
     [99, 99, 99, 99, 99, 99, 99, 99]], dtype=np.float64)


def _scale_qtable(table, quality):
    """libjpeg-style quality scaling of a quantization table."""
    quality = int(np.clip(quality, 1, 100))
    scale = 5000.0 / quality if quality < 50 else 200.0 - 2.0 * quality
    q = np.floor((table * scale + 50.0) / 100.0)
    return np.clip(q, 1.0, 255.0).astype(np.float32)


def _dct_matrix(n=8):
    """Orthonormal DCT-II matrix D[k, m] = a(k) cos(pi (2m+1) k / 2n)."""
    k = np.arange(n)[:, None].astype(np.float64)
    m = np.arange(n)[None, :].astype(np.float64)
    d = np.cos(np.pi * (2.0 * m + 1.0) * k / (2.0 * n))
    d[0, :] *= np.sqrt(1.0 / n)
    d[1:, :] *= np.sqrt(2.0 / n)
    return d.astype(np.float32)


def _jpeg_kernel(img_ref, d_ref, dt_ref, qinv_ref, q_ref, out_ref):
    """img_ref/out_ref: (3, T, T) uint8 tile.  d_ref/dt_ref: (T, T) block-diag DCT & its
    transpose.  qinv_ref/q_ref: (3, T, T) tiled reciprocal / plain quantization tables."""
    # uint8 -> f32 via i32 (well-supported conversion path).
    x = img_ref[...].astype(jnp.int32).astype(jnp.float32)
    r, g, b = x[0], x[1], x[2]

    # RGB -> YCbCr (JPEG full-range, as used inside cv2.imencode).
    y = 0.299 * r + 0.587 * g + 0.114 * b
    cb = -0.168736 * r - 0.331264 * g + 0.5 * b + 128.0
    cr = 0.5 * r - 0.418688 * g - 0.081312 * b + 128.0

    d = d_ref[...]     # I_{T/8} (x) D8
    dt = dt_ref[...]   # its transpose

    rec = []
    for c, plane in enumerate((y, cb, cr)):
        centered = plane - 128.0
        # blockwise 8x8 forward 2D DCT of the whole tile via two (T,T)x(T,T) MXU matmuls
        coef = jnp.dot(
            jnp.dot(d, centered, preferred_element_type=jnp.float32),
            dt, preferred_element_type=jnp.float32)
        # quantize -> round -> dequantize (the lossy step).
        # TODO(synk): jnp.round is round-half-even; libjpeg rounds half away from zero.
        coef_q = jnp.round(coef * qinv_ref[c]) * q_ref[c]
        # blockwise inverse 2D DCT
        plane_r = jnp.dot(
            jnp.dot(dt, coef_q, preferred_element_type=jnp.float32),
            d, preferred_element_type=jnp.float32) + 128.0
        rec.append(jnp.clip(plane_r, 0.0, 255.0))

    y2, cb2, cr2 = rec
    # YCbCr -> RGB
    r2 = y2 + 1.402 * (cr2 - 128.0)
    g2 = y2 - 0.344136 * (cb2 - 128.0) - 0.714136 * (cr2 - 128.0)
    b2 = y2 + 1.772 * (cb2 - 128.0)

    for c, ch in enumerate((r2, g2, b2)):
        ch = jnp.clip(jnp.round(ch), 0.0, 255.0)
        out_ref[c] = ch.astype(jnp.int32).astype(jnp.uint8)


def jpeg_compress_pallas(img_chw_u8, quality, tile=_TILE):
    """img_chw_u8: (3, H, W) uint8. Returns (3, H, W) uint8 JPEG round-tripped image."""
    c, h, w = img_chw_u8.shape
    assert c == 3

    # Pad to tile multiples with edge replication (libjpeg pads partial blocks the same
    # way); crop back afterwards.
    hp = -(-h // tile) * tile
    wp = -(-w // tile) * tile
    img_p = img_chw_u8
    if (hp, wp) != (h, w):
        img_p = jnp.pad(img_chw_u8, ((0, 0), (0, hp - h), (0, wp - w)), mode="edge")

    # Fixed-size block-diagonal DCT matrix (tile x tile) — independent of image size.
    d8 = _dct_matrix(8)
    dblk = np.kron(np.eye(tile // 8, dtype=np.float32), d8).astype(np.float32)

    # Per-channel 8x8 tables, pre-tiled to one resident (3, tile, tile) block (+ reciprocal).
    # TODO(synk): libjpeg applies 4:2:0 chroma subsampling by default; not reproduced here.
    q_luma = _scale_qtable(_LUMA_Q, quality)
    q_chroma = _scale_qtable(_CHROMA_Q, quality)
    q8 = np.stack([q_luma, q_chroma, q_chroma])                          # (3, 8, 8)
    qt = np.tile(q8, (1, tile // 8, tile // 8)).astype(np.float32)       # (3, tile, tile)
    qt_inv = (1.0 / qt).astype(np.float32)

    grid = (hp // tile, wp // tile)
    out = pl.pallas_call(
        _jpeg_kernel,
        out_shape=jax.ShapeDtypeStruct((3, hp, wp), jnp.uint8),
        grid=grid,
        in_specs=[
            pl.BlockSpec((3, tile, tile), lambda i, j: (0, i, j)),   # image tile (uint8)
            pl.BlockSpec((tile, tile), lambda i, j: (0, 0)),         # DCT block-diag (resident)
            pl.BlockSpec((tile, tile), lambda i, j: (0, 0)),         # its transpose (resident)
            pl.BlockSpec((3, tile, tile), lambda i, j: (0, 0, 0)),   # 1/q tiled     (resident)
            pl.BlockSpec((3, tile, tile), lambda i, j: (0, 0, 0)),   # q tiled       (resident)
        ],
        out_specs=pl.BlockSpec((3, tile, tile), lambda i, j: (0, i, j)),
        compiler_params=pltpu.CompilerParams(
            dimension_semantics=("parallel", "parallel")),
    )(img_p,
      jnp.asarray(dblk),
      jnp.asarray(np.ascontiguousarray(dblk.T)),
      jnp.asarray(qt_inv),
      jnp.asarray(qt))

    if (hp, wp) != (h, w):
        out = out[:, :h, :w]
    return out


def random_compression(img_hwc_u8, aug_rng, quality_low=99, quality_high=100, p=0.5):
    """JAX/Pallas equivalent of RandomCompression.forward on a uint8 HWC RGB image.

    The cv2 RGB<->BGR round-trips in the reference cancel out; JPEG itself works in YCbCr.
    `aug_rng` is a host-side numpy Generator (albumentations also draws on host), so the
    p-gate / quality draw never force a device sync and never trigger recompiles.
    """
    if aug_rng.random() >= p:
        # Transform not applied: skip all device work entirely.
        return img_hwc_u8
    quality = int(aug_rng.integers(quality_low, quality_high + 1))

    img_chw = jnp.transpose(img_hwc_u8, (2, 0, 1))   # HWC -> CHW (W on the lane axis)
    out_chw = jpeg_compress_pallas(img_chw, quality)
    # TODO(synk): the PyTorch module returns a PIL Image; we return the uint8 HWC array.
    return jnp.transpose(out_chw, (1, 2, 0))


if __name__ == "__main__":
    key = jax.random.PRNGKey(0)
    # Small RGB image; non-multiple of the tile to exercise the pad/crop path
    # (padded to 128 x 256 -> grid (1, 2)).
    h, w = 120, 200
    img = jax.random.randint(key, (h, w, 3), 0, 256, dtype=jnp.int32).astype(jnp.uint8)

    aug_rng = np.random.default_rng(0)
    # p=1.0 so the Pallas kernel is guaranteed to run in this smoke test.
    out = random_compression(img, aug_rng, quality_low=99, quality_high=100, p=1.0)
    out = jax.block_until_ready(out)

    assert out.shape == img.shape and out.dtype == jnp.uint8
    print("KERNEL_OK")
</pallas_src>

<mosaic_0001>
module attributes {stable_mosaic.version = 11 : i64} {
  func.func @_jpeg_kernel(%arg0: i32, %arg1: i32, %arg2: memref<3x128x128xi8, #tpu.memory_space<vmem>>, %arg3: memref<128x128xf32, #tpu.memory_space<vmem>>, %arg4: memref<128x128xf32, #tpu.memory_space<vmem>>, %arg5: memref<3x128x128xf32, #tpu.memory_space<vmem>>, %arg6: memref<3x128x128xf32, #tpu.memory_space<vmem>>, %arg7: memref<3x128x128xi8, #tpu.memory_space<vmem>>) attributes {dimension_semantics = [#tpu.dimension_semantics<parallel>, #tpu.dimension_semantics<parallel>], iteration_bounds = array<i64: 1, 2>, scalar_prefetch = 0 : i64, scratch_operands = 0 : i64, tpu.core_type = #tpu.core_type<tc>, window_params = [{transform_indices = @transform_0, window_bounds = array<i64: 3, 128, 128>}, {pipeline_mode = #tpu.pipeline_mode<synchronous>, transform_indices = @transform_1, window_bounds = array<i64: 128, 128>}, {pipeline_mode = #tpu.pipeline_mode<synchronous>, transform_indices = @transform_2, window_bounds = array<i64: 128, 128>}, {pipeline_mode = #tpu.pipeline_mode<synchronous>, transform_indices = @transform_3, window_bounds = array<i64: 3, 128, 128>}, {pipeline_mode = #tpu.pipeline_mode<synchronous>, transform_indices = @transform_4, window_bounds = array<i64: 3, 128, 128>}, {transform_indices = @transform_5, window_bounds = array<i64: 3, 128, 128>}]} {
    %c0 = arith.constant 0 : index
    %c0_0 = arith.constant 0 : index
    %c0_1 = arith.constant 0 : index
    %0 = vector.load %arg2[%c0, %c0_0, %c0_1] : memref<3x128x128xi8, #tpu.memory_space<vmem>>, vector<3x128x128xi8>
    %1 = arith.extui %0 : vector<3x128x128xi8> to vector<3x128x128xi32>
    %2 = arith.sitofp %1 : vector<3x128x128xi32> to vector<3x128x128xf32>
    %3 = vector.extract_strided_slice %2 {offsets = [0, 0, 0], sizes = [1, 128, 128], strides = [1, 1, 1]} : vector<3x128x128xf32> to vector<1x128x128xf32>
    %4 = vector.shape_cast %3 : vector<1x128x128xf32> to vector<128x128xf32>
    %5 = vector.extract_strided_slice %2 {offsets = [1, 0, 0], sizes = [1, 128, 128], strides = [1, 1, 1]} : vector<3x128x128xf32> to vector<1x128x128xf32>
    %6 = vector.shape_cast %5 : vector<1x128x128xf32> to vector<128x128xf32>
    %7 = vector.extract_strided_slice %2 {offsets = [2, 0, 0], sizes = [1, 128, 128], strides = [1, 1, 1]} : vector<3x128x128xf32> to vector<1x128x128xf32>
    %8 = vector.shape_cast %7 : vector<1x128x128xf32> to vector<128x128xf32>
    %cst = arith.constant 2.990000e-01 : f32
    %9 = vector.broadcast %cst : f32 to vector<128x128xf32>
    %10 = arith.mulf %9, %4 : vector<128x128xf32>
    %cst_2 = arith.constant 5.870000e-01 : f32
    %11 = vector.broadcast %cst_2 : f32 to vector<128x128xf32>
    %12 = arith.mulf %11, %6 : vector<128x128xf32>
    %13 = arith.addf %10, %12 : vector<128x128xf32>
    %cst_3 = arith.constant 1.140000e-01 : f32
    %14 = vector.broadcast %cst_3 : f32 to vector<128x128xf32>
    %15 = arith.mulf %14, %8 : vector<128x128xf32>
    %16 = arith.addf %13, %15 : vector<128x128xf32>
    %cst_4 = arith.constant -1.687360e-01 : f32
    %17 = vector.broadcast %cst_4 : f32 to vector<128x128xf32>
    %18 = arith.mulf %17, %4 : vector<128x128xf32>
    %cst_5 = arith.constant 3.312640e-01 : f32
    %19 = vector.broadcast %cst_5 : f32 to vector<128x128xf32>
    %20 = arith.mulf %19, %6 : vector<128x128xf32>
    %21 = arith.subf %18, %20 : vector<128x128xf32>
    %cst_6 = arith.constant 5.000000e-01 : f32
    %22 = vector.broadcast %cst_6 : f32 to vector<128x128xf32>
    %23 = arith.mulf %22, %8 : vector<128x128xf32>
    %24 = arith.addf %21, %23 : vector<128x128xf32>
    %cst_7 = arith.constant 1.280000e+02 : f32
    %25 = vector.broadcast %cst_7 : f32 to vector<128x128xf32>
    %26 = arith.addf %24, %25 : vector<128x128xf32>
    %cst_8 = arith.constant 5.000000e-01 : f32
    %27 = vector.broadcast %cst_8 : f32 to vector<128x128xf32>
    %28 = arith.mulf %27, %4 : vector<128x128xf32>
    %cst_9 = arith.constant 4.186880e-01 : f32
    %29 = vector.broadcast %cst_9 : f32 to vector<128x128xf32>
    %30 = arith.mulf %29, %6 : vector<128x128xf32>
    %31 = arith.subf %28, %30 : vector<128x128xf32>
    %cst_10 = arith.constant 8.131200e-02 : f32
    %32 = vector.broadcast %cst_10 : f32 to vector<128x128xf32>
    %33 = arith.mulf %32, %8 : vector<128x128xf32>
    %34 = arith.subf %31, %33 : vector<128x128xf32>
    %cst_11 = arith.constant 1.280000e+02 : f32
    %35 = vector.broadcast %cst_11 : f32 to vector<128x128xf32>
    %36 = arith.addf %34, %35 : vector<128x128xf32>
    %c0_12 = arith.constant 0 : index
    %c0_13 = arith.constant 0 : index
    %37 = vector.load %arg3[%c0_12, %c0_13] : memref<128x128xf32, #tpu.memory_space<vmem>>, vector<128x128xf32>
    %c0_14 = arith.constant 0 : index
    %c0_15 = arith.constant 0 : index
    %38 = vector.load %arg4[%c0_14, %c0_15] : memref<128x128xf32, #tpu.memory_space<vmem>>, vector<128x128xf32>
    %cst_16 = arith.constant 1.280000e+02 : f32
    %39 = vector.broadcast %cst_16 : f32 to vector<128x128xf32>
    %40 = arith.subf %16, %39 : vector<128x128xf32>
    %cst_17 = arith.constant dense<0.000000e+00> : vector<128x128xf32>
    %41 = tpu.matmul %37, %40, %cst_17 {dimension_numbers = #tpu.dot_dimension_numbers<[1], [0], [0], [1], [0, 0, 1, 1], [], []>} : vector<128x128xf32>, vector<128x128xf32>, vector<128x128xf32> -> vector<128x128xf32>
    %cst_18 = arith.constant dense<0.000000e+00> : vector<128x128xf32>
    %42 = tpu.matmul %41, %38, %cst_18 {dimension_numbers = #tpu.dot_dimension_numbers<[1], [0], [0], [1], [0, 0, 1, 1], [], []>} : vector<128x128xf32>, vector<128x128xf32>, vector<128x128xf32> -> vector<128x128xf32>
    %c0_19 = arith.constant 0 : index
    %c0_20 = arith.constant 0 : index
    %c0_21 = arith.constant 0 : index
    %43 = vector.load %arg5[%c0_19, %c0_20, %c0_21] : memref<3x128x128xf32, #tpu.memory_space<vmem>>, vector<1x128x128xf32>
    %44 = vector.shape_cast %43 : vector<1x128x128xf32> to vector<128x128xf32>
    %45 = arith.mulf %42, %44 : vector<128x128xf32>
    %46 = math.roundeven %45 : vector<128x128xf32>
    %c0_22 = arith.constant 0 : index
    %c0_23 = arith.constant 0 : index
    %c0_24 = arith.constant 0 : index
    %47 = vector.load %arg6[%c0_22, %c0_23, %c0_24] : memref<3x128x128xf32, #tpu.memory_space<vmem>>, vector<1x128x128xf32>
    %48 = vector.shape_cast %47 : vector<1x128x128xf32> to vector<128x128xf32>
    %49 = arith.mulf %46, %48 : vector<128x128xf32>
    %cst_25 = arith.constant dense<0.000000e+00> : vector<128x128xf32>
    %50 = tpu.matmul %38, %49, %cst_25 {dimension_numbers = #tpu.dot_dimension_numbers<[1], [0], [0], [1], [0, 0, 1, 1], [], []>} : vector<128x128xf32>, vector<128x128xf32>, vector<128x128xf32> -> vector<128x128xf32>
    %cst_26 = arith.constant dense<0.000000e+00> : vector<128x128xf32>
    %51 = tpu.matmul %50, %37, %cst_26 {dimension_numbers = #tpu.dot_dimension_numbers<[1], [0], [0], [1], [0, 0, 1, 1], [], []>} : vector<128x128xf32>, vector<128x128xf32>, vector<128x128xf32> -> vector<128x128xf32>
    %cst_27 = arith.constant 1.280000e+02 : f32
    %52 = vector.broadcast %cst_27 : f32 to vector<128x128xf32>
    %53 = arith.addf %51, %52 : vector<128x128xf32>
    %cst_28 = arith.constant 0.000000e+00 : f32
    %cst_29 = arith.constant 2.550000e+02 : f32
    %54 = vector.broadcast %cst_28 : f32 to vector<128x128xf32>
    %55 = arith.maximumf %54, %53 : vector<128x128xf32>
    %56 = vector.broadcast %cst_29 : f32 to vector<128x128xf32>
    %57 = arith.minimumf %56, %55 : vector<128x128xf32>
    %cst_30 = arith.constant 1.280000e+02 : f32
    %58 = vector.broadcast %cst_30 : f32 to vector<128x128xf32>
    %59 = arith.subf %26, %58 : vector<128x128xf32>
    %cst_31 = arith.constant dense<0.000000e+00> : vector<128x128xf32>
    %60 = tpu.matmul %37, %59, %cst_31 {dimension_numbers = #tpu.dot_dimension_numbers<[1], [0], [0], [1], [0, 0, 1, 1], [], []>} : vector<128x128xf32>, vector<128x128xf32>, vector<128x128xf32> -> vector<128x128xf32>
    %cst_32 = arith.constant dense<0.000000e+00> : vector<128x128xf32>
    %61 = tpu.matmul %60, %38, %cst_32 {dimension_numbers = #tpu.dot_dimension_numbers<[1], [0], [0], [1], [0, 0, 1, 1], [], []>} : vector<128x128xf32>, vector<128x128xf32>, vector<128x128xf32> -> vector<128x128xf32>
    %c1 = arith.constant 1 : index
    %c0_33 = arith.constant 0 : index
    %c0_34 = arith.constant 0 : index
    %62 = vector.load %arg5[%c1, %c0_33, %c0_34] : memref<3x128x128xf32, #tpu.memory_space<vmem>>, vector<1x128x128xf32>
    %63 = vector.shape_cast %62 : vector<1x128x128xf32> to vector<128x128xf32>
    %64 = arith.mulf %61, %63 : vector<128x128xf32>
    %65 = math.roundeven %64 : vector<128x128xf32>
    %c1_35 = arith.constant 1 : index
    %c0_36 = arith.constant 0 : index
    %c0_37 = arith.constant 0 : index
    %66 = vector.load %arg6[%c1_35, %c0_36, %c0_37] : memref<3x128x128xf32, #tpu.memory_space<vmem>>, vector<1x128x128xf32>
    %67 = vector.shape_cast %66 : vector<1x128x128xf32> to vector<128x128xf32>
    %68 = arith.mulf %65, %67 : vector<128x128xf32>
    %cst_38 = arith.constant dense<0.000000e+00> : vector<128x128xf32>
    %69 = tpu.matmul %38, %68, %cst_38 {dimension_numbers = #tpu.dot_dimension_numbers<[1], [0], [0], [1], [0, 0, 1, 1], [], []>} : vector<128x128xf32>, vector<128x128xf32>, vector<128x128xf32> -> vector<128x128xf32>
    %cst_39 = arith.constant dense<0.000000e+00> : vector<128x128xf32>
    %70 = tpu.matmul %69, %37, %cst_39 {dimension_numbers = #tpu.dot_dimension_numbers<[1], [0], [0], [1], [0, 0, 1, 1], [], []>} : vector<128x128xf32>, vector<128x128xf32>, vector<128x128xf32> -> vector<128x128xf32>
    %cst_40 = arith.constant 1.280000e+02 : f32
    %71 = vector.broadcast %cst_40 : f32 to vector<128x128xf32>
    %72 = arith.addf %70, %71 : vector<128x128xf32>
    %cst_41 = arith.constant 0.000000e+00 : f32
    %cst_42 = arith.constant 2.550000e+02 : f32
    %73 = vector.broadcast %cst_41 : f32 to vector<128x128xf32>
    %74 = arith.maximumf %73, %72 : vector<128x128xf32>
    %75 = vector.broadcast %cst_42 : f32 to vector<128x128xf32>
    %76 = arith.minimumf %75, %74 : vector<128x128xf32>
    %cst_43 = arith.constant 1.280000e+02 : f32
    %77 = vector.broadcast %cst_43 : f32 to vector<128x128xf32>
    %78 = arith.subf %36, %77 : vector<128x128xf32>
    %cst_44 = arith.constant dense<0.000000e+00> : vector<128x128xf32>
    %79 = tpu.matmul %37, %78, %cst_44 {dimension_numbers = #tpu.dot_dimension_numbers<[1], [0], [0], [1], [0, 0, 1, 1], [], []>} : vector<128x128xf32>, vector<128x128xf32>, vector<128x128xf32> -> vector<128x128xf32>
    %cst_45 = arith.constant dense<0.000000e+00> : vector<128x128xf32>
    %80 = tpu.matmul %79, %38, %cst_45 {dimension_numbers = #tpu.dot_dimension_numbers<[1], [0], [0], [1], [0, 0, 1, 1], [], []>} : vector<128x128xf32>, vector<128x128xf32>, vector<128x128xf32> -> vector<128x128xf32>
    %c2 = arith.constant 2 : index
    %c0_46 = arith.constant 0 : index
    %c0_47 = arith.constant 0 : index
    %81 = vector.load %arg5[%c2, %c0_46, %c0_47] : memref<3x128x128xf32, #tpu.memory_space<vmem>>, vector<1x128x128xf32>
    %82 = vector.shape_cast %81 : vector<1x128x128xf32> to vector<128x128xf32>
    %83 = arith.mulf %80, %82 : vector<128x128xf32>
    %84 = math.roundeven %83 : vector<128x128xf32>
    %c2_48 = arith.constant 2 : index
    %c0_49 = arith.constant 0 : index
    %c0_50 = arith.constant 0 : index
    %85 = vector.load %arg6[%c2_48, %c0_49, %c0_50] : memref<3x128x128xf32, #tpu.memory_space<vmem>>, vector<1x128x128xf32>
    %86 = vector.shape_cast %85 : vector<1x128x128xf32> to vector<128x128xf32>
    %87 = arith.mulf %84, %86 : vector<128x128xf32>
    %cst_51 = arith.constant dense<0.000000e+00> : vector<128x128xf32>
    %88 = tpu.matmul %38, %87, %cst_51 {dimension_numbers = #tpu.dot_dimension_numbers<[1], [0], [0], [1], [0, 0, 1, 1], [], []>} : vector<128x128xf32>, vector<128x128xf32>, vector<128x128xf32> -> vector<128x128xf32>
    %cst_52 = arith.constant dense<0.000000e+00> : vector<128x128xf32>
    %89 = tpu.matmul %88, %37, %cst_52 {dimension_numbers = #tpu.dot_dimension_numbers<[1], [0], [0], [1], [0, 0, 1, 1], [], []>} : vector<128x128xf32>, vector<128x128xf32>, vector<128x128xf32> -> vector<128x128xf32>
    %cst_53 = arith.constant 1.280000e+02 : f32
    %90 = vector.broadcast %cst_53 : f32 to vector<128x128xf32>
    %91 = arith.addf %89, %90 : vector<128x128xf32>
    %cst_54 = arith.constant 0.000000e+00 : f32
    %cst_55 = arith.constant 2.550000e+02 : f32
    %92 = vector.broadcast %cst_54 : f32 to vector<128x128xf32>
    %93 = arith.maximumf %92, %91 : vector<128x128xf32>
    %94 = vector.broadcast %cst_55 : f32 to vector<128x128xf32>
    %95 = arith.minimumf %94, %93 : vector<128x128xf32>
    %cst_56 = arith.constant 1.280000e+02 : f32
    %96 = vector.broadcast %cst_56 : f32 to vector<128x128xf32>
    %97 = arith.subf %95, %96 : vector<128x128xf32>
    %cst_57 = arith.constant 1.402000e+00 : f32
    %98 = vector.broadcast %cst_57 : f32 to vector<128x128xf32>
    %99 = arith.mulf %98, %97 : vector<128x128xf32>
    %100 = arith.addf %57, %99 : vector<128x128xf32>
    %cst_58 = arith.constant 1.280000e+02 : f32
    %101 = vector.broadcast %cst_58 : f32 to vector<128x128xf32>
    %102 = arith.subf %76, %101 : vector<128x128xf32>
    %cst_59 = arith.constant 3.441360e-01 : f32
    %103 = vector.broadcast %cst_59 : f32 to vector<128x128xf32>
    %104 = arith.mulf %103, %102 : vector<128x128xf32>
    %105 = arith.subf %57, %104 : vector<128x128xf32>
    %cst_60 = arith.constant 1.280000e+02 : f32
    %106 = vector.broadcast %cst_60 : f32 to vector<128x128xf32>
    %107 = arith.subf %95, %106 : vector<128x128xf32>
    %cst_61 = arith.constant 7.141360e-01 : f32
    %108 = vector.broadcast %cst_61 : f32 to vector<128x128xf32>
    %109 = arith.mulf %108, %107 : vector<128x128xf32>
    %110 = arith.subf %105, %109 : vector<128x128xf32>
    %cst_62 = arith.constant 1.280000e+02 : f32
    %111 = vector.broadcast %cst_62 : f32 to vector<128x128xf32>
    %112 = arith.subf %76, %111 : vector<128x128xf32>
    %cst_63 = arith.constant 1.772000e+00 : f32
    %113 = vector.broadcast %cst_63 : f32 to vector<128x128xf32>
    %114 = arith.mulf %113, %112 : vector<128x128xf32>
    %115 = arith.addf %57, %114 : vector<128x128xf32>
    %116 = math.roundeven %100 : vector<128x128xf32>
    %cst_64 = arith.constant 0.000000e+00 : f32
    %cst_65 = arith.constant 2.550000e+02 : f32
    %117 = vector.broadcast %cst_64 : f32 to vector<128x128xf32>
    %118 = arith.maximumf %117, %116 : vector<128x128xf32>
    %119 = vector.broadcast %cst_65 : f32 to vector<128x128xf32>
    %120 = arith.minimumf %119, %118 : vector<128x128xf32>
    %121 = arith.fptosi %120 : vector<128x128xf32> to vector<128x128xi32>
    %122 = arith.trunci %121 : vector<128x128xi32> to vector<128x128xi8>
    %c0_66 = arith.constant 0 : index
    %c0_67 = arith.constant 0 : index
    %c0_68 = arith.constant 0 : index
    %123 = vector.load %arg7[%c0_66, %c0_67, %c0_68] : memref<3x128x128xi8, #tpu.memory_space<vmem>>, vector<1x128x128xi8>
    %124 = vector.shape_cast %123 : vector<1x128x128xi8> to vector<128x128xi8>
    %125 = vector.shape_cast %122 : vector<128x128xi8> to vector<1x128x128xi8>
    tpu.vector_store %arg7[%c0_66, %c0_67, %c0_68], %125 {strides = array<i32>} : memref<3x128x128xi8, #tpu.memory_space<vmem>>, vector<1x128x128xi8>,
    %126 = math.roundeven %110 : vector<128x128xf32>
    %cst_69 = arith.constant 0.000000e+00 : f32
    %cst_70 = arith.constant 2.550000e+02 : f32
    %127 = vector.broadcast %cst_69 : f32 to vector<128x128xf32>
    %128 = arith.maximumf %127, %126 : vector<128x128xf32>
    %129 = vector.broadcast %cst_70 : f32 to vector<128x128xf32>
    %130 = arith.minimumf %129, %128 : vector<128x128xf32>
    %131 = arith.fptosi %130 : vector<128x128xf32> to vector<128x128xi32>
    %132 = arith.trunci %131 : vector<128x128xi32> to vector<128x128xi8>
    %c1_71 = arith.constant 1 : index
    %c0_72 = arith.constant 0 : index
    %c0_73 = arith.constant 0 : index
    %133 = vector.load %arg7[%c1_71, %c0_72, %c0_73] : memref<3x128x128xi8, #tpu.memory_space<vmem>>, vector<1x128x128xi8>
    %134 = vector.shape_cast %133 : vector<1x128x128xi8> to vector<128x128xi8>
    %135 = vector.shape_cast %132 : vector<128x128xi8> to vector<1x128x128xi8>
    tpu.vector_store %arg7[%c1_71, %c0_72, %c0_73], %135 {strides = array<i32>} : memref<3x128x128xi8, #tpu.memory_space<vmem>>, vector<1x128x128xi8>,
    %136 = math.roundeven %115 : vector<128x128xf32>
    %cst_74 = arith.constant 0.000000e+00 : f32
    %cst_75 = arith.constant 2.550000e+02 : f32
    %137 = vector.broadcast %cst_74 : f32 to vector<128x128xf32>
    %138 = arith.maximumf %137, %136 : vector<128x128xf32>
    %139 = vector.broadcast %cst_75 : f32 to vector<128x128xf32>
    %140 = arith.minimumf %139, %138 : vector<128x128xf32>
    %141 = arith.fptosi %140 : vector<128x128xf32> to vector<128x128xi32>
    %142 = arith.trunci %141 : vector<128x128xi32> to vector<128x128xi8>
    %c2_76 = arith.constant 2 : index
    %c0_77 = arith.constant 0 : index
    %c0_78 = arith.constant 0 : index
    %143 = vector.load %arg7[%c2_76, %c0_77, %c0_78] : memref<3x128x128xi8, #tpu.memory_space<vmem>>, vector<1x128x128xi8>
    %144 = vector.shape_cast %143 : vector<1x128x128xi8> to vector<128x128xi8>
    %145 = vector.shape_cast %142 : vector<128x128xi8> to vector<1x128x128xi8>
    tpu.vector_store %arg7[%c2_76, %c0_77, %c0_78], %145 {strides = array<i32>} : memref<3x128x128xi8, #tpu.memory_space<vmem>>, vector<1x128x128xi8>,
    return
  }
  func.func @transform_0(%arg0: i32, %arg1: i32) -> (i32, i32, i32) {
    %c0_i32 = arith.constant 0 : i32
    %c0_i32_0 = arith.constant 0 : i32
    return %c0_i32, %arg0, %arg1 : i32, i32, i32
  }
  func.func @transform_1(%arg0: i32, %arg1: i32) -> (i32, i32) {
    %c0_i32 = arith.constant 0 : i32
    %c0_i32_0 = arith.constant 0 : i32
    %c0_i32_1 = arith.constant 0 : i32
    return %c0_i32, %c0_i32_0 : i32, i32
  }
  func.func @transform_2(%arg0: i32, %arg1: i32) -> (i32, i32) {
    %c0_i32 = arith.constant 0 : i32
    %c0_i32_0 = arith.constant 0 : i32
    %c0_i32_1 = arith.constant 0 : i32
    return %c0_i32, %c0_i32_0 : i32, i32
  }
  func.func @transform_3(%arg0: i32, %arg1: i32) -> (i32, i32, i32) {
    %c0_i32 = arith.constant 0 : i32
    %c0_i32_0 = arith.constant 0 : i32
    %c0_i32_1 = arith.constant 0 : i32
    %c0_i32_2 = arith.constant 0 : i32
    return %c0_i32, %c0_i32_0, %c0_i32_1 : i32, i32, i32
  }
  func.func @transform_4(%arg0: i32, %arg1: i32) -> (i32, i32, i32) {
    %c0_i32 = arith.constant 0 : i32
    %c0_i32_0 = arith.constant 0 : i32
    %c0_i32_1 = arith.constant 0 : i32
    %c0_i32_2 = arith.constant 0 : i32
    return %c0_i32, %c0_i32_0, %c0_i32_1 : i32, i32, i32
  }
  func.func @transform_5(%arg0: i32, %arg1: i32) -> (i32, i32, i32) {
    %c0_i32 = arith.constant 0 : i32
    %c0_i32_0 = arith.constant 0 : i32
    return %c0_i32, %arg0, %arg1 : i32, i32, i32
  }
}

</mosaic_0001>

<llo_original>
// kernel: tpu_custom_call.1
$region0: #{tpu_custom_call.1}
  #allocation0 [shape = 'u32[]', space=smem, size = 0x4, offset = 0x4, fixed_abs, tag = 'smem constant byte address 0x4 - core index']
  #allocation1 [shape = 'u32[144,128]{1,0:T(1,128)}', space=vmem, size = 0x12000, scoped, tag = 'internal scratch']
  %s0 = inlined_call_operand.hbm [shape: u8[3,128,256], index: 0, kind: input, shape index: {}]
  %s1 = inlined_call_operand.hbm [shape: f32[128,128], index: 1, kind: input, shape index: {}]
  %s2 = inlined_call_operand.hbm [shape: f32[128,128], index: 2, kind: input, shape index: {}]
  %s3 = inlined_call_operand.hbm [shape: f32[3,128,128], index: 3, kind: input, shape index: {}]
  %s4 = inlined_call_operand.hbm [shape: f32[3,128,128], index: 4, kind: input, shape index: {}]
  %s5 = inlined_call_operand.hbm [shape: u8[3,128,256], index: 5, kind: output, shape index: {}]
  %s6 = sld [smem:[#allocation0]]
  $region73: #{tpu_custom_call.1} parent=0
    _
  %s8 = ssub.s32 1, %s6
  %s9 = scalar_select 0, %s8, %s6
  $region1: #{tpu_custom_call.1} parent=0
    #allocation2 [shape = 'u8[98304]{0}', space=vmem, size = 0x18000, scoped, tag = 'input window, operand 0']
    #allocation3 [shape = 's32[2]{0}', space=sflag, size = 0x8, scoped, tag = 'scoped memory for tpu_custom_call.1']
    #allocation4 [shape = 's32[2]{0}', space=sflag, size = 0x8, scoped, tag = 'scoped memory for tpu_custom_call.1']
    #allocation5 [shape = 'u8[65536]{0}', space=vmem, size = 0x10000, scoped, tag = 'input window, operand 1, single buffered']
    #allocation6 [shape = 's32[1]{0}', space=sflag, size = 0x4, scoped, tag = 'scoped memory for tpu_custom_call.1']
    #allocation7 [shape = 'u8[65536]{0}', space=vmem, size = 0x10000, scoped, tag = 'input window, operand 2, single buffered']
    #allocation8 [shape = 'u8[196608]{0}', space=vmem, size = 0x30000, scoped, tag = 'input window, operand 3, single buffered']
    #allocation9 [shape = 's32[1]{0}', space=sflag, size = 0x4, scoped, tag = 'scoped memory for tpu_custom_call.1']
    #allocation10 [shape = 'u8[196608]{0}', space=vmem, size = 0x30000, scoped, tag = 'input window, operand 4, single buffered']
    #allocation11 [shape = 'u8[98304]{0}', space=vmem, size = 0x18000, scoped, tag = 'output window, operand 0']
    %10 = vsyncpa [#allocation3], 0
    %s11 = scalar_lea.sflag [#allocation3], 1
    %12 = vsyncpa %s11, 0
    %13 = vsyncpa [#allocation6], 0
    %14 = vsyncpa [#allocation9], 0
    %15 = vsyncpa [#allocation4], 0
    %s16 = scalar_lea.sflag [#allocation4], 1
    %17 = vsyncpa %s16, 0
    loop: start=0, step=1, limit=4
    $region2: #{tpu_custom_call.1} parent=1 // loop_pre_header
      _
    $region3: #{tpu_custom_call.1} parent=1 // loop_header
      %s19 = sphi 0, %s23
      %p20 = scmp.ge.s32.totalorder %s19, 4
      %s26 = sphi 0, %s38
      %s27 = sphi 0, %s34
      %s28 = sphi 0, %s26
      %s29 = sphi 0, %s27
      %s30 = sphi 0, %s28
      %s31 = sphi 0, %s29
      %s43 = sphi 0, %s45
      %s46 = sphi 0, %s43
      %s47 = sphi 0, %s46
      %s63 = sphi 0, %s47
      %s67 = sphi 0, %s67
      %s69 = sphi 0, %s67
      %s70 = sphi 0, %s69
      %s84 = sphi 0, %s70
      %s88 = sphi 0, %s88
      %s90 = sphi 0, %s88
      %s91 = sphi 0, %s90
      %s105 = sphi 0, %s91
      %s109 = sphi 0, %s109
      %s111 = sphi 0, %s109
      %s112 = sphi 0, %s111
      %s126 = sphi 0, %s112
      %s130 = sphi 0, %s130
      %s132 = sphi 0, %s130
      %s133 = sphi 0, %s132
      %s147 = sphi 0, %s133
      %s155 = sphi 0, %s157
      %s158 = sphi 0, %s155
      %s159 = sphi 0, %s158
      %s175 = sphi 0, %s159
    $region4: #{tpu_custom_call.1} parent=1 // loop_header_branch
      %22 = sbr.rel (%p20) target = $region8
    $region5: #{tpu_custom_call.1} parent=1 // loop_body
      %s24 = ssub.s32 %s19, 1
      %s25 = ssub.s32 %s19, 2
      %s32 = sadd.s32 1, %s27
      %p33 = scmp.ge.s32.totalorder %s32, 2
      %s34 = scalar_select %p33, 0, %s32
      %s35 = sadd.s32 1, %s26
      %s36 = scalar_select %p33, %s35, %s26
      %p37 = scmp.ge.s32.totalorder %s36, 1
      %s38 = scalar_select %p37, 0, %s36
      %s39 = ssub.s32 %s26, %s38
      %s40 = ssub.s32 %s27, %s34
      %s41 = sor.u32 %s39, %s40
      %p42 = scmp.eq.s32.totalorder %s41, 0
      %s44 = sadd.s32 %s43, 1
      %s45 = scalar_select %p42, %s43, %s44
      %p48 = pneg %p42
      %p49 = scmp.eq.s32.totalorder %s19, 1
      %p50 = por %p48, %p49
      %p51 = scmp.ne.s32.totalorder %s43, %s46
      %p52 = scmp.eq.s32.totalorder %s19, 0
      %p53 = por %p51, %p52
      %p54 = scmp.ne.s32.totalorder %s43, %s46
      %p55 = scmp.eq.s32.totalorder %s24, 1
      %p56 = por %p54, %p55
      %p57 = scmp.ne.s32.totalorder %s46, %s47
      %p58 = scmp.eq.s32.totalorder %s24, 0
      %p59 = por %p57, %p58
      %p60 = scmp.ne.s32.totalorder %s46, %s47
      %p61 = scmp.eq.s32.totalorder %s25, 1
      %p62 = por %p60, %p61
      %p64 = scmp.ne.s32.totalorder %s47, %s63
      %p65 = scmp.eq.s32.totalorder %s25, 0
      %p66 = por %p64, %p65
      %s68 = sadd.s32 %s67, 1
      %p71 = scmp.eq.s32.totalorder %s19, 1
      %p72 = scmp.ne.s32.totalorder %s67, %s69
      %p73 = scmp.eq.s32.totalorder %s19, 0
      %p74 = por %p72, %p73
      %p75 = scmp.ne.s32.totalorder %s67, %s69
      %p76 = scmp.eq.s32.totalorder %s24, 1
      %p77 = por %p75, %p76
      %p78 = scmp.ne.s32.totalorder %s69, %s70
      %p79 = scmp.eq.s32.totalorder %s24, 0
      %p80 = por %p78, %p79
      %p81 = scmp.ne.s32.totalorder %s69, %s70
      %p82 = scmp.eq.s32.totalorder %s25, 1
      %p83 = por %p81, %p82
      %p85 = scmp.ne.s32.totalorder %s70, %s84
      %p86 = scmp.eq.s32.totalorder %s25, 0
      %p87 = por %p85, %p86
      %s89 = sadd.s32 %s88, 1
      %p92 = scmp.eq.s32.totalorder %s19, 1
      %p93 = scmp.ne.s32.totalorder %s88, %s90
      %p94 = scmp.eq.s32.totalorder %s19, 0
      %p95 = por %p93, %p94
      %p96 = scmp.ne.s32.totalorder %s88, %s90
      %p97 = scmp.eq.s32.totalorder %s24, 1
      %p98 = por %p96, %p97
      %p99 = scmp.ne.s32.totalorder %s90, %s91
      %p100 = scmp.eq.s32.totalorder %s24, 0
      %p101 = por %p99, %p100
      %p102 = scmp.ne.s32.totalorder %s90, %s91
      %p103 = scmp.eq.s32.totalorder %s25, 1
      %p104 = por %p102, %p103
      %p106 = scmp.ne.s32.totalorder %s91, %s105
      %p107 = scmp.eq.s32.totalorder %s25, 0
      %p108 = por %p106, %p107
      %s110 = sadd.s32 %s109, 1
      %p113 = scmp.eq.s32.totalorder %s19, 1
      %p114 = scmp.ne.s32.totalorder %s109, %s111
      %p115 = scmp.eq.s32.totalorder %s19, 0
      %p116 = por %p114, %p115
      %p117 = scmp.ne.s32.totalorder %s109, %s111
      %p118 = scmp.eq.s32.totalorder %s24, 1
      %p119 = por %p117, %p118
      %p120 = scmp.ne.s32.totalorder %s111, %s112
      %p121 = scmp.eq.s32.totalorder %s24, 0
      %p122 = por %p120, %p121
      %p123 = scmp.ne.s32.totalorder %s111, %s112
      %p124 = scmp.eq.s32.totalorder %s25, 1
      %p125 = por %p123, %p124
      %p127 = scmp.ne.s32.totalorder %s112, %s126
      %p128 = scmp.eq.s32.totalorder %s25, 0
      %p129 = por %p127, %p128
      %s131 = sadd.s32 %s130, 1
      %p134 = scmp.eq.s32.totalorder %s19, 1
      %p135 = scmp.ne.s32.totalorder %s130, %s132
      %p136 = scmp.eq.s32.totalorder %s19, 0
      %p137 = por %p135, %p136
      %p138 = scmp.ne.s32.totalorder %s130, %s132
      %p139 = scmp.eq.s32.totalorder %s24, 1
      %p140 = por %p138, %p139
      %p141 = scmp.ne.s32.totalorder %s132, %s133
      %p142 = scmp.eq.s32.totalorder %s24, 0
      %p143 = por %p141, %p142
      %p144 = scmp.ne.s32.totalorder %s132, %s133
      %p145 = scmp.eq.s32.totalorder %s25, 1
      %p146 = por %p144, %p145
      %p148 = scmp.ne.s32.totalorder %s133, %s147
      %p149 = scmp.eq.s32.totalorder %s25, 0
      %p150 = por %p148, %p149
      %s151 = ssub.s32 %s26, %s38
      %s152 = ssub.s32 %s27, %s34
      %s153 = sor.u32 %s151, %s152
      %p154 = scmp.eq.s32.totalorder %s153, 0
      %s156 = sadd.s32 %s155, 1
      %s157 = scalar_select %p154, %s155, %s156
      %p160 = pneg %p154
      %p161 = scmp.eq.s32.totalorder %s19, 1
      %p162 = por %p160, %p161
      %p163 = scmp.ne.s32.totalorder %s155, %s158
      %p164 = scmp.eq.s32.totalorder %s19, 0
      %p165 = por %p163, %p164
      %p166 = scmp.ne.s32.totalorder %s155, %s158
      %p167 = scmp.eq.s32.totalorder %s24, 1
      %p168 = por %p166, %p167
      %p169 = scmp.ne.s32.totalorder %s158, %s159
      %p170 = scmp.eq.s32.totalorder %s24, 0
      %p171 = por %p169, %p170
      %p172 = scmp.ne.s32.totalorder %s158, %s159
      %p173 = scmp.eq.s32.totalorder %s25, 1
      %p174 = por %p172, %p173
      %p176 = scmp.ne.s32.totalorder %s159, %s175
      %p177 = scmp.eq.s32.totalorder %s25, 0
      %p178 = por %p176, %p177
      %p179 = scmp.le.s32.totalorder 1, %s19
      %p180 = scmp.lt.s32.totalorder %s19, 3
      %p181 = pnand %p179, %p180
      %p182 = pneg %p181
      // Predicated region
      $region9: #{tpu_custom_call.1} parent=5 // pred_check
        _
      $region10: #{tpu_custom_call.1} parent=5 // pred_check_branch
        %184 = sbr.rel (%p181) target = $region12
      $region11: #{tpu_custom_call.1} parent=5 // pred_region
        %s185 = ssub.s32 %s19, 1
        // Predicated region
        $region13: #{tpu_custom_call.1} parent=11 // pred_check
          %p186 = pneg %p80
        $region14: #{tpu_custom_call.1} parent=11 // pred_check_branch
          %188 = sbr.rel (%p186) target = $region16
        $region15: #{tpu_custom_call.1} parent=11 // pred_region
          %s190 = ssub.s32 2048, 2048
          %191 = vsyncadd [#allocation6], %s190
          %s192 = sshll.u32 [#allocation5], 4
          %s193 = int_to_ptr.vmem [resolvable:$true] %s192
          %198 = dma.hbm_to_vmem [thread:$0]  %s1, 2048, %s193, [#allocation6], 128, 128, 8
        $region16: #{tpu_custom_call.1} parent=11 // pred_fallthru
          _
        // Predicated region
        $region17: #{tpu_custom_call.1} parent=11 // pred_check
          %p199 = pneg %p101
        $region18: #{tpu_custom_call.1} parent=11 // pred_check_branch
          %201 = sbr.rel (%p199) target = $region20
        $region19: #{tpu_custom_call.1} parent=11 // pred_region
          %s203 = ssub.s32 2048, 2048
          %204 = vsyncadd [#allocation6], %s203
          %s205 = sshll.u32 [#allocation7], 4
          %s206 = int_to_ptr.vmem [resolvable:$true] %s205
          %211 = dma.hbm_to_vmem [thread:$0]  %s2, 2048, %s206, [#allocation6], 128, 128, 8
        $region20: #{tpu_custom_call.1} parent=11 // pred_fallthru
          _
        // Predicated region
        $region21: #{tpu_custom_call.1} parent=11 // pred_check
          %p212 = pneg %p122
        $region22: #{tpu_custom_call.1} parent=11 // pred_check_branch
          %214 = sbr.rel (%p212) target = $region24
        $region23: #{tpu_custom_call.1} parent=11 // pred_region
          %s216 = ssub.s32 6144, 6144
          %217 = vsyncadd [#allocation9], %s216
          %s218 = sshll.u32 [#allocation8], 4
          %s219 = int_to_ptr.vmem [resolvable:$true] %s218
          %224 = dma.hbm_to_vmem [thread:$0]  %s3, 6144, %s219, [#allocation9], 128, 128, 8
        $region24: #{tpu_custom_call.1} parent=11 // pred_fallthru
          _
        // Predicated region
        $region25: #{tpu_custom_call.1} parent=11 // pred_check
          %p225 = pneg %p143
        $region26: #{tpu_custom_call.1} parent=11 // pred_check_branch
          %227 = sbr.rel (%p225) target = $region28
        $region27: #{tpu_custom_call.1} parent=11 // pred_region
          %s229 = ssub.s32 6144, 6144
          %230 = vsyncadd [#allocation9], %s229
          %s231 = sshll.u32 [#allocation10], 4
          %s232 = int_to_ptr.vmem [resolvable:$true] %s231
          %237 = dma.hbm_to_vmem [thread:$0]  %s4, 6144, %s232, [#allocation9], 128, 128, 8
        $region28: #{tpu_custom_call.1} parent=11 // pred_fallthru
          _
      $region12: #{tpu_custom_call.1} parent=5 // pred_fallthru
        _
      %p238 = scmp.lt.s32.totalorder %s19, 2
      // Predicated region
      $region29: #{tpu_custom_call.1} parent=5 // pred_check
        %p239 = pneg %p238
      $region30: #{tpu_custom_call.1} parent=5 // pred_check_branch
        %241 = sbr.rel (%p239) target = $region32
      $region31: #{tpu_custom_call.1} parent=5 // pred_region
        // Predicated region
        $region33: #{tpu_custom_call.1} parent=31 // pred_check
          %p242 = pneg %p53
        $region34: #{tpu_custom_call.1} parent=31 // pred_check_branch
          %244 = sbr.rel (%p242) target = $region36
        $region35: #{tpu_custom_call.1} parent=31 // pred_region
          %s245 = sand.u32 %s43, 1
          %s246 = scalar_lea.sflag [#allocation3], %s245
          %s247 = sand.u32 %s43, 1
          %s248 = smul.addr %s247, 96
          %s249 = scalar_lea.vmem [#allocation2], %s248
          %s250 = smul.u32 4, %s26
          %s252 = ssub.s32 1536, 1536
          %253 = vsyncadd %s246, %s252
          %s254 = smul.addr %s250, 2
          %s255 = sadd.s32 %s27, %s254
          %s256 = smul.addr %s255, 128
          %s257 = scalar_lea.hbm %s0, %s256
          %s258 = sshll.u32 %s249, 4
          %s259 = int_to_ptr.vmem [resolvable:$true] %s258
          %264 = dma.hbm_to_vmem [thread:$0]  %s257, 1536, %s259, %s246, 256, 128, 8
        $region36: #{tpu_custom_call.1} parent=31 // pred_fallthru
          _
      $region32: #{tpu_custom_call.1} parent=5 // pred_fallthru
        _
      %p265 = scmp.le.s32.totalorder 1, %s19
      %p266 = scmp.lt.s32.totalorder %s19, 3
      %p267 = pnand %p265, %p266
      %p268 = pneg %p267
      // Predicated region
      $region37: #{tpu_custom_call.1} parent=5 // pred_check
        _
      $region38: #{tpu_custom_call.1} parent=5 // pred_check_branch
        %270 = sbr.rel (%p267) target = $region40
      $region39: #{tpu_custom_call.1} parent=5 // pred_region
        %s271 = ssub.s32 %s19, 1
        %s272 = sand.u32 %s46, 1
        %s273 = scalar_lea.sflag [#allocation3], %s272
        %s274 = sand.u32 %s46, 1
        %s275 = smul.addr %s274, 96
        %s276 = scalar_lea.vmem [#allocation2], %s275
        // Predicated region
        $region41: #{tpu_custom_call.1} parent=39 // pred_check
          %p277 = pneg %p59
        $region42: #{tpu_custom_call.1} parent=39 // pred_check_branch
          %279 = sbr.rel (%p277) target = $region44
        $region43: #{tpu_custom_call.1} parent=39 // pred_region
          %280 = dma.done %s273, 1536
        $region44: #{tpu_custom_call.1} parent=39 // pred_fallthru
          _
        // Predicated region
        $region45: #{tpu_custom_call.1} parent=39 // pred_check
          %p281 = pneg %p80
        $region46: #{tpu_custom_call.1} parent=39 // pred_check_branch
          %283 = sbr.rel (%p281) target = $region48
        $region47: #{tpu_custom_call.1} parent=39 // pred_region
          %284 = dma.done [#allocation6], 2048
        $region48: #{tpu_custom_call.1} parent=39 // pred_fallthru
          _
        // Predicated region
        $region49: #{tpu_custom_call.1} parent=39 // pred_check
          %p285 = pneg %p101
        $region50: #{tpu_custom_call.1} parent=39 // pred_check_branch
          %287 = sbr.rel (%p285) target = $region52
        $region51: #{tpu_custom_call.1} parent=39 // pred_region
          %288 = dma.done [#allocation6], 2048
        $region52: #{tpu_custom_call.1} parent=39 // pred_fallthru
          _
        // Predicated region
        $region53: #{tpu_custom_call.1} parent=39 // pred_check
          %p289 = pneg %p122
        $region54: #{tpu_custom_call.1} parent=39 // pred_check_branch
          %291 = sbr.rel (%p289) target = $region56
        $region55: #{tpu_custom_call.1} parent=39 // pred_region
          %292 = dma.done [#allocation9], 6144
        $region56: #{tpu_custom_call.1} parent=39 // pred_fallthru
          _
        // Predicated region
        $region57: #{tpu_custom_call.1} parent=39 // pred_check
          %p293 = pneg %p143
        $region58: #{tpu_custom_call.1} parent=39 // pred_check_branch
          %295 = sbr.rel (%p293) target = $region60
        $region59: #{tpu_custom_call.1} parent=39 // pred_region
          %296 = dma.done [#allocation9], 6144
        $region60: #{tpu_custom_call.1} parent=39 // pred_fallthru
          _
        %s297 = sand.u32 %s46, 1
        %s298 = scalar_lea.sflag [#allocation3], %s297
        %s299 = sand.u32 %s46, 1
        %s300 = smul.addr %s299, 96
        %s301 = scalar_lea.vmem [#allocation2], %s300
        %p302 = pneg %p59
        %p303 = pneg %p56
        %p304 = pneg %p80
        %p305 = pneg %p77
        %p306 = pneg %p101
        %p307 = pneg %p98
        %p308 = pneg %p122
        %p309 = pneg %p119
        %p310 = pneg %p143
        %p311 = pneg %p140
        %p312 = pneg %p171
        %p313 = pneg %p168
        %s314 = sand.u32 %s158, 1
        %s315 = scalar_lea.sflag [#allocation4], %s314
        %s316 = sand.u32 %s158, 1
        %s317 = smul.addr %s316, 96
        %s318 = scalar_lea.vmem [#allocation11], %s317
        %s319 = smul.u32 4, %s28
        %s320 = smul.u32 4, %s28
        %v321 = vld [vmem:[%s276] sm:$0xff]
        %v322 = vld [vmem:[%s276 + $0x8] sm:$0xff]
        %v323 = vld [vmem:[%s276 + $0x10] sm:$0xff]
        %v324 = vld [vmem:[%s276 + $0x18] sm:$0xff]
        %v325 = vld [vmem:[%s276 + $0x20] sm:$0xff]
        %v326 = vld [vmem:[%s276 + $0x28] sm:$0xff]
        %v327 = vld [vmem:[%s276 + $0x30] sm:$0xff]
        %v328 = vld [vmem:[%s276 + $0x38] sm:$0xff]
        %v329 = vld [vmem:[%s276 + $0x40] sm:$0xff]
        %v330 = vld [vmem:[%s276 + $0x48] sm:$0xff]
        %v331 = vld [vmem:[%s276 + $0x50] sm:$0xff]
        %v332 = vld [vmem:[%s276 + $0x58] sm:$0xff]
        %v333 = vunpack.c.0.s8 %v321
        %v334 = vunpack.c.1.s8 %v321
        %v335 = vunpack.c.2.s8 %v321
        %v336 = vunpack.c.3.s8 %v321
        %v337 = vunpack.c.0.s8 %v322
        %v338 = vunpack.c.1.s8 %v322
        %v339 = vunpack.c.2.s8 %v322
        %v340 = vunpack.c.3.s8 %v322
        %v341 = vunpack.c.0.s8 %v323
        %v342 = vunpack.c.1.s8 %v323
        %v343 = vunpack.c.2.s8 %v323
        %v344 = vunpack.c.3.s8 %v323
        %v345 = vunpack.c.0.s8 %v324
        %v346 = vunpack.c.1.s8 %v324
        %v347 = vunpack.c.2.s8 %v324
        %v348 = vunpack.c.3.s8 %v324
        %v349 = vunpack.c.0.s8 %v325
        %v350 = vunpack.c.1.s8 %v325
        %v351 = vunpack.c.2.s8 %v325
        %v352 = vunpack.c.3.s8 %v325
        %v353 = vunpack.c.0.s8 %v326
        %v354 = vunpack.c.1.s8 %v326
        %v355 = vunpack.c.2.s8 %v326
        %v356 = vunpack.c.3.s8 %v326
        %v357 = vunpack.c.0.s8 %v327
        %v358 = vunpack.c.1.s8 %v327
        %v359 = vunpack.c.2.s8 %v327
        %v360 = vunpack.c.3.s8 %v327
        %v361 = vunpack.c.0.s8 %v328
        %v362 = vunpack.c.1.s8 %v328
        %v363 = vunpack.c.2.s8 %v328
        %v364 = vunpack.c.3.s8 %v328
        %v365 = vunpack.c.0.s8 %v329
        %v366 = vunpack.c.1.s8 %v329
        %v367 = vunpack.c.2.s8 %v329
        %v368 = vunpack.c.3.s8 %v329
        %v369 = vunpack.c.0.s8 %v330
        %v370 = vunpack.c.1.s8 %v330
        %v371 = vunpack.c.2.s8 %v330
        %v372 = vunpack.c.3.s8 %v330
        %v373 = vunpack.c.0.s8 %v331
        %v374 = vunpack.c.1.s8 %v331
        %v375 = vunpack.c.2.s8 %v331
        %v376 = vunpack.c.3.s8 %v331
        %v377 = vunpack.c.0.s8 %v332
        %v378 = vunpack.c.1.s8 %v332
        %v379 = vunpack.c.2.s8 %v332
        %v380 = vunpack.c.3.s8 %v332
        %v381 = vand.u32 %v333, 255
        %v382 = vand.u32 %v334, 255
        %v383 = vand.u32 %v335, 255
        %v384 = vand.u32 %v336, 255
        %v385 = vand.u32 %v337, 255
        %v386 = vand.u32 %v338, 255
        %v387 = vand.u32 %v339, 255
        %v388 = vand.u32 %v340, 255
        %v389 = vand.u32 %v341, 255
        %v390 = vand.u32 %v342, 255
        %v391 = vand.u32 %v343, 255
        %v392 = vand.u32 %v344, 255
        %v393 = vand.u32 %v345, 255
        %v394 = vand.u32 %v346, 255
        %v395 = vand.u32 %v347, 255
        %v396 = vand.u32 %v348, 255
        %v397 = vand.u32 %v349, 255
        %v398 = vand.u32 %v350, 255
        %v399 = vand.u32 %v351, 255
        %v400 = vand.u32 %v352, 255
        %v401 = vand.u32 %v353, 255
        %v402 = vand.u32 %v354, 255
        %v403 = vand.u32 %v355, 255
        %v404 = vand.u32 %v356, 255
        %v405 = vand.u32 %v357, 255
        %v406 = vand.u32 %v358, 255
        %v407 = vand.u32 %v359, 255
        %v408 = vand.u32 %v360, 255
        %v409 = vand.u32 %v361, 255
        %v410 = vand.u32 %v362, 255
        %v411 = vand.u32 %v363, 255
        %v412 = vand.u32 %v364, 255
        %v413 = vand.u32 %v365, 255
        %v414 = vand.u32 %v366, 255
        %v415 = vand.u32 %v367, 255
        %v416 = vand.u32 %v368, 255
        %v417 = vand.u32 %v369, 255
        %v418 = vand.u32 %v370, 255
        %v419 = vand.u32 %v371, 255
        %v420 = vand.u32 %v372, 255
        %v421 = vand.u32 %v373, 255
        %v422 = vand.u32 %v374, 255
        %v423 = vand.u32 %v375, 255
        %v424 = vand.u32 %v376, 255
        %v425 = vand.u32 %v377, 255
        %v426 = vand.u32 %v378, 255
        %v427 = vand.u32 %v379, 255
        %v428 = vand.u32 %v380, 255
        %v429 = vcvt.s32.f32 %v381
        %v430 = vcvt.s32.f32 %v382
        %v431 = vcvt.s32.f32 %v383
        %v432 = vcvt.s32.f32 %v384
        %v433 = vcvt.s32.f32 %v385
        %v434 = vcvt.s32.f32 %v386
        %v435 = vcvt.s32.f32 %v387
        %v436 = vcvt.s32.f32 %v388
        %v437 = vcvt.s32.f32 %v389
        %v438 = vcvt.s32.f32 %v390
        %v439 = vcvt.s32.f32 %v391
        %v440 = vcvt.s32.f32 %v392
        %v441 = vcvt.s32.f32 %v393
        %v442 = vcvt.s32.f32 %v394
        %v443 = vcvt.s32.f32 %v395
        %v444 = vcvt.s32.f32 %v396
        %v445 = vcvt.s32.f32 %v397
        %v446 = vcvt.s32.f32 %v398
        %v447 = vcvt.s32.f32 %v399
        %v448 = vcvt.s32.f32 %v400
        %v449 = vcvt.s32.f32 %v401
        %v450 = vcvt.s32.f32 %v402
        %v451 = vcvt.s32.f32 %v403
        %v452 = vcvt.s32.f32 %v404
        %v453 = vcvt.s32.f32 %v405
        %v454 = vcvt.s32.f32 %v406
        %v455 = vcvt.s32.f32 %v407
        %v456 = vcvt.s32.f32 %v408
        %v457 = vcvt.s32.f32 %v409
        %v458 = vcvt.s32.f32 %v410
        %v459 = vcvt.s32.f32 %v411
        %v460 = vcvt.s32.f32 %v412
        %v461 = vcvt.s32.f32 %v413
        %v462 = vcvt.s32.f32 %v414
        %v463 = vcvt.s32.f32 %v415
        %v464 = vcvt.s32.f32 %v416
        %v465 = vcvt.s32.f32 %v417
        %v466 = vcvt.s32.f32 %v418
        %v467 = vcvt.s32.f32 %v419
        %v468 = vcvt.s32.f32 %v420
        %v469 = vcvt.s32.f32 %v421
        %v470 = vcvt.s32.f32 %v422
        %v471 = vcvt.s32.f32 %v423
        %v472 = vcvt.s32.f32 %v424
        %v473 = vcvt.s32.f32 %v425
        %v474 = vcvt.s32.f32 %v426
        %v475 = vcvt.s32.f32 %v427
        %v476 = vcvt.s32.f32 %v428
        %v477 = vmul.f32 %v429, 0.299
        %v478 = vmul.f32 %v430, 0.299
        %v479 = vmul.f32 %v431, 0.299
        %v480 = vmul.f32 %v432, 0.299
        %v481 = vmul.f32 %v433, 0.299
        %v482 = vmul.f32 %v434, 0.299
        %v483 = vmul.f32 %v435, 0.299
        %v484 = vmul.f32 %v436, 0.299
        %v485 = vmul.f32 %v437, 0.299
        %v486 = vmul.f32 %v438, 0.299
        %v487 = vmul.f32 %v439, 0.299
        %v488 = vmul.f32 %v440, 0.299
        %v489 = vmul.f32 %v441, 0.299
        %v490 = vmul.f32 %v442, 0.299
        %v491 = vmul.f32 %v443, 0.299
        %v492 = vmul.f32 %v444, 0.299
        %v493 = vmul.f32 %v445, 0.587
        %v494 = vmul.f32 %v446, 0.587
        %v495 = vmul.f32 %v447, 0.587
        %v496 = vmul.f32 %v448, 0.587
        %v497 = vmul.f32 %v449, 0.587
        %v498 = vmul.f32 %v450, 0.587
        %v499 = vmul.f32 %v451, 0.587
        %v500 = vmul.f32 %v452, 0.587
        %v501 = vmul.f32 %v453, 0.587
        %v502 = vmul.f32 %v454, 0.587
        %v503 = vmul.f32 %v455, 0.587
        %v504 = vmul.f32 %v456, 0.587
        %v505 = vmul.f32 %v457, 0.587
        %v506 = vmul.f32 %v458, 0.587
        %v507 = vmul.f32 %v459, 0.587
        %v508 = vmul.f32 %v460, 0.587
        %v509 = vadd.f32 %v477, %v493
        %v510 = vadd.f32 %v478, %v494
        %v511 = vadd.f32 %v479, %v495
        %v512 = vadd.f32 %v480, %v496
        %v513 = vadd.f32 %v481, %v497
        %v514 = vadd.f32 %v482, %v498
        %v515 = vadd.f32 %v483, %v499
        %v516 = vadd.f32 %v484, %v500
        %v517 = vadd.f32 %v485, %v501
        %v518 = vadd.f32 %v486, %v502
        %v519 = vadd.f32 %v487, %v503
        %v520 = vadd.f32 %v488, %v504
        %v521 = vadd.f32 %v489, %v505
        %v522 = vadd.f32 %v490, %v506
        %v523 = vadd.f32 %v491, %v507
        %v524 = vadd.f32 %v492, %v508
        %v525 = vmul.f32 %v461, 0.114
        %v526 = vmul.f32 %v462, 0.114
        %v527 = vmul.f32 %v463, 0.114
        %v528 = vmul.f32 %v464, 0.114
        %v529 = vmul.f32 %v465, 0.114
        %v530 = vmul.f32 %v466, 0.114
        %v531 = vmul.f32 %v467, 0.114
        %v532 = vmul.f32 %v468, 0.114
        %v533 = vmul.f32 %v469, 0.114
        %v534 = vmul.f32 %v470, 0.114
        %v535 = vmul.f32 %v471, 0.114
        %v536 = vmul.f32 %v472, 0.114
        %v537 = vmul.f32 %v473, 0.114
        %v538 = vmul.f32 %v474, 0.114
        %v539 = vmul.f32 %v475, 0.114
        %v540 = vmul.f32 %v476, 0.114
        %v541 = vadd.f32 %v509, %v525
        %v542 = vadd.f32 %v510, %v526
        %v543 = vadd.f32 %v511, %v527
        %v544 = vadd.f32 %v512, %v528
        %v545 = vadd.f32 %v513, %v529
        %v546 = vadd.f32 %v514, %v530
        %v547 = vadd.f32 %v515, %v531
        %v548 = vadd.f32 %v516, %v532
        %v549 = vadd.f32 %v517, %v533
        %v550 = vadd.f32 %v518, %v534
        %v551 = vadd.f32 %v519, %v535
        %v552 = vadd.f32 %v520, %v536
        %v553 = vadd.f32 %v521, %v537
        %v554 = vadd.f32 %v522, %v538
        %v555 = vadd.f32 %v523, %v539
        %v556 = vadd.f32 %v524, %v540
        %v557 = vmul.f32 %v429, -0.168736
        %v558 = vmul.f32 %v430, -0.168736
        %v559 = vmul.f32 %v431, -0.168736
        %v560 = vmul.f32 %v432, -0.168736
        %v561 = vmul.f32 %v433, -0.168736
        %v562 = vmul.f32 %v434, -0.168736
        %v563 = vmul.f32 %v435, -0.168736
        %v564 = vmul.f32 %v436, -0.168736
        %v565 = vmul.f32 %v437, -0.168736
        %v566 = vmul.f32 %v438, -0.168736
        %v567 = vmul.f32 %v439, -0.168736
        %v568 = vmul.f32 %v440, -0.168736
        %v569 = vmul.f32 %v441, -0.168736
        %v570 = vmul.f32 %v442, -0.168736
        %v571 = vmul.f32 %v443, -0.168736
        %v572 = vmul.f32 %v444, -0.168736
        %v573 = vmul.f32 %v445, 0.331264
        %v574 = vmul.f32 %v446, 0.331264
        %v575 = vmul.f32 %v447, 0.331264
        %v576 = vmul.f32 %v448, 0.331264
        %v577 = vmul.f32 %v449, 0.331264
        %v578 = vmul.f32 %v450, 0.331264
        %v579 = vmul.f32 %v451, 0.331264
        %v580 = vmul.f32 %v452, 0.331264
        %v581 = vmul.f32 %v453, 0.331264
        %v582 = vmul.f32 %v454, 0.331264
        %v583 = vmul.f32 %v455, 0.331264
        %v584 = vmul.f32 %v456, 0.331264
        %v585 = vmul.f32 %v457, 0.331264
        %v586 = vmul.f32 %v458, 0.331264
        %v587 = vmul.f32 %v459, 0.331264
        %v588 = vmul.f32 %v460, 0.331264
        %v589 = vsub.f32 %v557, %v573
        %v590 = vsub.f32 %v558, %v574
        %v591 = vsub.f32 %v559, %v575
        %v592 = vsub.f32 %v560, %v576
        %v593 = vsub.f32 %v561, %v577
        %v594 = vsub.f32 %v562, %v578
        %v595 = vsub.f32 %v563, %v579
        %v596 = vsub.f32 %v564, %v580
        %v597 = vsub.f32 %v565, %v581
        %v598 = vsub.f32 %v566, %v582
        %v599 = vsub.f32 %v567, %v583
        %v600 = vsub.f32 %v568, %v584
        %v601 = vsub.f32 %v569, %v585
        %v602 = vsub.f32 %v570, %v586
        %v603 = vsub.f32 %v571, %v587
        %v604 = vsub.f32 %v572, %v588
        %v605 = vmul.f32 %v461, 0.5
        %v606 = vmul.f32 %v462, 0.5
        %v607 = vmul.f32 %v463, 0.5
        %v608 = vmul.f32 %v464, 0.5
        %v609 = vmul.f32 %v465, 0.5
        %v610 = vmul.f32 %v466, 0.5
        %v611 = vmul.f32 %v467, 0.5
        %v612 = vmul.f32 %v468, 0.5
        %v613 = vmul.f32 %v469, 0.5
        %v614 = vmul.f32 %v470, 0.5
        %v615 = vmul.f32 %v471, 0.5
        %v616 = vmul.f32 %v472, 0.5
        %v617 = vmul.f32 %v473, 0.5
        %v618 = vmul.f32 %v474, 0.5
        %v619 = vmul.f32 %v475, 0.5
        %v620 = vmul.f32 %v476, 0.5
        %v621 = vadd.f32 %v589, %v605
        %v622 = vadd.f32 %v590, %v606
        %v623 = vadd.f32 %v591, %v607
        %v624 = vadd.f32 %v592, %v608
        %v625 = vadd.f32 %v593, %v609
        %v626 = vadd.f32 %v594, %v610
        %v627 = vadd.f32 %v595, %v611
        %v628 = vadd.f32 %v596, %v612
        %v629 = vadd.f32 %v597, %v613
        %v630 = vadd.f32 %v598, %v614
        %v631 = vadd.f32 %v599, %v615
        %v632 = vadd.f32 %v600, %v616
        %v633 = vadd.f32 %v601, %v617
        %v634 = vadd.f32 %v602, %v618
        %v635 = vadd.f32 %v603, %v619
        %v636 = vadd.f32 %v604, %v620
        %v637 = vadd.f32 %v621, 128.0
        %v638 = vadd.f32 %v622, 128.0
        %v639 = vadd.f32 %v623, 128.0
        %v640 = vadd.f32 %v624, 128.0
        %v641 = vadd.f32 %v625, 128.0
        %v642 = vadd.f32 %v626, 128.0
        %v643 = vadd.f32 %v627, 128.0
        %v644 = vadd.f32 %v628, 128.0
        %v645 = vadd.f32 %v629, 128.0
        %v646 = vadd.f32 %v630, 128.0
        %v647 = vadd.f32 %v631, 128.0
        %v648 = vadd.f32 %v632, 128.0
        %v649 = vadd.f32 %v633, 128.0
        %v650 = vadd.f32 %v634, 128.0
        %v651 = vadd.f32 %v635, 128.0
        %v652 = vadd.f32 %v636, 128.0
        %v653 = vmul.f32 %v429, 0.5
        %v654 = vmul.f32 %v430, 0.5
        %v655 = vmul.f32 %v431, 0.5
        %v656 = vmul.f32 %v432, 0.5
        %v657 = vmul.f32 %v433, 0.5
        %v658 = vmul.f32 %v434, 0.5
        %v659 = vmul.f32 %v435, 0.5
        %v660 = vmul.f32 %v436, 0.5
        %v661 = vmul.f32 %v437, 0.5
        %v662 = vmul.f32 %v438, 0.5
        %v663 = vmul.f32 %v439, 0.5
        %v664 = vmul.f32 %v440, 0.5
        %v665 = vmul.f32 %v441, 0.5
        %v666 = vmul.f32 %v442, 0.5
        %v667 = vmul.f32 %v443, 0.5
        %v668 = vmul.f32 %v444, 0.5
        %v669 = vmul.f32 %v445, 0.418688
        %v670 = vmul.f32 %v446, 0.418688
        %v671 = vmul.f32 %v447, 0.418688
        %v672 = vmul.f32 %v448, 0.418688
        %v673 = vmul.f32 %v449, 0.418688
        %v674 = vmul.f32 %v450, 0.418688
        %v675 = vmul.f32 %v451, 0.418688
        %v676 = vmul.f32 %v452, 0.418688
        %v677 = vmul.f32 %v453, 0.418688
        %v678 = vmul.f32 %v454, 0.418688
        %v679 = vmul.f32 %v455, 0.418688
        %v680 = vmul.f32 %v456, 0.418688
        %v681 = vmul.f32 %v457, 0.418688
        %v682 = vmul.f32 %v458, 0.418688
        %v683 = vmul.f32 %v459, 0.418688
        %v684 = vmul.f32 %v460, 0.418688
        %v685 = vsub.f32 %v653, %v669
        %v686 = vsub.f32 %v654, %v670
        %v687 = vsub.f32 %v655, %v671
        %v688 = vsub.f32 %v656, %v672
        %v689 = vsub.f32 %v657, %v673
        %v690 = vsub.f32 %v658, %v674
        %v691 = vsub.f32 %v659, %v675
        %v692 = vsub.f32 %v660, %v676
        %v693 = vsub.f32 %v661, %v677
        %v694 = vsub.f32 %v662, %v678
        %v695 = vsub.f32 %v663, %v679
        %v696 = vsub.f32 %v664, %v680
        %v697 = vsub.f32 %v665, %v681
        %v698 = vsub.f32 %v666, %v682
        %v699 = vsub.f32 %v667, %v683
        %v700 = vsub.f32 %v668, %v684
        %v701 = vmul.f32 %v461, 0.081312
        %v702 = vmul.f32 %v462, 0.081312
        %v703 = vmul.f32 %v463, 0.081312
        %v704 = vmul.f32 %v464, 0.081312
        %v705 = vmul.f32 %v465, 0.081312
        %v706 = vmul.f32 %v466, 0.081312
        %v707 = vmul.f32 %v467, 0.081312
        %v708 = vmul.f32 %v468, 0.081312
        %v709 = vmul.f32 %v469, 0.081312
        %v710 = vmul.f32 %v470, 0.081312
        %v711 = vmul.f32 %v471, 0.081312
        %v712 = vmul.f32 %v472, 0.081312
        %v713 = vmul.f32 %v473, 0.081312
        %v714 = vmul.f32 %v474, 0.081312
        %v715 = vmul.f32 %v475, 0.081312
        %v716 = vmul.f32 %v476, 0.081312
        %v717 = vsub.f32 %v685, %v701
        %v718 = vsub.f32 %v686, %v702
        %v719 = vsub.f32 %v687, %v703
        %v720 = vsub.f32 %v688, %v704
        %v721 = vsub.f32 %v689, %v705
        %v722 = vsub.f32 %v690, %v706
        %v723 = vsub.f32 %v691, %v707
        %v724 = vsub.f32 %v692, %v708
        %v725 = vsub.f32 %v693, %v709
        %v726 = vsub.f32 %v694, %v710
        %v727 = vsub.f32 %v695, %v711
        %v728 = vsub.f32 %v696, %v712
        %v729 = vsub.f32 %v697, %v713
        %v730 = vsub.f32 %v698, %v714
        %v731 = vsub.f32 %v699, %v715
        %v732 = vsub.f32 %v700, %v716
        %v733 = vadd.f32 %v717, 128.0
        %v734 = vadd.f32 %v718, 128.0
        %v735 = vadd.f32 %v719, 128.0
        %v736 = vadd.f32 %v720, 128.0
        %v737 = vadd.f32 %v721, 128.0
        %v738 = vadd.f32 %v722, 128.0
        %v739 = vadd.f32 %v723, 128.0
        %v740 = vadd.f32 %v724, 128.0
        %v741 = vadd.f32 %v725, 128.0
        %v742 = vadd.f32 %v726, 128.0
        %v743 = vadd.f32 %v727, 128.0
        %v744 = vadd.f32 %v728, 128.0
        %v745 = vadd.f32 %v729, 128.0
        %v746 = vadd.f32 %v730, 128.0
        %v747 = vadd.f32 %v731, 128.0
        %v748 = vadd.f32 %v732, 128.0
        %v749 = vld [vmem:[#allocation5] sm:$0xff]
        %v750 = vld [vmem:[#allocation5 + $0x8] sm:$0xff]
        %v751 = vld [vmem:[#allocation5 + $0x10] sm:$0xff]
        %v752 = vld [vmem:[#allocation5 + $0x18] sm:$0xff]
        %v753 = vld [vmem:[#allocation5 + $0x20] sm:$0xff]
        %v754 = vld [vmem:[#allocation5 + $0x28] sm:$0xff]
        %v755 = vld [vmem:[#allocation5 + $0x30] sm:$0xff]
        %v756 = vld [vmem:[#allocation5 + $0x38] sm:$0xff]
        %v757 = vld [vmem:[#allocation5 + $0x40] sm:$0xff]
        %v758 = vld [vmem:[#allocation5 + $0x48] sm:$0xff]
        %v759 = vld [vmem:[#allocation5 + $0x50] sm:$0xff]
        %v760 = vld [vmem:[#allocation5 + $0x58] sm:$0xff]
        %v761 = vld [vmem:[#allocation5 + $0x60] sm:$0xff]
        %v762 = vld [vmem:[#allocation5 + $0x68] sm:$0xff]
        %v763 = vld [vmem:[#allocation5 + $0x70] sm:$0xff]
        %v764 = vld [vmem:[#allocation5 + $0x78] sm:$0xff]
        %v765 = vld [vmem:[#allocation7] sm:$0xff]
        %v766 = vld [vmem:[#allocation7 + $0x8] sm:$0xff]
        %v767 = vld [vmem:[#allocation7 + $0x10] sm:$0xff]
        %v768 = vld [vmem:[#allocation7 + $0x18] sm:$0xff]
        %v769 = vld [vmem:[#allocation7 + $0x20] sm:$0xff]
        %v770 = vld [vmem:[#allocation7 + $0x28] sm:$0xff]
        %v771 = vld [vmem:[#allocation7 + $0x30] sm:$0xff]
        %v772 = vld [vmem:[#allocation7 + $0x38] sm:$0xff]
        %v773 = vld [vmem:[#allocation7 + $0x40] sm:$0xff]
        %v774 = vld [vmem:[#allocation7 + $0x48] sm:$0xff]
        %v775 = vld [vmem:[#allocation7 + $0x50] sm:$0xff]
        %v776 = vld [vmem:[#allocation7 + $0x58] sm:$0xff]
        %v777 = vld [vmem:[#allocation7 + $0x60] sm:$0xff]
        %v778 = vld [vmem:[#allocation7 + $0x68] sm:$0xff]
        %v779 = vld [vmem:[#allocation7 + $0x70] sm:$0xff]
        %v780 = vld [vmem:[#allocation7 + $0x78] sm:$0xff]
        %v781 = vsub.f32 %v541, 128.0
        %v782 = vsub.f32 %v542, 128.0
        %v783 = vsub.f32 %v543, 128.0
        %v784 = vsub.f32 %v544, 128.0
        %v785 = vsub.f32 %v545, 128.0
        %v786 = vsub.f32 %v546, 128.0
        %v787 = vsub.f32 %v547, 128.0
        %v788 = vsub.f32 %v548, 128.0
        %v789 = vsub.f32 %v549, 128.0
        %v790 = vsub.f32 %v550, 128.0
        %v791 = vsub.f32 %v551, 128.0
        %v792 = vsub.f32 %v552, 128.0
        %v793 = vsub.f32 %v553, 128.0
        %v794 = vsub.f32 %v554, 128.0
        %v795 = vsub.f32 %v555, 128.0
        %v796 = vsub.f32 %v556, 128.0
        %797 = vmatprep.subr.mxu0 0.0
        %798 = vmatpush1.msra.mxu0 %v796
        %799 = vmatprep.subr.mxu0 0.0
        %800 = vmatpush1.msra.mxu0 %v795
        %801 = vmatprep.subr.mxu0 0.0
        %802 = vmatpush1.msra.mxu0 %v794
        %803 = vmatprep.subr.mxu0 0.0
        %804 = vmatpush1.msra.mxu0 %v793
        %805 = vmatprep.subr.mxu0 0.0
        %806 = vmatpush1.msra.mxu0 %v792
        %807 = vmatprep.subr.mxu0 0.0
        %808 = vmatpush1.msra.mxu0 %v791
        %809 = vmatprep.subr.mxu0 0.0
        %810 = vmatpush1.msra.mxu0 %v790
        %811 = vmatprep.subr.mxu0 0.0
        %812 = vmatpush1.msra.mxu0 %v789
        %813 = vmatprep.subr.mxu0 0.0
        %814 = vmatpush1.msra.mxu0 %v788
        %815 = vmatprep.subr.mxu0 0.0
        %816 = vmatpush1.msra.mxu0 %v787
        %817 = vmatprep.subr.mxu0 0.0
        %818 = vmatpush1.msra.mxu0 %v786
        %819 = vmatprep.subr.mxu0 0.0
        %820 = vmatpush1.msra.mxu0 %v785
        %821 = vmatprep.subr.mxu0 0.0
        %822 = vmatpush1.msra.mxu0 %v784
        %823 = vmatprep.subr.mxu0 0.0
        %824 = vmatpush1.msra.mxu0 %v783
        %825 = vmatprep.subr.mxu0 0.0
        %826 = vmatpush1.msra.mxu0 %v782
        %827 = vmatprep.subr.mxu0 0.0
        %828 = vmatpush1.msra.mxu0 %v781
        %829 = vmatprep.subr.mxu0 0.0
        %830 = vmatpush2.msra.mxu0 0.0
        %831 = vmatprep.subr.mxu0 0.0
        %832 = vmatpush2.msra.mxu0 0.0
        %833 = vmatprep.subr.mxu0 0.0
        %834 = vmatpush2.msra.mxu0 0.0
        %835 = vmatprep.subr.mxu0 0.0
        %836 = vmatpush2.msra.mxu0 0.0
        %837 = vmatprep.subr.mxu0 0.0
        %838 = vmatpush2.msra.mxu0 0.0
        %839 = vmatprep.subr.mxu0 0.0
        %840 = vmatpush2.msra.mxu0 0.0
        %841 = vmatprep.subr.mxu0 0.0
        %842 = vmatpush2.msra.mxu0 0.0
        %843 = vmatprep.subr.mxu0 0.0
        %844 = vmatpush2.msra.mxu0 0.0
        %845 = vmatprep.subr.mxu0 0.0
        %846 = vmatpush2.msra.mxu0 0.0
        %847 = vmatprep.subr.mxu0 0.0
        %848 = vmatpush2.msra.mxu0 0.0
        %849 = vmatprep.subr.mxu0 0.0
        %850 = vmatpush2.msra.mxu0 0.0
        %851 = vmatprep.subr.mxu0 0.0
        %852 = vmatpush2.msra.mxu0 0.0
        %853 = vmatprep.subr.mxu0 0.0
        %854 = vmatpush2.msra.mxu0 0.0
        %855 = vmatprep.subr.mxu0 0.0
        %856 = vmatpush2.msra.mxu0 0.0
        %857 = vmatprep.subr.mxu0 0.0
        %858 = vmatpush2.msra.mxu0 0.0
        %859 = vmatprep.subr.mxu0 0.0
        %860 = vmatpush2.msra.mxu0 0.0
        %861 = vmatprep.mubr.f32.mxu0 0.0
        %862 = vmatmul.mubr.f32.gmra.mxu0 %v749
        %v863 = vpop.f32.mrf.mxu0
        %v864 = vadd.f32 0.0, %v863
        %v865 = vpop.f32.mrf.mxu0
        %866 = vmatprep.mubr.f32.mxu0 0.0
        %867 = vmatmul.mubr.f32.gmra.mxu0 %v750
        %v868 = vpop.f32.mrf.mxu0
        %v869 = vadd.f32 0.0, %v868
        %v870 = vpop.f32.mrf.mxu0
        %871 = vmatprep.mubr.f32.mxu0 0.0
        %872 = vmatmul.mubr.f32.gmra.mxu0 %v751
        %v873 = vpop.f32.mrf.mxu0
        %v874 = vadd.f32 0.0, %v873
        %v875 = vpop.f32.mrf.mxu0
        %876 = vmatprep.mubr.f32.mxu0 0.0
        %877 = vmatmul.mubr.f32.gmra.mxu0 %v752
        %v878 = vpop.f32.mrf.mxu0
        %v879 = vadd.f32 0.0, %v878
        %v880 = vpop.f32.mrf.mxu0
        %881 = vmatprep.mubr.f32.mxu0 0.0
        %882 = vmatmul.mubr.f32.gmra.mxu0 %v753
        %v883 = vpop.f32.mrf.mxu0
        %v884 = vadd.f32 0.0, %v883
        %v885 = vpop.f32.mrf.mxu0
        %886 = vmatprep.mubr.f32.mxu0 0.0
        %887 = vmatmul.mubr.f32.gmra.mxu0 %v754
        %v888 = vpop.f32.mrf.mxu0
        %v889 = vadd.f32 0.0, %v888
        %v890 = vpop.f32.mrf.mxu0
        %891 = vmatprep.mubr.f32.mxu0 0.0
        %892 = vmatmul.mubr.f32.gmra.mxu0 %v755
        %v893 = vpop.f32.mrf.mxu0
        %v894 = vadd.f32 0.0, %v893
        %v895 = vpop.f32.mrf.mxu0
        %896 = vmatprep.mubr.f32.mxu0 0.0
        %897 = vmatmul.mubr.f32.gmra.mxu0 %v756
        %v898 = vpop.f32.mrf.mxu0
        %v899 = vadd.f32 0.0, %v898
        %v900 = vpop.f32.mrf.mxu0
        %901 = vmatprep.mubr.f32.mxu0 0.0
        %902 = vmatmul.mubr.f32.gmra.mxu0 %v757
        %v903 = vpop.f32.mrf.mxu0
        %v904 = vadd.f32 0.0, %v903
        %v905 = vpop.f32.mrf.mxu0
        %906 = vmatprep.mubr.f32.mxu0 0.0
        %907 = vmatmul.mubr.f32.gmra.mxu0 %v758
        %v908 = vpop.f32.mrf.mxu0
        %v909 = vadd.f32 0.0, %v908
        %v910 = vpop.f32.mrf.mxu0
        %911 = vmatprep.mubr.f32.mxu0 0.0
        %912 = vmatmul.mubr.f32.gmra.mxu0 %v759
        %v913 = vpop.f32.mrf.mxu0
        %v914 = vadd.f32 0.0, %v913
        %v915 = vpop.f32.mrf.mxu0
        %916 = vmatprep.mubr.f32.mxu0 0.0
        %917 = vmatmul.mubr.f32.gmra.mxu0 %v760
        %v918 = vpop.f32.mrf.mxu0
        %v919 = vadd.f32 0.0, %v918
        %v920 = vpop.f32.mrf.mxu0
        %921 = vmatprep.mubr.f32.mxu0 0.0
        %922 = vmatmul.mubr.f32.gmra.mxu0 %v761
        %v923 = vpop.f32.mrf.mxu0
        %v924 = vadd.f32 0.0, %v923
        %v925 = vpop.f32.mrf.mxu0
        %926 = vmatprep.mubr.f32.mxu0 0.0
        %927 = vmatmul.mubr.f32.gmra.mxu0 %v762
        %v928 = vpop.f32.mrf.mxu0
        %v929 = vadd.f32 0.0, %v928
        %v930 = vpop.f32.mrf.mxu0
        %931 = vmatprep.mubr.f32.mxu0 0.0
        %932 = vmatmul.mubr.f32.gmra.mxu0 %v763
        %v933 = vpop.f32.mrf.mxu0
        %v934 = vadd.f32 0.0, %v933
        %v935 = vpop.f32.mrf.mxu0
        %936 = vmatprep.mubr.f32.mxu0 0.0
        %937 = vmatmul.mubr.f32.gmra.mxu0 %v764
        %v938 = vpop.f32.mrf.mxu0
        %v939 = vadd.f32 0.0, %v938
        %v940 = vpop.f32.mrf.mxu0
        %941 = vdwg.mxu0
        %942 = vmatprep.subr.mxu0 0.0
        %943 = vmatpush1.msra.mxu0 %v780
        %944 = vmatprep.subr.mxu0 0.0
        %945 = vmatpush1.msra.mxu0 %v779
        %946 = vmatprep.subr.mxu0 0.0
        %947 = vmatpush1.msra.mxu0 %v778
        %948 = vmatprep.subr.mxu0 0.0
        %949 = vmatpush1.msra.mxu0 %v777
        %950 = vmatprep.subr.mxu0 0.0
        %951 = vmatpush1.msra.mxu0 %v776
        %952 = vmatprep.subr.mxu0 0.0
        %953 = vmatpush1.msra.mxu0 %v775
        %954 = vmatprep.subr.mxu0 0.0
        %955 = vmatpush1.msra.mxu0 %v774
        %956 = vmatprep.subr.mxu0 0.0
        %957 = vmatpush1.msra.mxu0 %v773
        %958 = vmatprep.subr.mxu0 0.0
        %959 = vmatpush1.msra.mxu0 %v772
        %960 = vmatprep.subr.mxu0 0.0
        %961 = vmatpush1.msra.mxu0 %v771
        %962 = vmatprep.subr.mxu0 0.0
        %963 = vmatpush1.msra.mxu0 %v770
        %964 = vmatprep.subr.mxu0 0.0
        %965 = vmatpush1.msra.mxu0 %v769
        %966 = vmatprep.subr.mxu0 0.0
        %967 = vmatpush1.msra.mxu0 %v768
        %968 = vmatprep.subr.mxu0 0.0
        %969 = vmatpush1.msra.mxu0 %v767
        %970 = vmatprep.subr.mxu0 0.0
        %971 = vmatpush1.msra.mxu0 %v766
        %972 = vmatprep.subr.mxu0 0.0
        %973 = vmatpush1.msra.mxu0 %v765
        %974 = vmatprep.subr.mxu0 0.0
        %975 = vmatpush2.msra.mxu0 0.0
        %976 = vmatprep.subr.mxu0 0.0
        %977 = vmatpush2.msra.mxu0 0.0
        %978 = vmatprep.subr.mxu0 0.0
        %979 = vmatpush2.msra.mxu0 0.0
        %980 = vmatprep.subr.mxu0 0.0
        %981 = vmatpush2.msra.mxu0 0.0
        %982 = vmatprep.subr.mxu0 0.0
        %983 = vmatpush2.msra.mxu0 0.0
        %984 = vmatprep.subr.mxu0 0.0
        %985 = vmatpush2.msra.mxu0 0.0
        %986 = vmatprep.subr.mxu0 0.0
        %987 = vmatpush2.msra.mxu0 0.0
        %988 = vmatprep.subr.mxu0 0.0
        %989 = vmatpush2.msra.mxu0 0.0
        %990 = vmatprep.subr.mxu0 0.0
        %991 = vmatpush2.msra.mxu0 0.0
        %992 = vmatprep.subr.mxu0 0.0
        %993 = vmatpush2.msra.mxu0 0.0
        %994 = vmatprep.subr.mxu0 0.0
        %995 = vmatpush2.msra.mxu0 0.0
        %996 = vmatprep.subr.mxu0 0.0
        %997 = vmatpush2.msra.mxu0 0.0
        %998 = vmatprep.subr.mxu0 0.0
        %999 = vmatpush2.msra.mxu0 0.0
        %1000 = vmatprep.subr.mxu0 0.0
        %1001 = vmatpush2.msra.mxu0 0.0
        %1002 = vmatprep.subr.mxu0 0.0
        %1003 = vmatpush2.msra.mxu0 0.0
        %1004 = vmatprep.subr.mxu0 0.0
        %1005 = vmatpush2.msra.mxu0 0.0
        %1006 = vmatprep.mubr.f32.mxu0 0.0
        %1007 = vmatmul.mubr.f32.gmra.mxu0 %v864
        %v1008 = vpop.f32.mrf.mxu0
        %v1009 = vadd.f32 0.0, %v1008
        %v1010 = vpop.f32.mrf.mxu0
        %1011 = vmatprep.mubr.f32.mxu0 0.0
        %1012 = vmatmul.mubr.f32.gmra.mxu0 %v869
        %v1013 = vpop.f32.mrf.mxu0
        %v1014 = vadd.f32 0.0, %v1013
        %v1015 = vpop.f32.mrf.mxu0
        %1016 = vmatprep.mubr.f32.mxu0 0.0
        %1017 = vmatmul.mubr.f32.gmra.mxu0 %v874
        %v1018 = vpop.f32.mrf.mxu0
        %v1019 = vadd.f32 0.0, %v1018
        %v1020 = vpop.f32.mrf.mxu0
        %1021 = vmatprep.mubr.f32.mxu0 0.0
        %1022 = vmatmul.mubr.f32.gmra.mxu0 %v879
        %v1023 = vpop.f32.mrf.mxu0
        %v1024 = vadd.f32 0.0, %v1023
        %v1025 = vpop.f32.mrf.mxu0
        %1026 = vmatprep.mubr.f32.mxu0 0.0
        %1027 = vmatmul.mubr.f32.gmra.mxu0 %v884
        %v1028 = vpop.f32.mrf.mxu0
        %v1029 = vadd.f32 0.0, %v1028
        %v1030 = vpop.f32.mrf.mxu0
        %1031 = vmatprep.mubr.f32.mxu0 0.0
        %1032 = vmatmul.mubr.f32.gmra.mxu0 %v889
        %v1033 = vpop.f32.mrf.mxu0
        %v1034 = vadd.f32 0.0, %v1033
        %v1035 = vpop.f32.mrf.mxu0
        %1036 = vmatprep.mubr.f32.mxu0 0.0
        %1037 = vmatmul.mubr.f32.gmra.mxu0 %v894
        %v1038 = vpop.f32.mrf.mxu0
        %v1039 = vadd.f32 0.0, %v1038
        %v1040 = vpop.f32.mrf.mxu0
        %1041 = vmatprep.mubr.f32.mxu0 0.0
        %1042 = vmatmul.mubr.f32.gmra.mxu0 %v899
        %v1043 = vpop.f32.mrf.mxu0
        %v1044 = vadd.f32 0.0, %v1043
        %v1045 = vpop.f32.mrf.mxu0
        %1046 = vmatprep.mubr.f32.mxu0 0.0
        %1047 = vmatmul.mubr.f32.gmra.mxu0 %v904
        %v1048 = vpop.f32.mrf.mxu0
        %v1049 = vadd.f32 0.0, %v1048
        %v1050 = vpop.f32.mrf.mxu0
        %1051 = vmatprep.mubr.f32.mxu0 0.0
        %1052 = vmatmul.mubr.f32.gmra.mxu0 %v909
        %v1053 = vpop.f32.mrf.mxu0
        %v1054 = vadd.f32 0.0, %v1053
        %v1055 = vpop.f32.mrf.mxu0
        %1056 = vmatprep.mubr.f32.mxu0 0.0
        %1057 = vmatmul.mubr.f32.gmra.mxu0 %v914
        %v1058 = vpop.f32.mrf.mxu0
        %v1059 = vadd.f32 0.0, %v1058
        %v1060 = vpop.f32.mrf.mxu0
        %1061 = vmatprep.mubr.f32.mxu0 0.0
        %1062 = vmatmul.mubr.f32.gmra.mxu0 %v919
        %v1063 = vpop.f32.mrf.mxu0
        %v1064 = vadd.f32 0.0, %v1063
        %v1065 = vpop.f32.mrf.mxu0
        %1066 = vmatprep.mubr.f32.mxu0 0.0
        %1067 = vmatmul.mubr.f32.gmra.mxu0 %v924
        %v1068 = vpop.f32.mrf.mxu0
        %v1069 = vadd.f32 0.0, %v1068
        %v1070 = vpop.f32.mrf.mxu0
        %1071 = vmatprep.mubr.f32.mxu0 0.0
        %1072 = vmatmul.mubr.f32.gmra.mxu0 %v929
        %v1073 = vpop.f32.mrf.mxu0
        %v1074 = vadd.f32 0.0, %v1073
        %v1075 = vpop.f32.mrf.mxu0
        %1076 = vmatprep.mubr.f32.mxu0 0.0
        %1077 = vmatmul.mubr.f32.gmra.mxu0 %v934
        %v1078 = vpop.f32.mrf.mxu0
        %v1079 = vadd.f32 0.0, %v1078
        %v1080 = vpop.f32.mrf.mxu0
        %1081 = vmatprep.mubr.f32.mxu0 0.0
        %1082 = vmatmul.mubr.f32.gmra.mxu0 %v939
        %v1083 = vpop.f32.mrf.mxu0
        %v1084 = vadd.f32 0.0, %v1083
        %v1085 = vpop.f32.mrf.mxu0
        %1086 = vdwg.mxu0
        %v1087 = vld [vmem:[#allocation8] sm:$0xff]
        %v1088 = vld [vmem:[#allocation8 + $0x8] sm:$0xff]
        %v1089 = vld [vmem:[#allocation8 + $0x10] sm:$0xff]
        %v1090 = vld [vmem:[#allocation8 + $0x18] sm:$0xff]
        %v1091 = vld [vmem:[#allocation8 + $0x20] sm:$0xff]
        %v1092 = vld [vmem:[#allocation8 + $0x28] sm:$0xff]
        %v1093 = vld [vmem:[#allocation8 + $0x30] sm:$0xff]
        %v1094 = vld [vmem:[#allocation8 + $0x38] sm:$0xff]
        %v1095 = vld [vmem:[#allocation8 + $0x40] sm:$0xff]
        %v1096 = vld [vmem:[#allocation8 + $0x48] sm:$0xff]
        %v1097 = vld [vmem:[#allocation8 + $0x50] sm:$0xff]
        %v1098 = vld [vmem:[#allocation8 + $0x58] sm:$0xff]
        %v1099 = vld [vmem:[#allocation8 + $0x60] sm:$0xff]
        %v1100 = vld [vmem:[#allocation8 + $0x68] sm:$0xff]
        %v1101 = vld [vmem:[#allocation8 + $0x70] sm:$0xff]
        %v1102 = vld [vmem:[#allocation8 + $0x78] sm:$0xff]
        %v1103 = vmul.f32 %v1009, %v1087
        %v1104 = vmul.f32 %v1014, %v1088
        %v1105 = vmul.f32 %v1019, %v1089
        %v1106 = vmul.f32 %v1024, %v1090
        %v1107 = vmul.f32 %v1029, %v1091
        %v1108 = vmul.f32 %v1034, %v1092
        %v1109 = vmul.f32 %v1039, %v1093
        %v1110 = vmul.f32 %v1044, %v1094
        %v1111 = vmul.f32 %v1049, %v1095
        %v1112 = vmul.f32 %v1054, %v1096
        %v1113 = vmul.f32 %v1059, %v1097
        %v1114 = vmul.f32 %v1064, %v1098
        %v1115 = vmul.f32 %v1069, %v1099
        %v1116 = vmul.f32 %v1074, %v1100
        %v1117 = vmul.f32 %v1079, %v1101
        %v1118 = vmul.f32 %v1084, %v1102
        %v1119 = vround.ne.pseudo %v1103
        %v1120 = vround.ne.pseudo %v1104
        %v1121 = vround.ne.pseudo %v1105
        %v1122 = vround.ne.pseudo %v1106
        %v1123 = vround.ne.pseudo %v1107
        %v1124 = vround.ne.pseudo %v1108
        %v1125 = vround.ne.pseudo %v1109
        %v1126 = vround.ne.pseudo %v1110
        %v1127 = vround.ne.pseudo %v1111
        %v1128 = vround.ne.pseudo %v1112
        %v1129 = vround.ne.pseudo %v1113
        %v1130 = vround.ne.pseudo %v1114
        %v1131 = vround.ne.pseudo %v1115
        %v1132 = vround.ne.pseudo %v1116
        %v1133 = vround.ne.pseudo %v1117
        %v1134 = vround.ne.pseudo %v1118
        %v1135 = vld [vmem:[#allocation10] sm:$0xff]
        %v1136 = vld [vmem:[#allocation10 + $0x8] sm:$0xff]
        %v1137 = vld [vmem:[#allocation10 + $0x10] sm:$0xff]
        %v1138 = vld [vmem:[#allocation10 + $0x18] sm:$0xff]
        %v1139 = vld [vmem:[#allocation10 + $0x20] sm:$0xff]
        %v1140 = vld [vmem:[#allocation10 + $0x28] sm:$0xff]
        %v1141 = vld [vmem:[#allocation10 + $0x30] sm:$0xff]
        %v1142 = vld [vmem:[#allocation10 + $0x38] sm:$0xff]
        %v1143 = vld [vmem:[#allocation10 + $0x40] sm:$0xff]
        %v1144 = vld [vmem:[#allocation10 + $0x48] sm:$0xff]
        %v1145 = vld [vmem:[#allocation10 + $0x50] sm:$0xff]
        %v1146 = vld [vmem:[#allocation10 + $0x58] sm:$0xff]
        %v1147 = vld [vmem:[#allocation10 + $0x60] sm:$0xff]
        %v1148 = vld [vmem:[#allocation10 + $0x68] sm:$0xff]
        %v1149 = vld [vmem:[#allocation10 + $0x70] sm:$0xff]
        %v1150 = vld [vmem:[#allocation10 + $0x78] sm:$0xff]
        %v1151 = vmul.f32 %v1119, %v1135
        %v1152 = vmul.f32 %v1120, %v1136
        %v1153 = vmul.f32 %v1121, %v1137
        %v1154 = vmul.f32 %v1122, %v1138
        %v1155 = vmul.f32 %v1123, %v1139
        %v1156 = vmul.f32 %v1124, %v1140
        %v1157 = vmul.f32 %v1125, %v1141
        %v1158 = vmul.f32 %v1126, %v1142
        %v1159 = vmul.f32 %v1127, %v1143
        %v1160 = vmul.f32 %v1128, %v1144
        %v1161 = vmul.f32 %v1129, %v1145
        %v1162 = vmul.f32 %v1130, %v1146
        %v1163 = vmul.f32 %v1131, %v1147
        %v1164 = vmul.f32 %v1132, %v1148
        %v1165 = vmul.f32 %v1133, %v1149
        %v1166 = vmul.f32 %v1134, %v1150
        %1167 = vmatprep.subr.mxu0 0.0
        %1168 = vmatpush1.msra.mxu0 %v1166
        %1169 = vmatprep.subr.mxu0 0.0
        %1170 = vmatpush1.msra.mxu0 %v1165
        %1171 = vmatprep.subr.mxu0 0.0
        %1172 = vmatpush1.msra.mxu0 %v1164
        %1173 = vmatprep.subr.mxu0 0.0
        %1174 = vmatpush1.msra.mxu0 %v1163
        %1175 = vmatprep.subr.mxu0 0.0
        %1176 = vmatpush1.msra.mxu0 %v1162
        %1177 = vmatprep.subr.mxu0 0.0
        %1178 = vmatpush1.msra.mxu0 %v1161
        %1179 = vmatprep.subr.mxu0 0.0
        %1180 = vmatpush1.msra.mxu0 %v1160
        %1181 = vmatprep.subr.mxu0 0.0
        %1182 = vmatpush1.msra.mxu0 %v1159
        %1183 = vmatprep.subr.mxu0 0.0
        %1184 = vmatpush1.msra.mxu0 %v1158
        %1185 = vmatprep.subr.mxu0 0.0
        %1186 = vmatpush1.msra.mxu0 %v1157
        %1187 = vmatprep.subr.mxu0 0.0
        %1188 = vmatpush1.msra.mxu0 %v1156
        %1189 = vmatprep.subr.mxu0 0.0
        %1190 = vmatpush1.msra.mxu0 %v1155
        %1191 = vmatprep.subr.mxu0 0.0
        %1192 = vmatpush1.msra.mxu0 %v1154
        %1193 = vmatprep.subr.mxu0 0.0
        %1194 = vmatpush1.msra.mxu0 %v1153
        %1195 = vmatprep.subr.mxu0 0.0
        %1196 = vmatpush1.msra.mxu0 %v1152
        %1197 = vmatprep.subr.mxu0 0.0
        %1198 = vmatpush1.msra.mxu0 %v1151
        %1199 = vmatprep.subr.mxu0 0.0
        %1200 = vmatpush2.msra.mxu0 0.0
        %1201 = vmatprep.subr.mxu0 0.0
        %1202 = vmatpush2.msra.mxu0 0.0
        %1203 = vmatprep.subr.mxu0 0.0
        %1204 = vmatpush2.msra.mxu0 0.0
        %1205 = vmatprep.subr.mxu0 0.0
        %1206 = vmatpush2.msra.mxu0 0.0
        %1207 = vmatprep.subr.mxu0 0.0
        %1208 = vmatpush2.msra.mxu0 0.0
        %1209 = vmatprep.subr.mxu0 0.0
        %1210 = vmatpush2.msra.mxu0 0.0
        %1211 = vmatprep.subr.mxu0 0.0
        %1212 = vmatpush2.msra.mxu0 0.0
        %1213 = vmatprep.subr.mxu0 0.0
        %1214 = vmatpush2.msra.mxu0 0.0
        %1215 = vmatprep.subr.mxu0 0.0
        %1216 = vmatpush2.msra.mxu0 0.0
        %1217 = vmatprep.subr.mxu0 0.0
        %1218 = vmatpush2.msra.mxu0 0.0
        %1219 = vmatprep.subr.mxu0 0.0
        %1220 = vmatpush2.msra.mxu0 0.0
        %1221 = vmatprep.subr.mxu0 0.0
        %1222 = vmatpush2.msra.mxu0 0.0
        %1223 = vmatprep.subr.mxu0 0.0
        %1224 = vmatpush2.msra.mxu0 0.0
        %1225 = vmatprep.subr.mxu0 0.0
        %1226 = vmatpush2.msra.mxu0 0.0
        %1227 = vmatprep.subr.mxu0 0.0
        %1228 = vmatpush2.msra.mxu0 0.0
        %1229 = vmatprep.subr.mxu0 0.0
        %1230 = vmatpush2.msra.mxu0 0.0
        %1231 = vmatprep.mubr.f32.mxu0 0.0
        %1232 = vmatmul.mubr.f32.gmra.mxu0 %v765
        %v1233 = vpop.f32.mrf.mxu0
        %v1234 = vadd.f32 0.0, %v1233
        %v1235 = vpop.f32.mrf.mxu0
        %1236 = vmatprep.mubr.f32.mxu0 0.0
        %1237 = vmatmul.mubr.f32.gmra.mxu0 %v766
        %v1238 = vpop.f32.mrf.mxu0
        %v1239 = vadd.f32 0.0, %v1238
        %v1240 = vpop.f32.mrf.mxu0
        %1241 = vmatprep.mubr.f32.mxu0 0.0
        %1242 = vmatmul.mubr.f32.gmra.mxu0 %v767
        %v1243 = vpop.f32.mrf.mxu0
        %v1244 = vadd.f32 0.0, %v1243
        %v1245 = vpop.f32.mrf.mxu0
        %1246 = vmatprep.mubr.f32.mxu0 0.0
        %1247 = vmatmul.mubr.f32.gmra.mxu0 %v768
        %v1248 = vpop.f32.mrf.mxu0
        %v1249 = vadd.f32 0.0, %v1248
        %v1250 = vpop.f32.mrf.mxu0
        %1251 = vmatprep.mubr.f32.mxu0 0.0
        %1252 = vmatmul.mubr.f32.gmra.mxu0 %v769
        %v1253 = vpop.f32.mrf.mxu0
        %v1254 = vadd.f32 0.0, %v1253
        %v1255 = vpop.f32.mrf.mxu0
        %1256 = vmatprep.mubr.f32.mxu0 0.0
        %1257 = vmatmul.mubr.f32.gmra.mxu0 %v770
        %v1258 = vpop.f32.mrf.mxu0
        %v1259 = vadd.f32 0.0, %v1258
        %v1260 = vpop.f32.mrf.mxu0
        %1261 = vmatprep.mubr.f32.mxu0 0.0
        %1262 = vmatmul.mubr.f32.gmra.mxu0 %v771
        %v1263 = vpop.f32.mrf.mxu0
        %v1264 = vadd.f32 0.0, %v1263
        %v1265 = vpop.f32.mrf.mxu0
        %1266 = vmatprep.mubr.f32.mxu0 0.0
        %1267 = vmatmul.mubr.f32.gmra.mxu0 %v772
        %v1268 = vpop.f32.mrf.mxu0
        %v1269 = vadd.f32 0.0, %v1268
        %v1270 = vpop.f32.mrf.mxu0
        %1271 = vmatprep.mubr.f32.mxu0 0.0
        %1272 = vmatmul.mubr.f32.gmra.mxu0 %v773
        %v1273 = vpop.f32.mrf.mxu0
        %v1274 = vadd.f32 0.0, %v1273
        %v1275 = vpop.f32.mrf.mxu0
        %1276 = vmatprep.mubr.f32.mxu0 0.0
        %1277 = vmatmul.mubr.f32.gmra.mxu0 %v774
        %v1278 = vpop.f32.mrf.mxu0
        %v1279 = vadd.f32 0.0, %v1278
        %v1280 = vpop.f32.mrf.mxu0
        %1281 = vmatprep.mubr.f32.mxu0 0.0
        %1282 = vmatmul.mubr.f32.gmra.mxu0 %v775
        %v1283 = vpop.f32.mrf.mxu0
        %v1284 = vadd.f32 0.0, %v1283
        %v1285 = vpop.f32.mrf.mxu0
        %1286 = vmatprep.mubr.f32.mxu0 0.0
        %1287 = vmatmul.mubr.f32.gmra.mxu0 %v776
        %v1288 = vpop.f32.mrf.mxu0
        %v1289 = vadd.f32 0.0, %v1288
        %v1290 = vpop.f32.mrf.mxu0
        %1291 = vmatprep.mubr.f32.mxu0 0.0
        %1292 = vmatmul.mubr.f32.gmra.mxu0 %v777
        %v1293 = vpop.f32.mrf.mxu0
        %v1294 = vadd.f32 0.0, %v1293
        %v1295 = vpop.f32.mrf.mxu0
        %1296 = vmatprep.mubr.f32.mxu0 0.0
        %1297 = vmatmul.mubr.f32.gmra.mxu0 %v778
        %v1298 = vpop.f32.mrf.mxu0
        %v1299 = vadd.f32 0.0, %v1298
        %v1300 = vpop.f32.mrf.mxu0
        %1301 = vmatprep.mubr.f32.mxu0 0.0
        %1302 = vmatmul.mubr.f32.gmra.mxu0 %v779
        %v1303 = vpop.f32.mrf.mxu0
        %v1304 = vadd.f32 0.0, %v1303
        %v1305 = vpop.f32.mrf.mxu0
        %1306 = vmatprep.mubr.f32.mxu0 0.0
        %1307 = vmatmul.mubr.f32.gmra.mxu0 %v780
        %v1308 = vpop.f32.mrf.mxu0
        %v1309 = vadd.f32 0.0, %v1308
        %v1310 = vpop.f32.mrf.mxu0
        %1311 = vdwg.mxu0
        %1312 = vmatprep.subr.mxu0 0.0
        %1313 = vmatpush1.msra.mxu0 %v764
        %1314 = vmatprep.subr.mxu0 0.0
        %1315 = vmatpush1.msra.mxu0 %v763
        %1316 = vmatprep.subr.mxu0 0.0
        %1317 = vmatpush1.msra.mxu0 %v762
        %1318 = vmatprep.subr.mxu0 0.0
        %1319 = vmatpush1.msra.mxu0 %v761
        %1320 = vmatprep.subr.mxu0 0.0
        %1321 = vmatpush1.msra.mxu0 %v760
        %1322 = vmatprep.subr.mxu0 0.0
        %1323 = vmatpush1.msra.mxu0 %v759
        %1324 = vmatprep.subr.mxu0 0.0
        %1325 = vmatpush1.msra.mxu0 %v758
        %1326 = vmatprep.subr.mxu0 0.0
        %1327 = vmatpush1.msra.mxu0 %v757
        %1328 = vmatprep.subr.mxu0 0.0
        %1329 = vmatpush1.msra.mxu0 %v756
        %1330 = vmatprep.subr.mxu0 0.0
        %1331 = vmatpush1.msra.mxu0 %v755
        %1332 = vmatprep.subr.mxu0 0.0
        %1333 = vmatpush1.msra.mxu0 %v754
        %1334 = vmatprep.subr.mxu0 0.0
        %1335 = vmatpush1.msra.mxu0 %v753
        %1336 = vmatprep.subr.mxu0 0.0
        %1337 = vmatpush1.msra.mxu0 %v752
        %1338 = vmatprep.subr.mxu0 0.0
        %1339 = vmatpush1.msra.mxu0 %v751
        %1340 = vmatprep.subr.mxu0 0.0
        %1341 = vmatpush1.msra.mxu0 %v750
        %1342 = vmatprep.subr.mxu0 0.0
        %1343 = vmatpush1.msra.mxu0 %v749
        %1344 = vmatprep.subr.mxu0 0.0
        %1345 = vmatpush2.msra.mxu0 0.0
        %1346 = vmatprep.subr.mxu0 0.0
        %1347 = vmatpush2.msra.mxu0 0.0
        %1348 = vmatprep.subr.mxu0 0.0
        %1349 = vmatpush2.msra.mxu0 0.0
        %1350 = vmatprep.subr.mxu0 0.0
        %1351 = vmatpush2.msra.mxu0 0.0
        %1352 = vmatprep.subr.mxu0 0.0
        %1353 = vmatpush2.msra.mxu0 0.0
        %1354 = vmatprep.subr.mxu0 0.0
        %1355 = vmatpush2.msra.mxu0 0.0
        %1356 = vmatprep.subr.mxu0 0.0
        %1357 = vmatpush2.msra.mxu0 0.0
        %1358 = vmatprep.subr.mxu0 0.0
        %1359 = vmatpush2.msra.mxu0 0.0
        %1360 = vmatprep.subr.mxu0 0.0
        %1361 = vmatpush2.msra.mxu0 0.0
        %1362 = vmatprep.subr.mxu0 0.0
        %1363 = vmatpush2.msra.mxu0 0.0
        %1364 = vmatprep.subr.mxu0 0.0
        %1365 = vmatpush2.msra.mxu0 0.0
        %1366 = vmatprep.subr.mxu0 0.0
        %1367 = vmatpush2.msra.mxu0 0.0
        %1368 = vmatprep.subr.mxu0 0.0
        %1369 = vmatpush2.msra.mxu0 0.0
        %1370 = vmatprep.subr.mxu0 0.0
        %1371 = vmatpush2.msra.mxu0 0.0
        %1372 = vmatprep.subr.mxu0 0.0
        %1373 = vmatpush2.msra.mxu0 0.0
        %1374 = vmatprep.subr.mxu0 0.0
        %1375 = vmatpush2.msra.mxu0 0.0
        %1376 = vmatprep.mubr.f32.mxu0 0.0
        %1377 = vmatmul.mubr.f32.gmra.mxu0 %v1234
        %v1378 = vpop.f32.mrf.mxu0
        %v1379 = vadd.f32 128.0, %v1378
        %v1380 = vpop.f32.mrf.mxu0
        %1381 = vmatprep.mubr.f32.mxu0 0.0
        %1382 = vmatmul.mubr.f32.gmra.mxu0 %v1239
        %v1383 = vpop.f32.mrf.mxu0
        %v1384 = vadd.f32 128.0, %v1383
        %v1385 = vpop.f32.mrf.mxu0
        %1386 = vmatprep.mubr.f32.mxu0 0.0
        %1387 = vmatmul.mubr.f32.gmra.mxu0 %v1244
        %v1388 = vpop.f32.mrf.mxu0
        %v1389 = vadd.f32 128.0, %v1388
        %v1390 = vpop.f32.mrf.mxu0
        %1391 = vmatprep.mubr.f32.mxu0 0.0
        %1392 = vmatmul.mubr.f32.gmra.mxu0 %v1249
        %v1393 = vpop.f32.mrf.mxu0
        %v1394 = vadd.f32 128.0, %v1393
        %v1395 = vpop.f32.mrf.mxu0
        %1396 = vmatprep.mubr.f32.mxu0 0.0
        %1397 = vmatmul.mubr.f32.gmra.mxu0 %v1254
        %v1398 = vpop.f32.mrf.mxu0
        %v1399 = vadd.f32 128.0, %v1398
        %v1400 = vpop.f32.mrf.mxu0
        %1401 = vmatprep.mubr.f32.mxu0 0.0
        %1402 = vmatmul.mubr.f32.gmra.mxu0 %v1259
        %v1403 = vpop.f32.mrf.mxu0
        %v1404 = vadd.f32 128.0, %v1403
        %v1405 = vpop.f32.mrf.mxu0
        %1406 = vmatprep.mubr.f32.mxu0 0.0
        %1407 = vmatmul.mubr.f32.gmra.mxu0 %v1264
        %v1408 = vpop.f32.mrf.mxu0
        %v1409 = vadd.f32 128.0, %v1408
        %v1410 = vpop.f32.mrf.mxu0
        %1411 = vmatprep.mubr.f32.mxu0 0.0
        %1412 = vmatmul.mubr.f32.gmra.mxu0 %v1269
        %v1413 = vpop.f32.mrf.mxu0
        %v1414 = vadd.f32 128.0, %v1413
        %v1415 = vpop.f32.mrf.mxu0
        %1416 = vmatprep.mubr.f32.mxu0 0.0
        %1417 = vmatmul.mubr.f32.gmra.mxu0 %v1274
        %v1418 = vpop.f32.mrf.mxu0
        %v1419 = vadd.f32 128.0, %v1418
        %v1420 = vpop.f32.mrf.mxu0
        %1421 = vmatprep.mubr.f32.mxu0 0.0
        %1422 = vmatmul.mubr.f32.gmra.mxu0 %v1279
        %v1423 = vpop.f32.mrf.mxu0
        %v1424 = vadd.f32 128.0, %v1423
        %v1425 = vpop.f32.mrf.mxu0
        %1426 = vmatprep.mubr.f32.mxu0 0.0
        %1427 = vmatmul.mubr.f32.gmra.mxu0 %v1284
        %v1428 = vpop.f32.mrf.mxu0
        %v1429 = vadd.f32 128.0, %v1428
        %v1430 = vpop.f32.mrf.mxu0
        %1431 = vmatprep.mubr.f32.mxu0 0.0
        %1432 = vmatmul.mubr.f32.gmra.mxu0 %v1289
        %v1433 = vpop.f32.mrf.mxu0
        %v1434 = vadd.f32 128.0, %v1433
        %v1435 = vpop.f32.mrf.mxu0
        %1436 = vmatprep.mubr.f32.mxu0 0.0
        %1437 = vmatmul.mubr.f32.gmra.mxu0 %v1294
        %v1438 = vpop.f32.mrf.mxu0
        %v1439 = vadd.f32 128.0, %v1438
        %v1440 = vpop.f32.mrf.mxu0
        %1441 = vmatprep.mubr.f32.mxu0 0.0
        %1442 = vmatmul.mubr.f32.gmra.mxu0 %v1299
        %v1443 = vpop.f32.mrf.mxu0
        %v1444 = vadd.f32 128.0, %v1443
        %v1445 = vpop.f32.mrf.mxu0
        %1446 = vmatprep.mubr.f32.mxu0 0.0
        %1447 = vmatmul.mubr.f32.gmra.mxu0 %v1304
        %v1448 = vpop.f32.mrf.mxu0
        %v1449 = vadd.f32 128.0, %v1448
        %v1450 = vpop.f32.mrf.mxu0
        %1451 = vmatprep.mubr.f32.mxu0 0.0
        %1452 = vmatmul.mubr.f32.gmra.mxu0 %v1309
        %v1453 = vpop.f32.mrf.mxu0
        %v1454 = vadd.f32 128.0, %v1453
        %v1455 = vpop.f32.mrf.mxu0
        %1456 = vdwg.mxu0
        %v1457 = vmax.f32 %v1379, 0.0
        %v1458 = vmax.f32 %v1384, 0.0
        %v1459 = vmax.f32 %v1389, 0.0
        %v1460 = vmax.f32 %v1394, 0.0
        %v1461 = vmax.f32 %v1399, 0.0
        %v1462 = vmax.f32 %v1404, 0.0
        %v1463 = vmax.f32 %v1409, 0.0
        %v1464 = vmax.f32 %v1414, 0.0
        %v1465 = vmax.f32 %v1419, 0.0
        %v1466 = vmax.f32 %v1424, 0.0
        %v1467 = vmax.f32 %v1429, 0.0
        %v1468 = vmax.f32 %v1434, 0.0
        %v1469 = vmax.f32 %v1439, 0.0
        %v1470 = vmax.f32 %v1444, 0.0
        %v1471 = vmax.f32 %v1449, 0.0
        %v1472 = vmax.f32 %v1454, 0.0
        %v1473 = vmin.f32 %v1457, 255.0
        %v1474 = vmin.f32 %v1458, 255.0
        %v1475 = vmin.f32 %v1459, 255.0
        %v1476 = vmin.f32 %v1460, 255.0
        %v1477 = vmin.f32 %v1461, 255.0
        %v1478 = vmin.f32 %v1462, 255.0
        %v1479 = vmin.f32 %v1463, 255.0
        %v1480 = vmin.f32 %v1464, 255.0
        %v1481 = vmin.f32 %v1465, 255.0
        %v1482 = vmin.f32 %v1466, 255.0
        %v1483 = vmin.f32 %v1467, 255.0
        %v1484 = vmin.f32 %v1468, 255.0
        %v1485 = vmin.f32 %v1469, 255.0
        %v1486 = vmin.f32 %v1470, 255.0
        %v1487 = vmin.f32 %v1471, 255.0
        %v1488 = vmin.f32 %v1472, 255.0
        %v1489 = vsub.f32 %v637, 128.0
        %v1490 = vsub.f32 %v638, 128.0
        %v1491 = vsub.f32 %v639, 128.0
        %v1492 = vsub.f32 %v640, 128.0
        %v1493 = vsub.f32 %v641, 128.0
        %v1494 = vsub.f32 %v642, 128.0
        %v1495 = vsub.f32 %v643, 128.0
        %v1496 = vsub.f32 %v644, 128.0
        %v1497 = vsub.f32 %v645, 128.0
        %v1498 = vsub.f32 %v646, 128.0
        %v1499 = vsub.f32 %v647, 128.0
        %v1500 = vsub.f32 %v648, 128.0
        %v1501 = vsub.f32 %v649, 128.0
        %v1502 = vsub.f32 %v650, 128.0
        %v1503 = vsub.f32 %v651, 128.0
        %v1504 = vsub.f32 %v652, 128.0
        %1505 = vmatprep.subr.mxu0 0.0
        %1506 = vmatpush1.msra.mxu0 %v1504
        %1507 = vmatprep.subr.mxu0 0.0
        %1508 = vmatpush1.msra.mxu0 %v1503
        %1509 = vmatprep.subr.mxu0 0.0
        %1510 = vmatpush1.msra.mxu0 %v1502
        %1511 = vmatprep.subr.mxu0 0.0
        %1512 = vmatpush1.msra.mxu0 %v1501
        %1513 = vmatprep.subr.mxu0 0.0
        %1514 = vmatpush1.msra.mxu0 %v1500
        %1515 = vmatprep.subr.mxu0 0.0
        %1516 = vmatpush1.msra.mxu0 %v1499
        %1517 = vmatprep.subr.mxu0 0.0
        %1518 = vmatpush1.msra.mxu0 %v1498
        %1519 = vmatprep.subr.mxu0 0.0
        %1520 = vmatpush1.msra.mxu0 %v1497
        %1521 = vmatprep.subr.mxu0 0.0
        %1522 = vmatpush1.msra.mxu0 %v1496
        %1523 = vmatprep.subr.mxu0 0.0
        %1524 = vmatpush1.msra.mxu0 %v1495
        %1525 = vmatprep.subr.mxu0 0.0
        %1526 = vmatpush1.msra.mxu0 %v1494
        %1527 = vmatprep.subr.mxu0 0.0
        %1528 = vmatpush1.msra.mxu0 %v1493
        %1529 = vmatprep.subr.mxu0 0.0
        %1530 = vmatpush1.msra.mxu0 %v1492
        %1531 = vmatprep.subr.mxu0 0.0
        %1532 = vmatpush1.msra.mxu0 %v1491
        %1533 = vmatprep.subr.mxu0 0.0
        %1534 = vmatpush1.msra.mxu0 %v1490
        %1535 = vmatprep.subr.mxu0 0.0
        %1536 = vmatpush1.msra.mxu0 %v1489
        %1537 = vmatprep.subr.mxu0 0.0
        %1538 = vmatpush2.msra.mxu0 0.0
        %1539 = vmatprep.subr.mxu0 0.0
        %1540 = vmatpush2.msra.mxu0 0.0
        %1541 = vmatprep.subr.mxu0 0.0
        %1542 = vmatpush2.msra.mxu0 0.0
        %1543 = vmatprep.subr.mxu0 0.0
        %1544 = vmatpush2.msra.mxu0 0.0
        %1545 = vmatprep.subr.mxu0 0.0
        %1546 = vmatpush2.msra.mxu0 0.0
        %1547 = vmatprep.subr.mxu0 0.0
        %1548 = vmatpush2.msra.mxu0 0.0
        %1549 = vmatprep.subr.mxu0 0.0
        %1550 = vmatpush2.msra.mxu0 0.0
        %1551 = vmatprep.subr.mxu0 0.0
        %1552 = vmatpush2.msra.mxu0 0.0
        %1553 = vmatprep.subr.mxu0 0.0
        %1554 = vmatpush2.msra.mxu0 0.0
        %1555 = vmatprep.subr.mxu0 0.0
        %1556 = vmatpush2.msra.mxu0 0.0
        %1557 = vmatprep.subr.mxu0 0.0
        %1558 = vmatpush2.msra.mxu0 0.0
        %1559 = vmatprep.subr.mxu0 0.0
        %1560 = vmatpush2.msra.mxu0 0.0
        %1561 = vmatprep.subr.mxu0 0.0
        %1562 = vmatpush2.msra.mxu0 0.0
        %1563 = vmatprep.subr.mxu0 0.0
        %1564 = vmatpush2.msra.mxu0 0.0
        %1565 = vmatprep.subr.mxu0 0.0
        %1566 = vmatpush2.msra.mxu0 0.0
        %1567 = vmatprep.subr.mxu0 0.0
        %1568 = vmatpush2.msra.mxu0 0.0
        %1569 = vmatprep.mubr.f32.mxu0 0.0
        %1570 = vmatmul.mubr.f32.gmra.mxu0 %v749
        %v1571 = vpop.f32.mrf.mxu0
        %v1572 = vadd.f32 0.0, %v1571
        %v1573 = vpop.f32.mrf.mxu0
        %1574 = vmatprep.mubr.f32.mxu0 0.0
        %1575 = vmatmul.mubr.f32.gmra.mxu0 %v750
        %v1576 = vpop.f32.mrf.mxu0
        %v1577 = vadd.f32 0.0, %v1576
        %v1578 = vpop.f32.mrf.mxu0
        %1579 = vmatprep.mubr.f32.mxu0 0.0
        %1580 = vmatmul.mubr.f32.gmra.mxu0 %v751
        %v1581 = vpop.f32.mrf.mxu0
        %v1582 = vadd.f32 0.0, %v1581
        %v1583 = vpop.f32.mrf.mxu0
        %1584 = vmatprep.mubr.f32.mxu0 0.0
        %1585 = vmatmul.mubr.f32.gmra.mxu0 %v752
        %v1586 = vpop.f32.mrf.mxu0
        %v1587 = vadd.f32 0.0, %v1586
        %v1588 = vpop.f32.mrf.mxu0
        %1589 = vmatprep.mubr.f32.mxu0 0.0
        %1590 = vmatmul.mubr.f32.gmra.mxu0 %v753
        %v1591 = vpop.f32.mrf.mxu0
        %v1592 = vadd.f32 0.0, %v1591
        %v1593 = vpop.f32.mrf.mxu0
        %1594 = vmatprep.mubr.f32.mxu0 0.0
        %1595 = vmatmul.mubr.f32.gmra.mxu0 %v754
        %v1596 = vpop.f32.mrf.mxu0
        %v1597 = vadd.f32 0.0, %v1596
        %v1598 = vpop.f32.mrf.mxu0
        %1599 = vmatprep.mubr.f32.mxu0 0.0
        %1600 = vmatmul.mubr.f32.gmra.mxu0 %v755
        %v1601 = vpop.f32.mrf.mxu0
        %v1602 = vadd.f32 0.0, %v1601
        %v1603 = vpop.f32.mrf.mxu0
        %1604 = vmatprep.mubr.f32.mxu0 0.0
        %1605 = vmatmul.mubr.f32.gmra.mxu0 %v756
        %v1606 = vpop.f32.mrf.mxu0
        %v1607 = vadd.f32 0.0, %v1606
        %v1608 = vpop.f32.mrf.mxu0
        %1609 = vmatprep.mubr.f32.mxu0 0.0
        %1610 = vmatmul.mubr.f32.gmra.mxu0 %v757
        %v1611 = vpop.f32.mrf.mxu0
        %v1612 = vadd.f32 0.0, %v1611
        %v1613 = vpop.f32.mrf.mxu0
        %1614 = vmatprep.mubr.f32.mxu0 0.0
        %1615 = vmatmul.mubr.f32.gmra.mxu0 %v758
        %v1616 = vpop.f32.mrf.mxu0
        %v1617 = vadd.f32 0.0, %v1616
        %v1618 = vpop.f32.mrf.mxu0
        %1619 = vmatprep.mubr.f32.mxu0 0.0
        %1620 = vmatmul.mubr.f32.gmra.mxu0 %v759
        %v1621 = vpop.f32.mrf.mxu0
        %v1622 = vadd.f32 0.0, %v1621
        %v1623 = vpop.f32.mrf.mxu0
        %1624 = vmatprep.mubr.f32.mxu0 0.0
        %1625 = vmatmul.mubr.f32.gmra.mxu0 %v760
        %v1626 = vpop.f32.mrf.mxu0
        %v1627 = vadd.f32 0.0, %v1626
        %v1628 = vpop.f32.mrf.mxu0
        %1629 = vmatprep.mubr.f32.mxu0 0.0
        %1630 = vmatmul.mubr.f32.gmra.mxu0 %v761
        %v1631 = vpop.f32.mrf.mxu0
        %v1632 = vadd.f32 0.0, %v1631
        %v1633 = vpop.f32.mrf.mxu0
        %1634 = vmatprep.mubr.f32.mxu0 0.0
        %1635 = vmatmul.mubr.f32.gmra.mxu0 %v762
        %v1636 = vpop.f32.mrf.mxu0
        %v1637 = vadd.f32 0.0, %v1636
        %v1638 = vpop.f32.mrf.mxu0
        %1639 = vmatprep.mubr.f32.mxu0 0.0
        %1640 = vmatmul.mubr.f32.gmra.mxu0 %v763
        %v1641 = vpop.f32.mrf.mxu0
        %v1642 = vadd.f32 0.0, %v1641
        %v1643 = vpop.f32.mrf.mxu0
        %1644 = vmatprep.mubr.f32.mxu0 0.0
        %1645 = vmatmul.mubr.f32.gmra.mxu0 %v764
        %v1646 = vpop.f32.mrf.mxu0
        %v1647 = vadd.f32 0.0, %v1646
        %v1648 = vpop.f32.mrf.mxu0
        %1649 = vdwg.mxu0
        %1650 = vmatprep.subr.mxu0 0.0
        %1651 = vmatpush1.msra.mxu0 %v780
        %1652 = vmatprep.subr.mxu0 0.0
        %1653 = vmatpush1.msra.mxu0 %v779
        %1654 = vmatprep.subr.mxu0 0.0
        %1655 = vmatpush1.msra.mxu0 %v778
        %1656 = vmatprep.subr.mxu0 0.0
        %1657 = vmatpush1.msra.mxu0 %v777
        %1658 = vmatprep.subr.mxu0 0.0
        %1659 = vmatpush1.msra.mxu0 %v776
        %1660 = vmatprep.subr.mxu0 0.0
        %1661 = vmatpush1.msra.mxu0 %v775
        %1662 = vmatprep.subr.mxu0 0.0
        %1663 = vmatpush1.msra.mxu0 %v774
        %1664 = vmatprep.subr.mxu0 0.0
        %1665 = vmatpush1.msra.mxu0 %v773
        %1666 = vmatprep.subr.mxu0 0.0
        %1667 = vmatpush1.msra.mxu0 %v772
        %1668 = vmatprep.subr.mxu0 0.0
        %1669 = vmatpush1.msra.mxu0 %v771
        %1670 = vmatprep.subr.mxu0 0.0
        %1671 = vmatpush1.msra.mxu0 %v770
        %1672 = vmatprep.subr.mxu0 0.0
        %1673 = vmatpush1.msra.mxu0 %v769
        %1674 = vmatprep.subr.mxu0 0.0
        %1675 = vmatpush1.msra.mxu0 %v768
        %1676 = vmatprep.subr.mxu0 0.0
        %1677 = vmatpush1.msra.mxu0 %v767
        %1678 = vmatprep.subr.mxu0 0.0
        %1679 = vmatpush1.msra.mxu0 %v766
        %1680 = vmatprep.subr.mxu0 0.0
        %1681 = vmatpush1.msra.mxu0 %v765
        %1682 = vmatprep.subr.mxu0 0.0
        %1683 = vmatpush2.msra.mxu0 0.0
        %1684 = vmatprep.subr.mxu0 0.0
        %1685 = vmatpush2.msra.mxu0 0.0
        %1686 = vmatprep.subr.mxu0 0.0
        %1687 = vmatpush2.msra.mxu0 0.0
        %1688 = vmatprep.subr.mxu0 0.0
        %1689 = vmatpush2.msra.mxu0 0.0
        %1690 = vmatprep.subr.mxu0 0.0
        %1691 = vmatpush2.msra.mxu0 0.0
        %1692 = vmatprep.subr.mxu0 0.0
        %1693 = vmatpush2.msra.mxu0 0.0
        %1694 = vmatprep.subr.mxu0 0.0
        %1695 = vmatpush2.msra.mxu0 0.0
        %1696 = vmatprep.subr.mxu0 0.0
        %1697 = vmatpush2.msra.mxu0 0.0
        %1698 = vmatprep.subr.mxu0 0.0
        %1699 = vmatpush2.msra.mxu0 0.0
        %1700 = vmatprep.subr.mxu0 0.0
        %1701 = vmatpush2.msra.mxu0 0.0
        %1702 = vmatprep.subr.mxu0 0.0
        %1703 = vmatpush2.msra.mxu0 0.0
        %1704 = vmatprep.subr.mxu0 0.0
        %1705 = vmatpush2.msra.mxu0 0.0
        %1706 = vmatprep.subr.mxu0 0.0
        %1707 = vmatpush2.msra.mxu0 0.0
        %1708 = vmatprep.subr.mxu0 0.0
        %1709 = vmatpush2.msra.mxu0 0.0
        %1710 = vmatprep.subr.mxu0 0.0
        %1711 = vmatpush2.msra.mxu0 0.0
        %1712 = vmatprep.subr.mxu0 0.0
        %1713 = vmatpush2.msra.mxu0 0.0
        %1714 = vmatprep.mubr.f32.mxu0 0.0
        %1715 = vmatmul.mubr.f32.gmra.mxu0 %v1572
        %v1716 = vpop.f32.mrf.mxu0
        %v1717 = vadd.f32 0.0, %v1716
        %v1718 = vpop.f32.mrf.mxu0
        %1719 = vmatprep.mubr.f32.mxu0 0.0
        %1720 = vmatmul.mubr.f32.gmra.mxu0 %v1577
        %v1721 = vpop.f32.mrf.mxu0
        %v1722 = vadd.f32 0.0, %v1721
        %v1723 = vpop.f32.mrf.mxu0
        %1724 = vmatprep.mubr.f32.mxu0 0.0
        %1725 = vmatmul.mubr.f32.gmra.mxu0 %v1582
        %v1726 = vpop.f32.mrf.mxu0
        %v1727 = vadd.f32 0.0, %v1726
        %v1728 = vpop.f32.mrf.mxu0
        %1729 = vmatprep.mubr.f32.mxu0 0.0
        %1730 = vmatmul.mubr.f32.gmra.mxu0 %v1587
        %v1731 = vpop.f32.mrf.mxu0
        %v1732 = vadd.f32 0.0, %v1731
        %v1733 = vpop.f32.mrf.mxu0
        %1734 = vmatprep.mubr.f32.mxu0 0.0
        %1735 = vmatmul.mubr.f32.gmra.mxu0 %v1592
        %v1736 = vpop.f32.mrf.mxu0
        %v1737 = vadd.f32 0.0, %v1736
        %v1738 = vpop.f32.mrf.mxu0
        %1739 = vmatprep.mubr.f32.mxu0 0.0
        %1740 = vmatmul.mubr.f32.gmra.mxu0 %v1597
        %v1741 = vpop.f32.mrf.mxu0
        %v1742 = vadd.f32 0.0, %v1741
        %v1743 = vpop.f32.mrf.mxu0
        %1744 = vmatprep.mubr.f32.mxu0 0.0
        %1745 = vmatmul.mubr.f32.gmra.mxu0 %v1602
        %v1746 = vpop.f32.mrf.mxu0
        %v1747 = vadd.f32 0.0, %v1746
        %v1748 = vpop.f32.mrf.mxu0
        %1749 = vmatprep.mubr.f32.mxu0 0.0
        %1750 = vmatmul.mubr.f32.gmra.mxu0 %v1607
        %v1751 = vpop.f32.mrf.mxu0
        %v1752 = vadd.f32 0.0, %v1751
        %v1753 = vpop.f32.mrf.mxu0
        %1754 = vmatprep.mubr.f32.mxu0 0.0
        %1755 = vmatmul.mubr.f32.gmra.mxu0 %v1612
        %v1756 = vpop.f32.mrf.mxu0
        %v1757 = vadd.f32 0.0, %v1756
        %v1758 = vpop.f32.mrf.mxu0
        %1759 = vmatprep.mubr.f32.mxu0 0.0
        %1760 = vmatmul.mubr.f32.gmra.mxu0 %v1617
        %v1761 = vpop.f32.mrf.mxu0
        %v1762 = vadd.f32 0.0, %v1761
        %v1763 = vpop.f32.mrf.mxu0
        %1764 = vmatprep.mubr.f32.mxu0 0.0
        %1765 = vmatmul.mubr.f32.gmra.mxu0 %v1622
        %v1766 = vpop.f32.mrf.mxu0
        %v1767 = vadd.f32 0.0, %v1766
        %v1768 = vpop.f32.mrf.mxu0
        %1769 = vmatprep.mubr.f32.mxu0 0.0
        %1770 = vmatmul.mubr.f32.gmra.mxu0 %v1627
        %v1771 = vpop.f32.mrf.mxu0
        %v1772 = vadd.f32 0.0, %v1771
        %v1773 = vpop.f32.mrf.mxu0
        %1774 = vmatprep.mubr.f32.mxu0 0.0
        %1775 = vmatmul.mubr.f32.gmra.mxu0 %v1632
        %v1776 = vpop.f32.mrf.mxu0
        %v1777 = vadd.f32 0.0, %v1776
        %v1778 = vpop.f32.mrf.mxu0
        %1779 = vmatprep.mubr.f32.mxu0 0.0
        %1780 = vmatmul.mubr.f32.gmra.mxu0 %v1637
        %v1781 = vpop.f32.mrf.mxu0
        %v1782 = vadd.f32 0.0, %v1781
        %v1783 = vpop.f32.mrf.mxu0
        %1784 = vmatprep.mubr.f32.mxu0 0.0
        %1785 = vmatmul.mubr.f32.gmra.mxu0 %v1642
        %v1786 = vpop.f32.mrf.mxu0
        %v1787 = vadd.f32 0.0, %v1786
        %v1788 = vpop.f32.mrf.mxu0
        %1789 = vmatprep.mubr.f32.mxu0 0.0
        %1790 = vmatmul.mubr.f32.gmra.mxu0 %v1647
        %v1791 = vpop.f32.mrf.mxu0
        %v1792 = vadd.f32 0.0, %v1791
        %v1793 = vpop.f32.mrf.mxu0
        %1794 = vdwg.mxu0
        %s1795 = scalar_lea.vmem [#allocation8], 128
        %v1796 = vld [vmem:[%s1795] sm:$0xff]
        %v1797 = vld [vmem:[%s1795 + $0x8] sm:$0xff]
        %v1798 = vld [vmem:[%s1795 + $0x10] sm:$0xff]
        %v1799 = vld [vmem:[%s1795 + $0x18] sm:$0xff]
        %v1800 = vld [vmem:[%s1795 + $0x20] sm:$0xff]
        %v1801 = vld [vmem:[%s1795 + $0x28] sm:$0xff]
        %v1802 = vld [vmem:[%s1795 + $0x30] sm:$0xff]
        %v1803 = vld [vmem:[%s1795 + $0x38] sm:$0xff]
        %v1804 = vld [vmem:[%s1795 + $0x40] sm:$0xff]
        %v1805 = vld [vmem:[%s1795 + $0x48] sm:$0xff]
        %v1806 = vld [vmem:[%s1795 + $0x50] sm:$0xff]
        %v1807 = vld [vmem:[%s1795 + $0x58] sm:$0xff]
        %v1808 = vld [vmem:[%s1795 + $0x60] sm:$0xff]
        %v1809 = vld [vmem:[%s1795 + $0x68] sm:$0xff]
        %v1810 = vld [vmem:[%s1795 + $0x70] sm:$0xff]
        %v1811 = vld [vmem:[%s1795 + $0x78] sm:$0xff]
        %v1812 = vmul.f32 %v1717, %v1796
        %v1813 = vmul.f32 %v1722, %v1797
        %v1814 = vmul.f32 %v1727, %v1798
        %v1815 = vmul.f32 %v1732, %v1799
        %v1816 = vmul.f32 %v1737, %v1800
        %v1817 = vmul.f32 %v1742, %v1801
        %v1818 = vmul.f32 %v1747, %v1802
        %v1819 = vmul.f32 %v1752, %v1803
        %v1820 = vmul.f32 %v1757, %v1804
        %v1821 = vmul.f32 %v1762, %v1805
        %v1822 = vmul.f32 %v1767, %v1806
        %v1823 = vmul.f32 %v1772, %v1807
        %v1824 = vmul.f32 %v1777, %v1808
        %v1825 = vmul.f32 %v1782, %v1809
        %v1826 = vmul.f32 %v1787, %v1810
        %v1827 = vmul.f32 %v1792, %v1811
        %v1828 = vround.ne.pseudo %v1812
        %v1829 = vround.ne.pseudo %v1813
        %v1830 = vround.ne.pseudo %v1814
        %v1831 = vround.ne.pseudo %v1815
        %v1832 = vround.ne.pseudo %v1816
        %v1833 = vround.ne.pseudo %v1817
        %v1834 = vround.ne.pseudo %v1818
        %v1835 = vround.ne.pseudo %v1819
        %v1836 = vround.ne.pseudo %v1820
        %v1837 = vround.ne.pseudo %v1821
        %v1838 = vround.ne.pseudo %v1822
        %v1839 = vround.ne.pseudo %v1823
        %v1840 = vround.ne.pseudo %v1824
        %v1841 = vround.ne.pseudo %v1825
        %v1842 = vround.ne.pseudo %v1826
        %v1843 = vround.ne.pseudo %v1827
        %s1844 = scalar_lea.vmem [#allocation10], 128
        %v1845 = vld [vmem:[%s1844] sm:$0xff]
        %v1846 = vld [vmem:[%s1844 + $0x8] sm:$0xff]
        %v1847 = vld [vmem:[%s1844 + $0x10] sm:$0xff]
        %v1848 = vld [vmem:[%s1844 + $0x18] sm:$0xff]
        %v1849 = vld [vmem:[%s1844 + $0x20] sm:$0xff]
        %v1850 = vld [vmem:[%s1844 + $0x28] sm:$0xff]
        %v1851 = vld [vmem:[%s1844 + $0x30] sm:$0xff]
        %v1852 = vld [vmem:[%s1844 + $0x38] sm:$0xff]
        %v1853 = vld [vmem:[%s1844 + $0x40] sm:$0xff]
        %v1854 = vld [vmem:[%s1844 + $0x48] sm:$0xff]
        %v1855 = vld [vmem:[%s1844 + $0x50] sm:$0xff]
        %v1856 = vld [vmem:[%s1844 + $0x58] sm:$0xff]
        %v1857 = vld [vmem:[%s1844 + $0x60] sm:$0xff]
        %v1858 = vld [vmem:[%s1844 + $0x68] sm:$0xff]
        %v1859 = vld [vmem:[%s1844 + $0x70] sm:$0xff]
        %v1860 = vld [vmem:[%s1844 + $0x78] sm:$0xff]
        %v1861 = vmul.f32 %v1828, %v1845
        %v1862 = vmul.f32 %v1829, %v1846
        %v1863 = vmul.f32 %v1830, %v1847
        %v1864 = vmul.f32 %v1831, %v1848
        %v1865 = vmul.f32 %v1832, %v1849
        %v1866 = vmul.f32 %v1833, %v1850
        %v1867 = vmul.f32 %v1834, %v1851
        %v1868 = vmul.f32 %v1835, %v1852
        %v1869 = vmul.f32 %v1836, %v1853
        %v1870 = vmul.f32 %v1837, %v1854
        %v1871 = vmul.f32 %v1838, %v1855
        %v1872 = vmul.f32 %v1839, %v1856
        %v1873 = vmul.f32 %v1840, %v1857
        %v1874 = vmul.f32 %v1841, %v1858
        %v1875 = vmul.f32 %v1842, %v1859
        %v1876 = vmul.f32 %v1843, %v1860
        %1877 = vmatprep.subr.mxu0 0.0
        %1878 = vmatpush1.msra.mxu0 %v1876
        %1879 = vmatprep.subr.mxu0 0.0
        %1880 = vmatpush1.msra.mxu0 %v1875
        %1881 = vmatprep.subr.mxu0 0.0
        %1882 = vmatpush1.msra.mxu0 %v1874
        %1883 = vmatprep.subr.mxu0 0.0
        %1884 = vmatpush1.msra.mxu0 %v1873
        %1885 = vmatprep.subr.mxu0 0.0
        %1886 = vmatpush1.msra.mxu0 %v1872
        %1887 = vmatprep.subr.mxu0 0.0
        %1888 = vmatpush1.msra.mxu0 %v1871
        %1889 = vmatprep.subr.mxu0 0.0
        %1890 = vmatpush1.msra.mxu0 %v1870
        %1891 = vmatprep.subr.mxu0 0.0
        %1892 = vmatpush1.msra.mxu0 %v1869
        %1893 = vmatprep.subr.mxu0 0.0
        %1894 = vmatpush1.msra.mxu0 %v1868
        %1895 = vmatprep.subr.mxu0 0.0
        %1896 = vmatpush1.msra.mxu0 %v1867
        %1897 = vmatprep.subr.mxu0 0.0
        %1898 = vmatpush1.msra.mxu0 %v1866
        %1899 = vmatprep.subr.mxu0 0.0
        %1900 = vmatpush1.msra.mxu0 %v1865
        %1901 = vmatprep.subr.mxu0 0.0
        %1902 = vmatpush1.msra.mxu0 %v1864
        %1903 = vmatprep.subr.mxu0 0.0
        %1904 = vmatpush1.msra.mxu0 %v1863
        %1905 = vmatprep.subr.mxu0 0.0
        %1906 = vmatpush1.msra.mxu0 %v1862
        %1907 = vmatprep.subr.mxu0 0.0
        %1908 = vmatpush1.msra.mxu0 %v1861
        %1909 = vmatprep.subr.mxu0 0.0
        %1910 = vmatpush2.msra.mxu0 0.0
        %1911 = vmatprep.subr.mxu0 0.0
        %1912 = vmatpush2.msra.mxu0 0.0
        %1913 = vmatprep.subr.mxu0 0.0
        %1914 = vmatpush2.msra.mxu0 0.0
        %1915 = vmatprep.subr.mxu0 0.0
        %1916 = vmatpush2.msra.mxu0 0.0
        %1917 = vmatprep.subr.mxu0 0.0
        %1918 = vmatpush2.msra.mxu0 0.0
        %1919 = vmatprep.subr.mxu0 0.0
        %1920 = vmatpush2.msra.mxu0 0.0
        %1921 = vmatprep.subr.mxu0 0.0
        %1922 = vmatpush2.msra.mxu0 0.0
        %1923 = vmatprep.subr.mxu0 0.0
        %1924 = vmatpush2.msra.mxu0 0.0
        %1925 = vmatprep.subr.mxu0 0.0
        %1926 = vmatpush2.msra.mxu0 0.0
        %1927 = vmatprep.subr.mxu0 0.0
        %1928 = vmatpush2.msra.mxu0 0.0
        %1929 = vmatprep.subr.mxu0 0.0
        %1930 = vmatpush2.msra.mxu0 0.0
        %1931 = vmatprep.subr.mxu0 0.0
        %1932 = vmatpush2.msra.mxu0 0.0
        %1933 = vmatprep.subr.mxu0 0.0
        %1934 = vmatpush2.msra.mxu0 0.0
        %1935 = vmatprep.subr.mxu0 0.0
        %1936 = vmatpush2.msra.mxu0 0.0
        %1937 = vmatprep.subr.mxu0 0.0
        %1938 = vmatpush2.msra.mxu0 0.0
        %1939 = vmatprep.subr.mxu0 0.0
        %1940 = vmatpush2.msra.mxu0 0.0
        %1941 = vmatprep.mubr.f32.mxu0 0.0
        %1942 = vmatmul.mubr.f32.gmra.mxu0 %v765
        %v1943 = vpop.f32.mrf.mxu0
        %v1944 = vadd.f32 0.0, %v1943
        %v1945 = vpop.f32.mrf.mxu0
        %1946 = vmatprep.mubr.f32.mxu0 0.0
        %1947 = vmatmul.mubr.f32.gmra.mxu0 %v766
        %v1948 = vpop.f32.mrf.mxu0
        %v1949 = vadd.f32 0.0, %v1948
        %v1950 = vpop.f32.mrf.mxu0
        %1951 = vmatprep.mubr.f32.mxu0 0.0
        %1952 = vmatmul.mubr.f32.gmra.mxu0 %v767
        %v1953 = vpop.f32.mrf.mxu0
        %v1954 = vadd.f32 0.0, %v1953
        %v1955 = vpop.f32.mrf.mxu0
        %1956 = vmatprep.mubr.f32.mxu0 0.0
        %1957 = vmatmul.mubr.f32.gmra.mxu0 %v768
        %v1958 = vpop.f32.mrf.mxu0
        %v1959 = vadd.f32 0.0, %v1958
        %v1960 = vpop.f32.mrf.mxu0
        %1961 = vmatprep.mubr.f32.mxu0 0.0
        %1962 = vmatmul.mubr.f32.gmra.mxu0 %v769
        %v1963 = vpop.f32.mrf.mxu0
        %v1964 = vadd.f32 0.0, %v1963
        %v1965 = vpop.f32.mrf.mxu0
        %1966 = vmatprep.mubr.f32.mxu0 0.0
        %1967 = vmatmul.mubr.f32.gmra.mxu0 %v770
        %v1968 = vpop.f32.mrf.mxu0
        %v1969 = vadd.f32 0.0, %v1968
        %v1970 = vpop.f32.mrf.mxu0
        %1971 = vmatprep.mubr.f32.mxu0 0.0
        %1972 = vmatmul.mubr.f32.gmra.mxu0 %v771
        %v1973 = vpop.f32.mrf.mxu0
        %v1974 = vadd.f32 0.0, %v1973
        %v1975 = vpop.f32.mrf.mxu0
        %1976 = vmatprep.mubr.f32.mxu0 0.0
        %1977 = vmatmul.mubr.f32.gmra.mxu0 %v772
        %v1978 = vpop.f32.mrf.mxu0
        %v1979 = vadd.f32 0.0, %v1978
        %v1980 = vpop.f32.mrf.mxu0
        %1981 = vmatprep.mubr.f32.mxu0 0.0
        %1982 = vmatmul.mubr.f32.gmra.mxu0 %v773
        %v1983 = vpop.f32.mrf.mxu0
        %v1984 = vadd.f32 0.0, %v1983
        %v1985 = vpop.f32.mrf.mxu0
        %1986 = vmatprep.mubr.f32.mxu0 0.0
        %1987 = vmatmul.mubr.f32.gmra.mxu0 %v774
        %v1988 = vpop.f32.mrf.mxu0
        %v1989 = vadd.f32 0.0, %v1988
        %v1990 = vpop.f32.mrf.mxu0
        %1991 = vmatprep.mubr.f32.mxu0 0.0
        %1992 = vmatmul.mubr.f32.gmra.mxu0 %v775
        %v1993 = vpop.f32.mrf.mxu0
        %v1994 = vadd.f32 0.0, %v1993
        %v1995 = vpop.f32.mrf.mxu0
        %1996 = vmatprep.mubr.f32.mxu0 0.0
        %1997 = vmatmul.mubr.f32.gmra.mxu0 %v776
        %v1998 = vpop.f32.mrf.mxu0
        %v1999 = vadd.f32 0.0, %v1998
        %v2000 = vpop.f32.mrf.mxu0
        %2001 = vmatprep.mubr.f32.mxu0 0.0
        %2002 = vmatmul.mubr.f32.gmra.mxu0 %v777
        %v2003 = vpop.f32.mrf.mxu0
        %v2004 = vadd.f32 0.0, %v2003
        %v2005 = vpop.f32.mrf.mxu0
        %2006 = vmatprep.mubr.f32.mxu0 0.0
        %2007 = vmatmul.mubr.f32.gmra.mxu0 %v778
        %v2008 = vpop.f32.mrf.mxu0
        %v2009 = vadd.f32 0.0, %v2008
        %v2010 = vpop.f32.mrf.mxu0
        %2011 = vmatprep.mubr.f32.mxu0 0.0
        %2012 = vmatmul.mubr.f32.gmra.mxu0 %v779
        %v2013 = vpop.f32.mrf.mxu0
        %v2014 = vadd.f32 0.0, %v2013
        %v2015 = vpop.f32.mrf.mxu0
        %2016 = vmatprep.mubr.f32.mxu0 0.0
        %2017 = vmatmul.mubr.f32.gmra.mxu0 %v780
        %v2018 = vpop.f32.mrf.mxu0
        %v2019 = vadd.f32 0.0, %v2018
        %v2020 = vpop.f32.mrf.mxu0
        %2021 = vdwg.mxu0
        %2022 = vmatprep.subr.mxu0 0.0
        %2023 = vmatpush1.msra.mxu0 %v764
        %2024 = vmatprep.subr.mxu0 0.0
        %2025 = vmatpush1.msra.mxu0 %v763
        %2026 = vmatprep.subr.mxu0 0.0
        %2027 = vmatpush1.msra.mxu0 %v762
        %2028 = vmatprep.subr.mxu0 0.0
        %2029 = vmatpush1.msra.mxu0 %v761
        %2030 = vmatprep.subr.mxu0 0.0
        %2031 = vmatpush1.msra.mxu0 %v760
        %2032 = vmatprep.subr.mxu0 0.0
        %2033 = vmatpush1.msra.mxu0 %v759
        %2034 = vmatprep.subr.mxu0 0.0
        %2035 = vmatpush1.msra.mxu0 %v758
        %2036 = vmatprep.subr.mxu0 0.0
        %2037 = vmatpush1.msra.mxu0 %v757
        %2038 = vmatprep.subr.mxu0 0.0
        %2039 = vmatpush1.msra.mxu0 %v756
        %2040 = vmatprep.subr.mxu0 0.0
        %2041 = vmatpush1.msra.mxu0 %v755
        %2042 = vmatprep.subr.mxu0 0.0
        %2043 = vmatpush1.msra.mxu0 %v754
        %2044 = vmatprep.subr.mxu0 0.0
        %2045 = vmatpush1.msra.mxu0 %v753
        %2046 = vmatprep.subr.mxu0 0.0
        %2047 = vmatpush1.msra.mxu0 %v752
        %2048 = vmatprep.subr.mxu0 0.0
        %2049 = vmatpush1.msra.mxu0 %v751
        %2050 = vmatprep.subr.mxu0 0.0
        %2051 = vmatpush1.msra.mxu0 %v750
        %2052 = vmatprep.subr.mxu0 0.0
        %2053 = vmatpush1.msra.mxu0 %v749
        %2054 = vmatprep.subr.mxu0 0.0
        %2055 = vmatpush2.msra.mxu0 0.0
        %2056 = vmatprep.subr.mxu0 0.0
        %2057 = vmatpush2.msra.mxu0 0.0
        %2058 = vmatprep.subr.mxu0 0.0
        %2059 = vmatpush2.msra.mxu0 0.0
        %2060 = vmatprep.subr.mxu0 0.0
        %2061 = vmatpush2.msra.mxu0 0.0
        %2062 = vmatprep.subr.mxu0 0.0
        %2063 = vmatpush2.msra.mxu0 0.0
        %2064 = vmatprep.subr.mxu0 0.0
        %2065 = vmatpush2.msra.mxu0 0.0
        %2066 = vmatprep.subr.mxu0 0.0
        %2067 = vmatpush2.msra.mxu0 0.0
        %2068 = vmatprep.subr.mxu0 0.0
        %2069 = vmatpush2.msra.mxu0 0.0
        %2070 = vmatprep.subr.mxu0 0.0
        %2071 = vmatpush2.msra.mxu0 0.0
        %2072 = vmatprep.subr.mxu0 0.0
        %2073 = vmatpush2.msra.mxu0 0.0
        %2074 = vmatprep.subr.mxu0 0.0
        %2075 = vmatpush2.msra.mxu0 0.0
        %2076 = vmatprep.subr.mxu0 0.0
        %2077 = vmatpush2.msra.mxu0 0.0
        %2078 = vmatprep.subr.mxu0 0.0
        %2079 = vmatpush2.msra.mxu0 0.0
        %2080 = vmatprep.subr.mxu0 0.0
        %2081 = vmatpush2.msra.mxu0 0.0
        %2082 = vmatprep.subr.mxu0 0.0
        %2083 = vmatpush2.msra.mxu0 0.0
        %2084 = vmatprep.subr.mxu0 0.0
        %2085 = vmatpush2.msra.mxu0 0.0
        %2086 = vmatprep.mubr.f32.mxu0 0.0
        %2087 = vmatmul.mubr.f32.gmra.mxu0 %v1944
        %v2088 = vpop.f32.mrf.mxu0
        %v2089 = vadd.f32 128.0, %v2088
        %v2090 = vpop.f32.mrf.mxu0
        %2091 = vmatprep.mubr.f32.mxu0 0.0
        %2092 = vmatmul.mubr.f32.gmra.mxu0 %v1949
        %v2093 = vpop.f32.mrf.mxu0
        %v2094 = vadd.f32 128.0, %v2093
        %v2095 = vpop.f32.mrf.mxu0
        %2096 = vmatprep.mubr.f32.mxu0 0.0
        %2097 = vmatmul.mubr.f32.gmra.mxu0 %v1954
        %v2098 = vpop.f32.mrf.mxu0
        %v2099 = vadd.f32 128.0, %v2098
        %v2100 = vpop.f32.mrf.mxu0
        %2101 = vmatprep.mubr.f32.mxu0 0.0
        %2102 = vmatmul.mubr.f32.gmra.mxu0 %v1959
        %v2103 = vpop.f32.mrf.mxu0
        %v2104 = vadd.f32 128.0, %v2103
        %v2105 = vpop.f32.mrf.mxu0
        %2106 = vmatprep.mubr.f32.mxu0 0.0
        %2107 = vmatmul.mubr.f32.gmra.mxu0 %v1964
        %v2108 = vpop.f32.mrf.mxu0
        %v2109 = vadd.f32 128.0, %v2108
        %v2110 = vpop.f32.mrf.mxu0
        %2111 = vmatprep.mubr.f32.mxu0 0.0
        %2112 = vmatmul.mubr.f32.gmra.mxu0 %v1969
        %v2113 = vpop.f32.mrf.mxu0
        %v2114 = vadd.f32 128.0, %v2113
        %v2115 = vpop.f32.mrf.mxu0
        %2116 = vmatprep.mubr.f32.mxu0 0.0
        %2117 = vmatmul.mubr.f32.gmra.mxu0 %v1974
        %v2118 = vpop.f32.mrf.mxu0
        %v2119 = vadd.f32 128.0, %v2118
        %v2120 = vpop.f32.mrf.mxu0
        %2121 = vmatprep.mubr.f32.mxu0 0.0
        %2122 = vmatmul.mubr.f32.gmra.mxu0 %v1979
        %v2123 = vpop.f32.mrf.mxu0
        %v2124 = vadd.f32 128.0, %v2123
        %v2125 = vpop.f32.mrf.mxu0
        %2126 = vmatprep.mubr.f32.mxu0 0.0
        %2127 = vmatmul.mubr.f32.gmra.mxu0 %v1984
        %v2128 = vpop.f32.mrf.mxu0
        %v2129 = vadd.f32 128.0, %v2128
        %v2130 = vpop.f32.mrf.mxu0
        %2131 = vmatprep.mubr.f32.mxu0 0.0
        %2132 = vmatmul.mubr.f32.gmra.mxu0 %v1989
        %v2133 = vpop.f32.mrf.mxu0
        %v2134 = vadd.f32 128.0, %v2133
        %v2135 = vpop.f32.mrf.mxu0
        %2136 = vmatprep.mubr.f32.mxu0 0.0
        %2137 = vmatmul.mubr.f32.gmra.mxu0 %v1994
        %v2138 = vpop.f32.mrf.mxu0
        %v2139 = vadd.f32 128.0, %v2138
        %v2140 = vpop.f32.mrf.mxu0
        %2141 = vmatprep.mubr.f32.mxu0 0.0
        %2142 = vmatmul.mubr.f32.gmra.mxu0 %v1999
        %v2143 = vpop.f32.mrf.mxu0
        %v2144 = vadd.f32 128.0, %v2143
        %v2145 = vpop.f32.mrf.mxu0
        %2146 = vmatprep.mubr.f32.mxu0 0.0
        %2147 = vmatmul.mubr.f32.gmra.mxu0 %v2004
        %v2148 = vpop.f32.mrf.mxu0
        %v2149 = vadd.f32 128.0, %v2148
        %v2150 = vpop.f32.mrf.mxu0
        %2151 = vmatprep.mubr.f32.mxu0 0.0
        %2152 = vmatmul.mubr.f32.gmra.mxu0 %v2009
        %v2153 = vpop.f32.mrf.mxu0
        %v2154 = vadd.f32 128.0, %v2153
        %v2155 = vpop.f32.mrf.mxu0
        %2156 = vmatprep.mubr.f32.mxu0 0.0
        %2157 = vmatmul.mubr.f32.gmra.mxu0 %v2014
        %v2158 = vpop.f32.mrf.mxu0
        %v2159 = vadd.f32 128.0, %v2158
        %v2160 = vpop.f32.mrf.mxu0
        %2161 = vmatprep.mubr.f32.mxu0 0.0
        %2162 = vmatmul.mubr.f32.gmra.mxu0 %v2019
        %v2163 = vpop.f32.mrf.mxu0
        %v2164 = vadd.f32 128.0, %v2163
        %v2165 = vpop.f32.mrf.mxu0
        %2166 = vdwg.mxu0
        %v2167 = vmax.f32 %v2089, 0.0
        %v2168 = vmax.f32 %v2094, 0.0
        %v2169 = vmax.f32 %v2099, 0.0
        %v2170 = vmax.f32 %v2104, 0.0
        %v2171 = vmax.f32 %v2109, 0.0
        %v2172 = vmax.f32 %v2114, 0.0
        %v2173 = vmax.f32 %v2119, 0.0
        %v2174 = vmax.f32 %v2124, 0.0
        %v2175 = vmax.f32 %v2129, 0.0
        %v2176 = vmax.f32 %v2134, 0.0
        %v2177 = vmax.f32 %v2139, 0.0
        %v2178 = vmax.f32 %v2144, 0.0
        %v2179 = vmax.f32 %v2149, 0.0
        %v2180 = vmax.f32 %v2154, 0.0
        %v2181 = vmax.f32 %v2159, 0.0
        %v2182 = vmax.f32 %v2164, 0.0
        %v2183 = vmin.f32 %v2167, 255.0
        %v2184 = vmin.f32 %v2168, 255.0
        %v2185 = vmin.f32 %v2169, 255.0
        %v2186 = vmin.f32 %v2170, 255.0
        %v2187 = vmin.f32 %v2171, 255.0
        %v2188 = vmin.f32 %v2172, 255.0
        %v2189 = vmin.f32 %v2173, 255.0
        %v2190 = vmin.f32 %v2174, 255.0
        %v2191 = vmin.f32 %v2175, 255.0
        %v2192 = vmin.f32 %v2176, 255.0
        %v2193 = vmin.f32 %v2177, 255.0
        %v2194 = vmin.f32 %v2178, 255.0
        %v2195 = vmin.f32 %v2179, 255.0
        %v2196 = vmin.f32 %v2180, 255.0
        %v2197 = vmin.f32 %v2181, 255.0
        %v2198 = vmin.f32 %v2182, 255.0
        %v2199 = vsub.f32 %v733, 128.0
        %v2200 = vsub.f32 %v734, 128.0
        %v2201 = vsub.f32 %v735, 128.0
        %v2202 = vsub.f32 %v736, 128.0
        %v2203 = vsub.f32 %v737, 128.0
        %v2204 = vsub.f32 %v738, 128.0
        %v2205 = vsub.f32 %v739, 128.0
        %v2206 = vsub.f32 %v740, 128.0
        %v2207 = vsub.f32 %v741, 128.0
        %v2208 = vsub.f32 %v742, 128.0
        %v2209 = vsub.f32 %v743, 128.0
        %v2210 = vsub.f32 %v744, 128.0
        %v2211 = vsub.f32 %v745, 128.0
        %v2212 = vsub.f32 %v746, 128.0
        %v2213 = vsub.f32 %v747, 128.0
        %v2214 = vsub.f32 %v748, 128.0
        %2215 = vmatprep.subr.mxu0 0.0
        %2216 = vmatpush1.msra.mxu0 %v2214
        %2217 = vmatprep.subr.mxu0 0.0
        %2218 = vmatpush1.msra.mxu0 %v2213
        %2219 = vmatprep.subr.mxu0 0.0
        %2220 = vmatpush1.msra.mxu0 %v2212
        %2221 = vmatprep.subr.mxu0 0.0
        %2222 = vmatpush1.msra.mxu0 %v2211
        %2223 = vmatprep.subr.mxu0 0.0
        %2224 = vmatpush1.msra.mxu0 %v2210
        %2225 = vmatprep.subr.mxu0 0.0
        %2226 = vmatpush1.msra.mxu0 %v2209
        %2227 = vmatprep.subr.mxu0 0.0
        %2228 = vmatpush1.msra.mxu0 %v2208
        %2229 = vmatprep.subr.mxu0 0.0
        %2230 = vmatpush1.msra.mxu0 %v2207
        %2231 = vmatprep.subr.mxu0 0.0
        %2232 = vmatpush1.msra.mxu0 %v2206
        %2233 = vmatprep.subr.mxu0 0.0
        %2234 = vmatpush1.msra.mxu0 %v2205
        %2235 = vmatprep.subr.mxu0 0.0
        %2236 = vmatpush1.msra.mxu0 %v2204
        %2237 = vmatprep.subr.mxu0 0.0
        %2238 = vmatpush1.msra.mxu0 %v2203
        %2239 = vmatprep.subr.mxu0 0.0
        %2240 = vmatpush1.msra.mxu0 %v2202
        %2241 = vmatprep.subr.mxu0 0.0
        %2242 = vmatpush1.msra.mxu0 %v2201
        %2243 = vmatprep.subr.mxu0 0.0
        %2244 = vmatpush1.msra.mxu0 %v2200
        %2245 = vmatprep.subr.mxu0 0.0
        %2246 = vmatpush1.msra.mxu0 %v2199
        %2247 = vmatprep.subr.mxu0 0.0
        %2248 = vmatpush2.msra.mxu0 0.0
        %2249 = vmatprep.subr.mxu0 0.0
        %2250 = vmatpush2.msra.mxu0 0.0
        %2251 = vmatprep.subr.mxu0 0.0
        %2252 = vmatpush2.msra.mxu0 0.0
        %2253 = vmatprep.subr.mxu0 0.0
        %2254 = vmatpush2.msra.mxu0 0.0
        %2255 = vmatprep.subr.mxu0 0.0
        %2256 = vmatpush2.msra.mxu0 0.0
        %2257 = vmatprep.subr.mxu0 0.0
        %2258 = vmatpush2.msra.mxu0 0.0
        %2259 = vmatprep.subr.mxu0 0.0
        %2260 = vmatpush2.msra.mxu0 0.0
        %2261 = vmatprep.subr.mxu0 0.0
        %2262 = vmatpush2.msra.mxu0 0.0
        %2263 = vmatprep.subr.mxu0 0.0
        %2264 = vmatpush2.msra.mxu0 0.0
        %2265 = vmatprep.subr.mxu0 0.0
        %2266 = vmatpush2.msra.mxu0 0.0
        %2267 = vmatprep.subr.mxu0 0.0
        %2268 = vmatpush2.msra.mxu0 0.0
        %2269 = vmatprep.subr.mxu0 0.0
        %2270 = vmatpush2.msra.mxu0 0.0
        %2271 = vmatprep.subr.mxu0 0.0
        %2272 = vmatpush2.msra.mxu0 0.0
        %2273 = vmatprep.subr.mxu0 0.0
        %2274 = vmatpush2.msra.mxu0 0.0
        %2275 = vmatprep.subr.mxu0 0.0
        %2276 = vmatpush2.msra.mxu0 0.0
        %2277 = vmatprep.subr.mxu0 0.0
        %2278 = vmatpush2.msra.mxu0 0.0
        %2279 = vmatprep.mubr.f32.mxu0 0.0
        %2280 = vmatmul.mubr.f32.gmra.mxu0 %v749
        %v2281 = vpop.f32.mrf.mxu0
        %v2282 = vadd.f32 0.0, %v2281
        %v2283 = vpop.f32.mrf.mxu0
        %2284 = vmatprep.mubr.f32.mxu0 0.0
        %2285 = vmatmul.mubr.f32.gmra.mxu0 %v750
        %v2286 = vpop.f32.mrf.mxu0
        %v2287 = vadd.f32 0.0, %v2286
        %v2288 = vpop.f32.mrf.mxu0
        %2289 = vmatprep.mubr.f32.mxu0 0.0
        %2290 = vmatmul.mubr.f32.gmra.mxu0 %v751
        %v2291 = vpop.f32.mrf.mxu0
        %v2292 = vadd.f32 0.0, %v2291
        %v2293 = vpop.f32.mrf.mxu0
        %2294 = vmatprep.mubr.f32.mxu0 0.0
        %2295 = vmatmul.mubr.f32.gmra.mxu0 %v752
        %v2296 = vpop.f32.mrf.mxu0
        %v2297 = vadd.f32 0.0, %v2296
        %v2298 = vpop.f32.mrf.mxu0
        %2299 = vmatprep.mubr.f32.mxu0 0.0
        %2300 = vmatmul.mubr.f32.gmra.mxu0 %v753
        %v2301 = vpop.f32.mrf.mxu0
        %v2302 = vadd.f32 0.0, %v2301
        %v2303 = vpop.f32.mrf.mxu0
        %2304 = vmatprep.mubr.f32.mxu0 0.0
        %2305 = vmatmul.mubr.f32.gmra.mxu0 %v754
        %v2306 = vpop.f32.mrf.mxu0
        %v2307 = vadd.f32 0.0, %v2306
        %v2308 = vpop.f32.mrf.mxu0
        %2309 = vmatprep.mubr.f32.mxu0 0.0
        %2310 = vmatmul.mubr.f32.gmra.mxu0 %v755
        %v2311 = vpop.f32.mrf.mxu0
        %v2312 = vadd.f32 0.0, %v2311
        %v2313 = vpop.f32.mrf.mxu0
        %2314 = vmatprep.mubr.f32.mxu0 0.0
        %2315 = vmatmul.mubr.f32.gmra.mxu0 %v756
        %v2316 = vpop.f32.mrf.mxu0
        %v2317 = vadd.f32 0.0, %v2316
        %v2318 = vpop.f32.mrf.mxu0
        %2319 = vmatprep.mubr.f32.mxu0 0.0
        %2320 = vmatmul.mubr.f32.gmra.mxu0 %v757
        %v2321 = vpop.f32.mrf.mxu0
        %v2322 = vadd.f32 0.0, %v2321
        %v2323 = vpop.f32.mrf.mxu0
        %2324 = vmatprep.mubr.f32.mxu0 0.0
        %2325 = vmatmul.mubr.f32.gmra.mxu0 %v758
        %v2326 = vpop.f32.mrf.mxu0
        %v2327 = vadd.f32 0.0, %v2326
        %v2328 = vpop.f32.mrf.mxu0
        %2329 = vmatprep.mubr.f32.mxu0 0.0
        %2330 = vmatmul.mubr.f32.gmra.mxu0 %v759
        %v2331 = vpop.f32.mrf.mxu0
        %v2332 = vadd.f32 0.0, %v2331
        %v2333 = vpop.f32.mrf.mxu0
        %2334 = vmatprep.mubr.f32.mxu0 0.0
        %2335 = vmatmul.mubr.f32.gmra.mxu0 %v760
        %v2336 = vpop.f32.mrf.mxu0
        %v2337 = vadd.f32 0.0, %v2336
        %v2338 = vpop.f32.mrf.mxu0
        %2339 = vmatprep.mubr.f32.mxu0 0.0
        %2340 = vmatmul.mubr.f32.gmra.mxu0 %v761
        %v2341 = vpop.f32.mrf.mxu0
        %v2342 = vadd.f32 0.0, %v2341
        %v2343 = vpop.f32.mrf.mxu0
        %2344 = vmatprep.mubr.f32.mxu0 0.0
        %2345 = vmatmul.mubr.f32.gmra.mxu0 %v762
        %v2346 = vpop.f32.mrf.mxu0
        %v2347 = vadd.f32 0.0, %v2346
        %v2348 = vpop.f32.mrf.mxu0
        %2349 = vmatprep.mubr.f32.mxu0 0.0
        %2350 = vmatmul.mubr.f32.gmra.mxu0 %v763
        %v2351 = vpop.f32.mrf.mxu0
        %v2352 = vadd.f32 0.0, %v2351
        %v2353 = vpop.f32.mrf.mxu0
        %2354 = vmatprep.mubr.f32.mxu0 0.0
        %2355 = vmatmul.mubr.f32.gmra.mxu0 %v764
        %v2356 = vpop.f32.mrf.mxu0
        %v2357 = vadd.f32 0.0, %v2356
        %v2358 = vpop.f32.mrf.mxu0
        %2359 = vdwg.mxu0
        %2360 = vmatprep.subr.mxu0 0.0
        %2361 = vmatpush1.msra.mxu0 %v780
        %2362 = vmatprep.subr.mxu0 0.0
        %2363 = vmatpush1.msra.mxu0 %v779
        %2364 = vmatprep.subr.mxu0 0.0
        %2365 = vmatpush1.msra.mxu0 %v778
        %2366 = vmatprep.subr.mxu0 0.0
        %2367 = vmatpush1.msra.mxu0 %v777
        %2368 = vmatprep.subr.mxu0 0.0
        %2369 = vmatpush1.msra.mxu0 %v776
        %2370 = vmatprep.subr.mxu0 0.0
        %2371 = vmatpush1.msra.mxu0 %v775
        %2372 = vmatprep.subr.mxu0 0.0
        %2373 = vmatpush1.msra.mxu0 %v774
        %2374 = vmatprep.subr.mxu0 0.0
        %2375 = vmatpush1.msra.mxu0 %v773
        %2376 = vmatprep.subr.mxu0 0.0
        %2377 = vmatpush1.msra.mxu0 %v772
        %2378 = vmatprep.subr.mxu0 0.0
        %2379 = vmatpush1.msra.mxu0 %v771
        %2380 = vmatprep.subr.mxu0 0.0
        %2381 = vmatpush1.msra.mxu0 %v770
        %2382 = vmatprep.subr.mxu0 0.0
        %2383 = vmatpush1.msra.mxu0 %v769
        %2384 = vmatprep.subr.mxu0 0.0
        %2385 = vmatpush1.msra.mxu0 %v768
        %2386 = vmatprep.subr.mxu0 0.0
        %2387 = vmatpush1.msra.mxu0 %v767
        %2388 = vmatprep.subr.mxu0 0.0
        %2389 = vmatpush1.msra.mxu0 %v766
        %2390 = vmatprep.subr.mxu0 0.0
        %2391 = vmatpush1.msra.mxu0 %v765
        %2392 = vmatprep.subr.mxu0 0.0
        %2393 = vmatpush2.msra.mxu0 0.0
        %2394 = vmatprep.subr.mxu0 0.0
        %2395 = vmatpush2.msra.mxu0 0.0
        %2396 = vmatprep.subr.mxu0 0.0
        %2397 = vmatpush2.msra.mxu0 0.0
        %2398 = vmatprep.subr.mxu0 0.0
        %2399 = vmatpush2.msra.mxu0 0.0
        %2400 = vmatprep.subr.mxu0 0.0
        %2401 = vmatpush2.msra.mxu0 0.0
        %2402 = vmatprep.subr.mxu0 0.0
        %2403 = vmatpush2.msra.mxu0 0.0
        %2404 = vmatprep.subr.mxu0 0.0
        %2405 = vmatpush2.msra.mxu0 0.0
        %2406 = vmatprep.subr.mxu0 0.0
        %2407 = vmatpush2.msra.mxu0 0.0
        %2408 = vmatprep.subr.mxu0 0.0
        %2409 = vmatpush2.msra.mxu0 0.0
        %2410 = vmatprep.subr.mxu0 0.0
        %2411 = vmatpush2.msra.mxu0 0.0
        %2412 = vmatprep.subr.mxu0 0.0
        %2413 = vmatpush2.msra.mxu0 0.0
        %2414 = vmatprep.subr.mxu0 0.0
        %2415 = vmatpush2.msra.mxu0 0.0
        %2416 = vmatprep.subr.mxu0 0.0
        %2417 = vmatpush2.msra.mxu0 0.0
        %2418 = vmatprep.subr.mxu0 0.0
        %2419 = vmatpush2.msra.mxu0 0.0
        %2420 = vmatprep.subr.mxu0 0.0
        %2421 = vmatpush2.msra.mxu0 0.0
        %2422 = vmatprep.subr.mxu0 0.0
        %2423 = vmatpush2.msra.mxu0 0.0
        %2424 = vmatprep.mubr.f32.mxu0 0.0
        %2425 = vmatmul.mubr.f32.gmra.mxu0 %v2282
        %v2426 = vpop.f32.mrf.mxu0
        %v2427 = vadd.f32 0.0, %v2426
        %v2428 = vpop.f32.mrf.mxu0
        %2429 = vmatprep.mubr.f32.mxu0 0.0
        %2430 = vmatmul.mubr.f32.gmra.mxu0 %v2287
        %v2431 = vpop.f32.mrf.mxu0
        %v2432 = vadd.f32 0.0, %v2431
        %v2433 = vpop.f32.mrf.mxu0
        %2434 = vmatprep.mubr.f32.mxu0 0.0
        %2435 = vmatmul.mubr.f32.gmra.mxu0 %v2292
        %v2436 = vpop.f32.mrf.mxu0
        %v2437 = vadd.f32 0.0, %v2436
        %v2438 = vpop.f32.mrf.mxu0
        %2439 = vmatprep.mubr.f32.mxu0 0.0
        %2440 = vmatmul.mubr.f32.gmra.mxu0 %v2297
        %v2441 = vpop.f32.mrf.mxu0
        %v2442 = vadd.f32 0.0, %v2441
        %v2443 = vpop.f32.mrf.mxu0
        %2444 = vmatprep.mubr.f32.mxu0 0.0
        %2445 = vmatmul.mubr.f32.gmra.mxu0 %v2302
        %v2446 = vpop.f32.mrf.mxu0
        %v2447 = vadd.f32 0.0, %v2446
        %v2448 = vpop.f32.mrf.mxu0
        %2449 = vmatprep.mubr.f32.mxu0 0.0
        %2450 = vmatmul.mubr.f32.gmra.mxu0 %v2307
        %v2451 = vpop.f32.mrf.mxu0
        %v2452 = vadd.f32 0.0, %v2451
        %v2453 = vpop.f32.mrf.mxu0
        %2454 = vmatprep.mubr.f32.mxu0 0.0
        %2455 = vmatmul.mubr.f32.gmra.mxu0 %v2312
        %v2456 = vpop.f32.mrf.mxu0
        %v2457 = vadd.f32 0.0, %v2456
        %v2458 = vpop.f32.mrf.mxu0
        %2459 = vmatprep.mubr.f32.mxu0 0.0
        %2460 = vmatmul.mubr.f32.gmra.mxu0 %v2317
        %v2461 = vpop.f32.mrf.mxu0
        %v2462 = vadd.f32 0.0, %v2461
        %v2463 = vpop.f32.mrf.mxu0
        %2464 = vmatprep.mubr.f32.mxu0 0.0
        %2465 = vmatmul.mubr.f32.gmra.mxu0 %v2322
        %v2466 = vpop.f32.mrf.mxu0
        %v2467 = vadd.f32 0.0, %v2466
        %v2468 = vpop.f32.mrf.mxu0
        %2469 = vmatprep.mubr.f32.mxu0 0.0
        %2470 = vmatmul.mubr.f32.gmra.mxu0 %v2327
        %v2471 = vpop.f32.mrf.mxu0
        %v2472 = vadd.f32 0.0, %v2471
        %v2473 = vpop.f32.mrf.mxu0
        %2474 = vmatprep.mubr.f32.mxu0 0.0
        %2475 = vmatmul.mubr.f32.gmra.mxu0 %v2332
        %v2476 = vpop.f32.mrf.mxu0
        %v2477 = vadd.f32 0.0, %v2476
        %v2478 = vpop.f32.mrf.mxu0
        %2479 = vmatprep.mubr.f32.mxu0 0.0
        %2480 = vmatmul.mubr.f32.gmra.mxu0 %v2337
        %v2481 = vpop.f32.mrf.mxu0
        %v2482 = vadd.f32 0.0, %v2481
        %v2483 = vpop.f32.mrf.mxu0
        %2484 = vmatprep.mubr.f32.mxu0 0.0
        %2485 = vmatmul.mubr.f32.gmra.mxu0 %v2342
        %v2486 = vpop.f32.mrf.mxu0
        %v2487 = vadd.f32 0.0, %v2486
        %v2488 = vpop.f32.mrf.mxu0
        %2489 = vmatprep.mubr.f32.mxu0 0.0
        %2490 = vmatmul.mubr.f32.gmra.mxu0 %v2347
        %v2491 = vpop.f32.mrf.mxu0
        %v2492 = vadd.f32 0.0, %v2491
        %v2493 = vpop.f32.mrf.mxu0
        %2494 = vmatprep.mubr.f32.mxu0 0.0
        %2495 = vmatmul.mubr.f32.gmra.mxu0 %v2352
        %v2496 = vpop.f32.mrf.mxu0
        %v2497 = vadd.f32 0.0, %v2496
        %v2498 = vpop.f32.mrf.mxu0
        %2499 = vmatprep.mubr.f32.mxu0 0.0
        %2500 = vmatmul.mubr.f32.gmra.mxu0 %v2357
        %v2501 = vpop.f32.mrf.mxu0
        %v2502 = vadd.f32 0.0, %v2501
        %v2503 = vpop.f32.mrf.mxu0
        %2504 = vdwg.mxu0
        %s2505 = scalar_lea.vmem [#allocation8], 256
        %v2506 = vld [vmem:[%s2505] sm:$0xff]
        %v2507 = vld [vmem:[%s2505 + $0x8] sm:$0xff]
        %v2508 = vld [vmem:[%s2505 + $0x10] sm:$0xff]
        %v2509 = vld [vmem:[%s2505 + $0x18] sm:$0xff]
        %v2510 = vld [vmem:[%s2505 + $0x20] sm:$0xff]
        %v2511 = vld [vmem:[%s2505 + $0x28] sm:$0xff]
        %v2512 = vld [vmem:[%s2505 + $0x30] sm:$0xff]
        %v2513 = vld [vmem:[%s2505 + $0x38] sm:$0xff]
        %v2514 = vld [vmem:[%s2505 + $0x40] sm:$0xff]
        %v2515 = vld [vmem:[%s2505 + $0x48] sm:$0xff]
        %v2516 = vld [vmem:[%s2505 + $0x50] sm:$0xff]
        %v2517 = vld [vmem:[%s2505 + $0x58] sm:$0xff]
        %v2518 = vld [vmem:[%s2505 + $0x60] sm:$0xff]
        %v2519 = vld [vmem:[%s2505 + $0x68] sm:$0xff]
        %v2520 = vld [vmem:[%s2505 + $0x70] sm:$0xff]
        %v2521 = vld [vmem:[%s2505 + $0x78] sm:$0xff]
        %v2522 = vmul.f32 %v2427, %v2506
        %v2523 = vmul.f32 %v2432, %v2507
        %v2524 = vmul.f32 %v2437, %v2508
        %v2525 = vmul.f32 %v2442, %v2509
        %v2526 = vmul.f32 %v2447, %v2510
        %v2527 = vmul.f32 %v2452, %v2511
        %v2528 = vmul.f32 %v2457, %v2512
        %v2529 = vmul.f32 %v2462, %v2513
        %v2530 = vmul.f32 %v2467, %v2514
        %v2531 = vmul.f32 %v2472, %v2515
        %v2532 = vmul.f32 %v2477, %v2516
        %v2533 = vmul.f32 %v2482, %v2517
        %v2534 = vmul.f32 %v2487, %v2518
        %v2535 = vmul.f32 %v2492, %v2519
        %v2536 = vmul.f32 %v2497, %v2520
        %v2537 = vmul.f32 %v2502, %v2521
        %v2538 = vround.ne.pseudo %v2522
        %v2539 = vround.ne.pseudo %v2523
        %v2540 = vround.ne.pseudo %v2524
        %v2541 = vround.ne.pseudo %v2525
        %v2542 = vround.ne.pseudo %v2526
        %v2543 = vround.ne.pseudo %v2527
        %v2544 = vround.ne.pseudo %v2528
        %v2545 = vround.ne.pseudo %v2529
        %v2546 = vround.ne.pseudo %v2530
        %v2547 = vround.ne.pseudo %v2531
        %v2548 = vround.ne.pseudo %v2532
        %v2549 = vround.ne.pseudo %v2533
        %v2550 = vround.ne.pseudo %v2534
        %v2551 = vround.ne.pseudo %v2535
        %v2552 = vround.ne.pseudo %v2536
        %v2553 = vround.ne.pseudo %v2537
        %s2554 = scalar_lea.vmem [#allocation10], 256
        %v2555 = vld [vmem:[%s2554] sm:$0xff]
        %v2556 = vld [vmem:[%s2554 + $0x8] sm:$0xff]
        %v2557 = vld [vmem:[%s2554 + $0x10] sm:$0xff]
        %v2558 = vld [vmem:[%s2554 + $0x18] sm:$0xff]
        %v2559 = vld [vmem:[%s2554 + $0x20] sm:$0xff]
        %v2560 = vld [vmem:[%s2554 + $0x28] sm:$0xff]
        %v2561 = vld [vmem:[%s2554 + $0x30] sm:$0xff]
        %v2562 = vld [vmem:[%s2554 + $0x38] sm:$0xff]
        %v2563 = vld [vmem:[%s2554 + $0x40] sm:$0xff]
        %v2564 = vld [vmem:[%s2554 + $0x48] sm:$0xff]
        %v2565 = vld [vmem:[%s2554 + $0x50] sm:$0xff]
        %v2566 = vld [vmem:[%s2554 + $0x58] sm:$0xff]
        %v2567 = vld [vmem:[%s2554 + $0x60] sm:$0xff]
        %v2568 = vld [vmem:[%s2554 + $0x68] sm:$0xff]
        %v2569 = vld [vmem:[%s2554 + $0x70] sm:$0xff]
        %v2570 = vld [vmem:[%s2554 + $0x78] sm:$0xff]
        %v2571 = vmul.f32 %v2538, %v2555
        %v2572 = vmul.f32 %v2539, %v2556
        %v2573 = vmul.f32 %v2540, %v2557
        %v2574 = vmul.f32 %v2541, %v2558
        %v2575 = vmul.f32 %v2542, %v2559
        %v2576 = vmul.f32 %v2543, %v2560
        %v2577 = vmul.f32 %v2544, %v2561
        %v2578 = vmul.f32 %v2545, %v2562
        %v2579 = vmul.f32 %v2546, %v2563
        %v2580 = vmul.f32 %v2547, %v2564
        %v2581 = vmul.f32 %v2548, %v2565
        %v2582 = vmul.f32 %v2549, %v2566
        %v2583 = vmul.f32 %v2550, %v2567
        %v2584 = vmul.f32 %v2551, %v2568
        %v2585 = vmul.f32 %v2552, %v2569
        %v2586 = vmul.f32 %v2553, %v2570
        %2587 = vmatprep.subr.mxu0 0.0
        %2588 = vmatpush1.msra.mxu0 %v2586
        %2589 = vmatprep.subr.mxu0 0.0
        %2590 = vmatpush1.msra.mxu0 %v2585
        %2591 = vmatprep.subr.mxu0 0.0
        %2592 = vmatpush1.msra.mxu0 %v2584
        %2593 = vmatprep.subr.mxu0 0.0
        %2594 = vmatpush1.msra.mxu0 %v2583
        %2595 = vmatprep.subr.mxu0 0.0
        %2596 = vmatpush1.msra.mxu0 %v2582
        %2597 = vmatprep.subr.mxu0 0.0
        %2598 = vmatpush1.msra.mxu0 %v2581
        %2599 = vmatprep.subr.mxu0 0.0
        %2600 = vmatpush1.msra.mxu0 %v2580
        %2601 = vmatprep.subr.mxu0 0.0
        %2602 = vmatpush1.msra.mxu0 %v2579
        %2603 = vmatprep.subr.mxu0 0.0
        %2604 = vmatpush1.msra.mxu0 %v2578
        %2605 = vmatprep.subr.mxu0 0.0
        %2606 = vmatpush1.msra.mxu0 %v2577
        %2607 = vmatprep.subr.mxu0 0.0
        %2608 = vmatpush1.msra.mxu0 %v2576
        %2609 = vmatprep.subr.mxu0 0.0
        %2610 = vmatpush1.msra.mxu0 %v2575
        %2611 = vmatprep.subr.mxu0 0.0
        %2612 = vmatpush1.msra.mxu0 %v2574
        %2613 = vmatprep.subr.mxu0 0.0
        %2614 = vmatpush1.msra.mxu0 %v2573
        %2615 = vmatprep.subr.mxu0 0.0
        %2616 = vmatpush1.msra.mxu0 %v2572
        %2617 = vmatprep.subr.mxu0 0.0
        %2618 = vmatpush1.msra.mxu0 %v2571
        %2619 = vmatprep.subr.mxu0 0.0
        %2620 = vmatpush2.msra.mxu0 0.0
        %2621 = vmatprep.subr.mxu0 0.0
        %2622 = vmatpush2.msra.mxu0 0.0
        %2623 = vmatprep.subr.mxu0 0.0
        %2624 = vmatpush2.msra.mxu0 0.0
        %2625 = vmatprep.subr.mxu0 0.0
        %2626 = vmatpush2.msra.mxu0 0.0
        %2627 = vmatprep.subr.mxu0 0.0
        %2628 = vmatpush2.msra.mxu0 0.0
        %2629 = vmatprep.subr.mxu0 0.0
        %2630 = vmatpush2.msra.mxu0 0.0
        %2631 = vmatprep.subr.mxu0 0.0
        %2632 = vmatpush2.msra.mxu0 0.0
        %2633 = vmatprep.subr.mxu0 0.0
        %2634 = vmatpush2.msra.mxu0 0.0
        %2635 = vmatprep.subr.mxu0 0.0
        %2636 = vmatpush2.msra.mxu0 0.0
        %2637 = vmatprep.subr.mxu0 0.0
        %2638 = vmatpush2.msra.mxu0 0.0
        %2639 = vmatprep.subr.mxu0 0.0
        %2640 = vmatpush2.msra.mxu0 0.0
        %2641 = vmatprep.subr.mxu0 0.0
        %2642 = vmatpush2.msra.mxu0 0.0
        %2643 = vmatprep.subr.mxu0 0.0
        %2644 = vmatpush2.msra.mxu0 0.0
        %2645 = vmatprep.subr.mxu0 0.0
        %2646 = vmatpush2.msra.mxu0 0.0
        %2647 = vmatprep.subr.mxu0 0.0
        %2648 = vmatpush2.msra.mxu0 0.0
        %2649 = vmatprep.subr.mxu0 0.0
        %2650 = vmatpush2.msra.mxu0 0.0
        %2651 = vmatprep.mubr.f32.mxu0 0.0
        %2652 = vmatmul.mubr.f32.gmra.mxu0 %v765
        %v2653 = vpop.f32.mrf.mxu0
        %v2654 = vadd.f32 0.0, %v2653
        %v2655 = vpop.f32.mrf.mxu0
        %2656 = vmatprep.mubr.f32.mxu0 0.0
        %2657 = vmatmul.mubr.f32.gmra.mxu0 %v766
        %v2658 = vpop.f32.mrf.mxu0
        %v2659 = vadd.f32 0.0, %v2658
        %v2660 = vpop.f32.mrf.mxu0
        %2661 = vmatprep.mubr.f32.mxu0 0.0
        %2662 = vmatmul.mubr.f32.gmra.mxu0 %v767
        %v2663 = vpop.f32.mrf.mxu0
        %v2664 = vadd.f32 0.0, %v2663
        %v2665 = vpop.f32.mrf.mxu0
        %2666 = vmatprep.mubr.f32.mxu0 0.0
        %2667 = vmatmul.mubr.f32.gmra.mxu0 %v768
        %v2668 = vpop.f32.mrf.mxu0
        %v2669 = vadd.f32 0.0, %v2668
        %v2670 = vpop.f32.mrf.mxu0
        %2671 = vmatprep.mubr.f32.mxu0 0.0
        %2672 = vmatmul.mubr.f32.gmra.mxu0 %v769
        %v2673 = vpop.f32.mrf.mxu0
        %v2674 = vadd.f32 0.0, %v2673
        %v2675 = vpop.f32.mrf.mxu0
        %2676 = vmatprep.mubr.f32.mxu0 0.0
        %2677 = vmatmul.mubr.f32.gmra.mxu0 %v770
        %v2678 = vpop.f32.mrf.mxu0
        %v2679 = vadd.f32 0.0, %v2678
        %v2680 = vpop.f32.mrf.mxu0
        %2681 = vmatprep.mubr.f32.mxu0 0.0
        %2682 = vmatmul.mubr.f32.gmra.mxu0 %v771
        %v2683 = vpop.f32.mrf.mxu0
        %v2684 = vadd.f32 0.0, %v2683
        %v2685 = vpop.f32.mrf.mxu0
        %2686 = vmatprep.mubr.f32.mxu0 0.0
        %2687 = vmatmul.mubr.f32.gmra.mxu0 %v772
        %v2688 = vpop.f32.mrf.mxu0
        %v2689 = vadd.f32 0.0, %v2688
        %v2690 = vpop.f32.mrf.mxu0
        %2691 = vmatprep.mubr.f32.mxu0 0.0
        %2692 = vmatmul.mubr.f32.gmra.mxu0 %v773
        %v2693 = vpop.f32.mrf.mxu0
        %v2694 = vadd.f32 0.0, %v2693
        %v2695 = vpop.f32.mrf.mxu0
        %2696 = vmatprep.mubr.f32.mxu0 0.0
        %2697 = vmatmul.mubr.f32.gmra.mxu0 %v774
        %v2698 = vpop.f32.mrf.mxu0
        %v2699 = vadd.f32 0.0, %v2698
        %v2700 = vpop.f32.mrf.mxu0
        %2701 = vmatprep.mubr.f32.mxu0 0.0
        %2702 = vmatmul.mubr.f32.gmra.mxu0 %v775
        %v2703 = vpop.f32.mrf.mxu0
        %v2704 = vadd.f32 0.0, %v2703
        %v2705 = vpop.f32.mrf.mxu0
        %2706 = vmatprep.mubr.f32.mxu0 0.0
        %2707 = vmatmul.mubr.f32.gmra.mxu0 %v776
        %v2708 = vpop.f32.mrf.mxu0
        %v2709 = vadd.f32 0.0, %v2708
        %v2710 = vpop.f32.mrf.mxu0
        %2711 = vmatprep.mubr.f32.mxu0 0.0
        %2712 = vmatmul.mubr.f32.gmra.mxu0 %v777
        %v2713 = vpop.f32.mrf.mxu0
        %v2714 = vadd.f32 0.0, %v2713
        %v2715 = vpop.f32.mrf.mxu0
        %2716 = vmatprep.mubr.f32.mxu0 0.0
        %2717 = vmatmul.mubr.f32.gmra.mxu0 %v778
        %v2718 = vpop.f32.mrf.mxu0
        %v2719 = vadd.f32 0.0, %v2718
        %v2720 = vpop.f32.mrf.mxu0
        %2721 = vmatprep.mubr.f32.mxu0 0.0
        %2722 = vmatmul.mubr.f32.gmra.mxu0 %v779
        %v2723 = vpop.f32.mrf.mxu0
        %v2724 = vadd.f32 0.0, %v2723
        %v2725 = vpop.f32.mrf.mxu0
        %2726 = vmatprep.mubr.f32.mxu0 0.0
        %2727 = vmatmul.mubr.f32.gmra.mxu0 %v780
        %v2728 = vpop.f32.mrf.mxu0
        %v2729 = vadd.f32 0.0, %v2728
        %v2730 = vpop.f32.mrf.mxu0
        %2731 = vdwg.mxu0
        %2732 = vmatprep.subr.mxu0 0.0
        %2733 = vmatpush1.msra.mxu0 %v764
        %2734 = vmatprep.subr.mxu0 0.0
        %2735 = vmatpush1.msra.mxu0 %v763
        %2736 = vmatprep.subr.mxu0 0.0
        %2737 = vmatpush1.msra.mxu0 %v762
        %2738 = vmatprep.subr.mxu0 0.0
        %2739 = vmatpush1.msra.mxu0 %v761
        %2740 = vmatprep.subr.mxu0 0.0
        %2741 = vmatpush1.msra.mxu0 %v760
        %2742 = vmatprep.subr.mxu0 0.0
        %2743 = vmatpush1.msra.mxu0 %v759
        %2744 = vmatprep.subr.mxu0 0.0
        %2745 = vmatpush1.msra.mxu0 %v758
        %2746 = vmatprep.subr.mxu0 0.0
        %2747 = vmatpush1.msra.mxu0 %v757
        %2748 = vmatprep.subr.mxu0 0.0
        %2749 = vmatpush1.msra.mxu0 %v756
        %2750 = vmatprep.subr.mxu0 0.0
        %2751 = vmatpush1.msra.mxu0 %v755
        %2752 = vmatprep.subr.mxu0 0.0
        %2753 = vmatpush1.msra.mxu0 %v754
        %2754 = vmatprep.subr.mxu0 0.0
        %2755 = vmatpush1.msra.mxu0 %v753
        %2756 = vmatprep.subr.mxu0 0.0
        %2757 = vmatpush1.msra.mxu0 %v752
        %2758 = vmatprep.subr.mxu0 0.0
        %2759 = vmatpush1.msra.mxu0 %v751
        %2760 = vmatprep.subr.mxu0 0.0
        %2761 = vmatpush1.msra.mxu0 %v750
        %2762 = vmatprep.subr.mxu0 0.0
        %2763 = vmatpush1.msra.mxu0 %v749
        %2764 = vmatprep.subr.mxu0 0.0
        %2765 = vmatpush2.msra.mxu0 0.0
        %2766 = vmatprep.subr.mxu0 0.0
        %2767 = vmatpush2.msra.mxu0 0.0
        %2768 = vmatprep.subr.mxu0 0.0
        %2769 = vmatpush2.msra.mxu0 0.0
        %2770 = vmatprep.subr.mxu0 0.0
        %2771 = vmatpush2.msra.mxu0 0.0
        %2772 = vmatprep.subr.mxu0 0.0
        %2773 = vmatpush2.msra.mxu0 0.0
        %2774 = vmatprep.subr.mxu0 0.0
        %2775 = vmatpush2.msra.mxu0 0.0
        %2776 = vmatprep.subr.mxu0 0.0
        %2777 = vmatpush2.msra.mxu0 0.0
        %2778 = vmatprep.subr.mxu0 0.0
        %2779 = vmatpush2.msra.mxu0 0.0
        %2780 = vmatprep.subr.mxu0 0.0
        %2781 = vmatpush2.msra.mxu0 0.0
        %2782 = vmatprep.subr.mxu0 0.0
        %2783 = vmatpush2.msra.mxu0 0.0
        %2784 = vmatprep.subr.mxu0 0.0
        %2785 = vmatpush2.msra.mxu0 0.0
        %2786 = vmatprep.subr.mxu0 0.0
        %2787 = vmatpush2.msra.mxu0 0.0
        %2788 = vmatprep.subr.mxu0 0.0
        %2789 = vmatpush2.msra.mxu0 0.0
        %2790 = vmatprep.subr.mxu0 0.0
        %2791 = vmatpush2.msra.mxu0 0.0
        %2792 = vmatprep.subr.mxu0 0.0
        %2793 = vmatpush2.msra.mxu0 0.0
        %2794 = vmatprep.subr.mxu0 0.0
        %2795 = vmatpush2.msra.mxu0 0.0
        %2796 = vmatprep.mubr.f32.mxu0 0.0
        %2797 = vmatmul.mubr.f32.gmra.mxu0 %v2654
        %v2798 = vpop.f32.mrf.mxu0
        %v2799 = vadd.f32 128.0, %v2798
        %v2800 = vpop.f32.mrf.mxu0
        %2801 = vmatprep.mubr.f32.mxu0 0.0
        %2802 = vmatmul.mubr.f32.gmra.mxu0 %v2659
        %v2803 = vpop.f32.mrf.mxu0
        %v2804 = vadd.f32 128.0, %v2803
        %v2805 = vpop.f32.mrf.mxu0
        %2806 = vmatprep.mubr.f32.mxu0 0.0
        %2807 = vmatmul.mubr.f32.gmra.mxu0 %v2664
        %v2808 = vpop.f32.mrf.mxu0
        %v2809 = vadd.f32 128.0, %v2808
        %v2810 = vpop.f32.mrf.mxu0
        %2811 = vmatprep.mubr.f32.mxu0 0.0
        %2812 = vmatmul.mubr.f32.gmra.mxu0 %v2669
        %v2813 = vpop.f32.mrf.mxu0
        %v2814 = vadd.f32 128.0, %v2813
        %v2815 = vpop.f32.mrf.mxu0
        %2816 = vmatprep.mubr.f32.mxu0 0.0
        %2817 = vmatmul.mubr.f32.gmra.mxu0 %v2674
        %v2818 = vpop.f32.mrf.mxu0
        %v2819 = vadd.f32 128.0, %v2818
        %v2820 = vpop.f32.mrf.mxu0
        %2821 = vmatprep.mubr.f32.mxu0 0.0
        %2822 = vmatmul.mubr.f32.gmra.mxu0 %v2679
        %v2823 = vpop.f32.mrf.mxu0
        %v2824 = vadd.f32 128.0, %v2823
        %v2825 = vpop.f32.mrf.mxu0
        %2826 = vmatprep.mubr.f32.mxu0 0.0
        %2827 = vmatmul.mubr.f32.gmra.mxu0 %v2684
        %v2828 = vpop.f32.mrf.mxu0
        %v2829 = vadd.f32 128.0, %v2828
        %v2830 = vpop.f32.mrf.mxu0
        %2831 = vmatprep.mubr.f32.mxu0 0.0
        %2832 = vmatmul.mubr.f32.gmra.mxu0 %v2689
        %v2833 = vpop.f32.mrf.mxu0
        %v2834 = vadd.f32 128.0, %v2833
        %v2835 = vpop.f32.mrf.mxu0
        %2836 = vmatprep.mubr.f32.mxu0 0.0
        %2837 = vmatmul.mubr.f32.gmra.mxu0 %v2694
        %v2838 = vpop.f32.mrf.mxu0
        %v2839 = vadd.f32 128.0, %v2838
        %v2840 = vpop.f32.mrf.mxu0
        %2841 = vmatprep.mubr.f32.mxu0 0.0
        %2842 = vmatmul.mubr.f32.gmra.mxu0 %v2699
        %v2843 = vpop.f32.mrf.mxu0
        %v2844 = vadd.f32 128.0, %v2843
        %v2845 = vpop.f32.mrf.mxu0
        %2846 = vmatprep.mubr.f32.mxu0 0.0
        %2847 = vmatmul.mubr.f32.gmra.mxu0 %v2704
        %v2848 = vpop.f32.mrf.mxu0
        %v2849 = vadd.f32 128.0, %v2848
        %v2850 = vpop.f32.mrf.mxu0
        %2851 = vmatprep.mubr.f32.mxu0 0.0
        %2852 = vmatmul.mubr.f32.gmra.mxu0 %v2709
        %v2853 = vpop.f32.mrf.mxu0
        %v2854 = vadd.f32 128.0, %v2853
        %v2855 = vpop.f32.mrf.mxu0
        %2856 = vmatprep.mubr.f32.mxu0 0.0
        %2857 = vmatmul.mubr.f32.gmra.mxu0 %v2714
        %v2858 = vpop.f32.mrf.mxu0
        %v2859 = vadd.f32 128.0, %v2858
        %v2860 = vpop.f32.mrf.mxu0
        %2861 = vmatprep.mubr.f32.mxu0 0.0
        %2862 = vmatmul.mubr.f32.gmra.mxu0 %v2719
        %v2863 = vpop.f32.mrf.mxu0
        %v2864 = vadd.f32 128.0, %v2863
        %v2865 = vpop.f32.mrf.mxu0
        %2866 = vmatprep.mubr.f32.mxu0 0.0
        %2867 = vmatmul.mubr.f32.gmra.mxu0 %v2724
        %v2868 = vpop.f32.mrf.mxu0
        %v2869 = vadd.f32 128.0, %v2868
        %v2870 = vpop.f32.mrf.mxu0
        %2871 = vmatprep.mubr.f32.mxu0 0.0
        %2872 = vmatmul.mubr.f32.gmra.mxu0 %v2729
        %v2873 = vpop.f32.mrf.mxu0
        %v2874 = vadd.f32 128.0, %v2873
        %v2875 = vpop.f32.mrf.mxu0
        %2876 = vdwg.mxu0
        %v2877 = vmax.f32 %v2799, 0.0
        %v2878 = vmax.f32 %v2804, 0.0
        %v2879 = vmax.f32 %v2809, 0.0
        %v2880 = vmax.f32 %v2814, 0.0
        %v2881 = vmax.f32 %v2819, 0.0
        %v2882 = vmax.f32 %v2824, 0.0
        %v2883 = vmax.f32 %v2829, 0.0
        %v2884 = vmax.f32 %v2834, 0.0
        %v2885 = vmax.f32 %v2839, 0.0
        %v2886 = vmax.f32 %v2844, 0.0
        %v2887 = vmax.f32 %v2849, 0.0
        %v2888 = vmax.f32 %v2854, 0.0
        %v2889 = vmax.f32 %v2859, 0.0
        %v2890 = vmax.f32 %v2864, 0.0
        %v2891 = vmax.f32 %v2869, 0.0
        %v2892 = vmax.f32 %v2874, 0.0
        %v2893 = vmin.f32 %v2877, 255.0
        %v2894 = vmin.f32 %v2878, 255.0
        %v2895 = vmin.f32 %v2879, 255.0
        %v2896 = vmin.f32 %v2880, 255.0
        %v2897 = vmin.f32 %v2881, 255.0
        %v2898 = vmin.f32 %v2882, 255.0
        %v2899 = vmin.f32 %v2883, 255.0
        %v2900 = vmin.f32 %v2884, 255.0
        %v2901 = vmin.f32 %v2885, 255.0
        %v2902 = vmin.f32 %v2886, 255.0
        %v2903 = vmin.f32 %v2887, 255.0
        %v2904 = vmin.f32 %v2888, 255.0
        %v2905 = vmin.f32 %v2889, 255.0
        %v2906 = vmin.f32 %v2890, 255.0
        %v2907 = vmin.f32 %v2891, 255.0
        %v2908 = vmin.f32 %v2892, 255.0
        %v2909 = vsub.f32 %v2893, 128.0
        %v2910 = vsub.f32 %v2894, 128.0
        %v2911 = vsub.f32 %v2895, 128.0
        %v2912 = vsub.f32 %v2896, 128.0
        %v2913 = vsub.f32 %v2897, 128.0
        %v2914 = vsub.f32 %v2898, 128.0
        %v2915 = vsub.f32 %v2899, 128.0
        %v2916 = vsub.f32 %v2900, 128.0
        %v2917 = vsub.f32 %v2901, 128.0
        %v2918 = vsub.f32 %v2902, 128.0
        %v2919 = vsub.f32 %v2903, 128.0
        %v2920 = vsub.f32 %v2904, 128.0
        %v2921 = vsub.f32 %v2905, 128.0
        %v2922 = vsub.f32 %v2906, 128.0
        %v2923 = vsub.f32 %v2907, 128.0
        %v2924 = vsub.f32 %v2908, 128.0
        %v2925 = vmul.f32 %v2909, 1.402
        %v2926 = vmul.f32 %v2910, 1.402
        %v2927 = vmul.f32 %v2911, 1.402
        %v2928 = vmul.f32 %v2912, 1.402
        %v2929 = vmul.f32 %v2913, 1.402
        %v2930 = vmul.f32 %v2914, 1.402
        %v2931 = vmul.f32 %v2915, 1.402
        %v2932 = vmul.f32 %v2916, 1.402
        %v2933 = vmul.f32 %v2917, 1.402
        %v2934 = vmul.f32 %v2918, 1.402
        %v2935 = vmul.f32 %v2919, 1.402
        %v2936 = vmul.f32 %v2920, 1.402
        %v2937 = vmul.f32 %v2921, 1.402
        %v2938 = vmul.f32 %v2922, 1.402
        %v2939 = vmul.f32 %v2923, 1.402
        %v2940 = vmul.f32 %v2924, 1.402
        %v2941 = vadd.f32 %v1473, %v2925
        %v2942 = vadd.f32 %v1474, %v2926
        %v2943 = vadd.f32 %v1475, %v2927
        %v2944 = vadd.f32 %v1476, %v2928
        %v2945 = vadd.f32 %v1477, %v2929
        %v2946 = vadd.f32 %v1478, %v2930
        %v2947 = vadd.f32 %v1479, %v2931
        %v2948 = vadd.f32 %v1480, %v2932
        %v2949 = vadd.f32 %v1481, %v2933
        %v2950 = vadd.f32 %v1482, %v2934
        %v2951 = vadd.f32 %v1483, %v2935
        %v2952 = vadd.f32 %v1484, %v2936
        %v2953 = vadd.f32 %v1485, %v2937
        %v2954 = vadd.f32 %v1486, %v2938
        %v2955 = vadd.f32 %v1487, %v2939
        %v2956 = vadd.f32 %v1488, %v2940
        %v2957 = vsub.f32 %v2183, 128.0
        %v2958 = vsub.f32 %v2184, 128.0
        %v2959 = vsub.f32 %v2185, 128.0
        %v2960 = vsub.f32 %v2186, 128.0
        %v2961 = vsub.f32 %v2187, 128.0
        %v2962 = vsub.f32 %v2188, 128.0
        %v2963 = vsub.f32 %v2189, 128.0
        %v2964 = vsub.f32 %v2190, 128.0
        %v2965 = vsub.f32 %v2191, 128.0
        %v2966 = vsub.f32 %v2192, 128.0
        %v2967 = vsub.f32 %v2193, 128.0
        %v2968 = vsub.f32 %v2194, 128.0
        %v2969 = vsub.f32 %v2195, 128.0
        %v2970 = vsub.f32 %v2196, 128.0
        %v2971 = vsub.f32 %v2197, 128.0
        %v2972 = vsub.f32 %v2198, 128.0
        %v2973 = vmul.f32 %v2957, 0.344136
        %v2974 = vmul.f32 %v2958, 0.344136
        %v2975 = vmul.f32 %v2959, 0.344136
        %v2976 = vmul.f32 %v2960, 0.344136
        %v2977 = vmul.f32 %v2961, 0.344136
        %v2978 = vmul.f32 %v2962, 0.344136
        %v2979 = vmul.f32 %v2963, 0.344136
        %v2980 = vmul.f32 %v2964, 0.344136
        %v2981 = vmul.f32 %v2965, 0.344136
        %v2982 = vmul.f32 %v2966, 0.344136
        %v2983 = vmul.f32 %v2967, 0.344136
        %v2984 = vmul.f32 %v2968, 0.344136
        %v2985 = vmul.f32 %v2969, 0.344136
        %v2986 = vmul.f32 %v2970, 0.344136
        %v2987 = vmul.f32 %v2971, 0.344136
        %v2988 = vmul.f32 %v2972, 0.344136
        %v2989 = vsub.f32 %v1473, %v2973
        %v2990 = vsub.f32 %v1474, %v2974
        %v2991 = vsub.f32 %v1475, %v2975
        %v2992 = vsub.f32 %v1476, %v2976
        %v2993 = vsub.f32 %v1477, %v2977
        %v2994 = vsub.f32 %v1478, %v2978
        %v2995 = vsub.f32 %v1479, %v2979
        %v2996 = vsub.f32 %v1480, %v2980
        %v2997 = vsub.f32 %v1481, %v2981
        %v2998 = vsub.f32 %v1482, %v2982
        %v2999 = vsub.f32 %v1483, %v2983
        %v3000 = vsub.f32 %v1484, %v2984
        %v3001 = vsub.f32 %v1485, %v2985
        %v3002 = vsub.f32 %v1486, %v2986
        %v3003 = vsub.f32 %v1487, %v2987
        %v3004 = vsub.f32 %v1488, %v2988
        %v3005 = vmul.f32 %v2909, 0.714136
        %v3006 = vmul.f32 %v2910, 0.714136
        %v3007 = vmul.f32 %v2911, 0.714136
        %v3008 = vmul.f32 %v2912, 0.714136
        %v3009 = vmul.f32 %v2913, 0.714136
        %v3010 = vmul.f32 %v2914, 0.714136
        %v3011 = vmul.f32 %v2915, 0.714136
        %v3012 = vmul.f32 %v2916, 0.714136
        %v3013 = vmul.f32 %v2917, 0.714136
        %v3014 = vmul.f32 %v2918, 0.714136
        %v3015 = vmul.f32 %v2919, 0.714136
        %v3016 = vmul.f32 %v2920, 0.714136
        %v3017 = vmul.f32 %v2921, 0.714136
        %v3018 = vmul.f32 %v2922, 0.714136
        %v3019 = vmul.f32 %v2923, 0.714136
        %v3020 = vmul.f32 %v2924, 0.714136
        %v3021 = vsub.f32 %v2989, %v3005
        %v3022 = vsub.f32 %v2990, %v3006
        %v3023 = vsub.f32 %v2991, %v3007
        %v3024 = vsub.f32 %v2992, %v3008
        %v3025 = vsub.f32 %v2993, %v3009
        %v3026 = vsub.f32 %v2994, %v3010
        %v3027 = vsub.f32 %v2995, %v3011
        %v3028 = vsub.f32 %v2996, %v3012
        %v3029 = vsub.f32 %v2997, %v3013
        %v3030 = vsub.f32 %v2998, %v3014
        %v3031 = vsub.f32 %v2999, %v3015
        %v3032 = vsub.f32 %v3000, %v3016
        %v3033 = vsub.f32 %v3001, %v3017
        %v3034 = vsub.f32 %v3002, %v3018
        %v3035 = vsub.f32 %v3003, %v3019
        %v3036 = vsub.f32 %v3004, %v3020
        %v3037 = vmul.f32 %v2957, 1.772
        %v3038 = vmul.f32 %v2958, 1.772
        %v3039 = vmul.f32 %v2959, 1.772
        %v3040 = vmul.f32 %v2960, 1.772
        %v3041 = vmul.f32 %v2961, 1.772
        %v3042 = vmul.f32 %v2962, 1.772
        %v3043 = vmul.f32 %v2963, 1.772
        %v3044 = vmul.f32 %v2964, 1.772
        %v3045 = vmul.f32 %v2965, 1.772
        %v3046 = vmul.f32 %v2966, 1.772
        %v3047 = vmul.f32 %v2967, 1.772
        %v3048 = vmul.f32 %v2968, 1.772
        %v3049 = vmul.f32 %v2969, 1.772
        %v3050 = vmul.f32 %v2970, 1.772
        %v3051 = vmul.f32 %v2971, 1.772
        %v3052 = vmul.f32 %v2972, 1.772
        %v3053 = vadd.f32 %v1473, %v3037
        %v3054 = vadd.f32 %v1474, %v3038
        %v3055 = vadd.f32 %v1475, %v3039
        %v3056 = vadd.f32 %v1476, %v3040
        %v3057 = vadd.f32 %v1477, %v3041
        %v3058 = vadd.f32 %v1478, %v3042
        %v3059 = vadd.f32 %v1479, %v3043
        %v3060 = vadd.f32 %v1480, %v3044
        %v3061 = vadd.f32 %v1481, %v3045
        %v3062 = vadd.f32 %v1482, %v3046
        %v3063 = vadd.f32 %v1483, %v3047
        %v3064 = vadd.f32 %v1484, %v3048
        %v3065 = vadd.f32 %v1485, %v3049
        %v3066 = vadd.f32 %v1486, %v3050
        %v3067 = vadd.f32 %v1487, %v3051
        %v3068 = vadd.f32 %v1488, %v3052
        %v3069 = vround.ne.pseudo %v2941
        %v3070 = vround.ne.pseudo %v2942
        %v3071 = vround.ne.pseudo %v2943
        %v3072 = vround.ne.pseudo %v2944
        %v3073 = vround.ne.pseudo %v2945
        %v3074 = vround.ne.pseudo %v2946
        %v3075 = vround.ne.pseudo %v2947
        %v3076 = vround.ne.pseudo %v2948
        %v3077 = vround.ne.pseudo %v2949
        %v3078 = vround.ne.pseudo %v2950
        %v3079 = vround.ne.pseudo %v2951
        %v3080 = vround.ne.pseudo %v2952
        %v3081 = vround.ne.pseudo %v2953
        %v3082 = vround.ne.pseudo %v2954
        %v3083 = vround.ne.pseudo %v2955
        %v3084 = vround.ne.pseudo %v2956
        %v3085 = vmax.f32 %v3069, 0.0
        %v3086 = vmax.f32 %v3070, 0.0
        %v3087 = vmax.f32 %v3071, 0.0
        %v3088 = vmax.f32 %v3072, 0.0
        %v3089 = vmax.f32 %v3073, 0.0
        %v3090 = vmax.f32 %v3074, 0.0
        %v3091 = vmax.f32 %v3075, 0.0
        %v3092 = vmax.f32 %v3076, 0.0
        %v3093 = vmax.f32 %v3077, 0.0
        %v3094 = vmax.f32 %v3078, 0.0
        %v3095 = vmax.f32 %v3079, 0.0
        %v3096 = vmax.f32 %v3080, 0.0
        %v3097 = vmax.f32 %v3081, 0.0
        %v3098 = vmax.f32 %v3082, 0.0
        %v3099 = vmax.f32 %v3083, 0.0
        %v3100 = vmax.f32 %v3084, 0.0
        %v3101 = vmin.f32 %v3085, 255.0
        %v3102 = vmin.f32 %v3086, 255.0
        %v3103 = vmin.f32 %v3087, 255.0
        %v3104 = vmin.f32 %v3088, 255.0
        %v3105 = vmin.f32 %v3089, 255.0
        %v3106 = vmin.f32 %v3090, 255.0
        %v3107 = vmin.f32 %v3091, 255.0
        %v3108 = vmin.f32 %v3092, 255.0
        %v3109 = vmin.f32 %v3093, 255.0
        %v3110 = vmin.f32 %v3094, 255.0
        %v3111 = vmin.f32 %v3095, 255.0
        %v3112 = vmin.f32 %v3096, 255.0
        %v3113 = vmin.f32 %v3097, 255.0
        %v3114 = vmin.f32 %v3098, 255.0
        %v3115 = vmin.f32 %v3099, 255.0
        %v3116 = vmin.f32 %v3100, 255.0
        %v3117 = vcvt.f32.s32.to.zero.pseudo %v3101
        %v3118 = vcvt.f32.s32.to.zero.pseudo %v3102
        %v3119 = vcvt.f32.s32.to.zero.pseudo %v3103
        %v3120 = vcvt.f32.s32.to.zero.pseudo %v3104
        %v3121 = vcvt.f32.s32.to.zero.pseudo %v3105
        %v3122 = vcvt.f32.s32.to.zero.pseudo %v3106
        %v3123 = vcvt.f32.s32.to.zero.pseudo %v3107
        %v3124 = vcvt.f32.s32.to.zero.pseudo %v3108
        %v3125 = vcvt.f32.s32.to.zero.pseudo %v3109
        %v3126 = vcvt.f32.s32.to.zero.pseudo %v3110
        %v3127 = vcvt.f32.s32.to.zero.pseudo %v3111
        %v3128 = vcvt.f32.s32.to.zero.pseudo %v3112
        %v3129 = vcvt.f32.s32.to.zero.pseudo %v3113
        %v3130 = vcvt.f32.s32.to.zero.pseudo %v3114
        %v3131 = vcvt.f32.s32.to.zero.pseudo %v3115
        %v3132 = vcvt.f32.s32.to.zero.pseudo %v3116
        %v3133 = vpack.c.b16 %v3118, %v3117
        %v3134 = vpack.c.b16 %v3120, %v3119
        %v3135 = vpack.c.b8 %v3134, %v3133
        %v3136 = vpack.c.b16 %v3122, %v3121
        %v3137 = vpack.c.b16 %v3124, %v3123
        %v3138 = vpack.c.b8 %v3137, %v3136
        %v3139 = vpack.c.b16 %v3126, %v3125
        %v3140 = vpack.c.b16 %v3128, %v3127
        %v3141 = vpack.c.b8 %v3140, %v3139
        %v3142 = vpack.c.b16 %v3130, %v3129
        %v3143 = vpack.c.b16 %v3132, %v3131
        %v3144 = vpack.c.b8 %v3143, %v3142
        %3145 = vst [vmem:[%s318] sm:$0xff] %v3135
        %3146 = vst [vmem:[%s318 + $0x8] sm:$0xff] %v3138
        %3147 = vst [vmem:[%s318 + $0x10] sm:$0xff] %v3141
        %3148 = vst [vmem:[%s318 + $0x18] sm:$0xff] %v3144
        %v3149 = vround.ne.pseudo %v3021
        %v3150 = vround.ne.pseudo %v3022
        %v3151 = vround.ne.pseudo %v3023
        %v3152 = vround.ne.pseudo %v3024
        %v3153 = vround.ne.pseudo %v3025
        %v3154 = vround.ne.pseudo %v3026
        %v3155 = vround.ne.pseudo %v3027
        %v3156 = vround.ne.pseudo %v3028
        %v3157 = vround.ne.pseudo %v3029
        %v3158 = vround.ne.pseudo %v3030
        %v3159 = vround.ne.pseudo %v3031
        %v3160 = vround.ne.pseudo %v3032
        %v3161 = vround.ne.pseudo %v3033
        %v3162 = vround.ne.pseudo %v3034
        %v3163 = vround.ne.pseudo %v3035
        %v3164 = vround.ne.pseudo %v3036
        %v3165 = vmax.f32 %v3149, 0.0
        %v3166 = vmax.f32 %v3150, 0.0
        %v3167 = vmax.f32 %v3151, 0.0
        %v3168 = vmax.f32 %v3152, 0.0
        %v3169 = vmax.f32 %v3153, 0.0
        %v3170 = vmax.f32 %v3154, 0.0
        %v3171 = vmax.f32 %v3155, 0.0
        %v3172 = vmax.f32 %v3156, 0.0
        %v3173 = vmax.f32 %v3157, 0.0
        %v3174 = vmax.f32 %v3158, 0.0
        %v3175 = vmax.f32 %v3159, 0.0
        %v3176 = vmax.f32 %v3160, 0.0
        %v3177 = vmax.f32 %v3161, 0.0
        %v3178 = vmax.f32 %v3162, 0.0
        %v3179 = vmax.f32 %v3163, 0.0
        %v3180 = vmax.f32 %v3164, 0.0
        %v3181 = vmin.f32 %v3165, 255.0
        %v3182 = vmin.f32 %v3166, 255.0
        %v3183 = vmin.f32 %v3167, 255.0
        %v3184 = vmin.f32 %v3168, 255.0
        %v3185 = vmin.f32 %v3169, 255.0
        %v3186 = vmin.f32 %v3170, 255.0
        %v3187 = vmin.f32 %v3171, 255.0
        %v3188 = vmin.f32 %v3172, 255.0
        %v3189 = vmin.f32 %v3173, 255.0
        %v3190 = vmin.f32 %v3174, 255.0
        %v3191 = vmin.f32 %v3175, 255.0
        %v3192 = vmin.f32 %v3176, 255.0
        %v3193 = vmin.f32 %v3177, 255.0
        %v3194 = vmin.f32 %v3178, 255.0
        %v3195 = vmin.f32 %v3179, 255.0
        %v3196 = vmin.f32 %v3180, 255.0
        %v3197 = vcvt.f32.s32.to.zero.pseudo %v3181
        %v3198 = vcvt.f32.s32.to.zero.pseudo %v3182
        %v3199 = vcvt.f32.s32.to.zero.pseudo %v3183
        %v3200 = vcvt.f32.s32.to.zero.pseudo %v3184
        %v3201 = vcvt.f32.s32.to.zero.pseudo %v3185
        %v3202 = vcvt.f32.s32.to.zero.pseudo %v3186
        %v3203 = vcvt.f32.s32.to.zero.pseudo %v3187
        %v3204 = vcvt.f32.s32.to.zero.pseudo %v3188
        %v3205 = vcvt.f32.s32.to.zero.pseudo %v3189
        %v3206 = vcvt.f32.s32.to.zero.pseudo %v3190
        %v3207 = vcvt.f32.s32.to.zero.pseudo %v3191
        %v3208 = vcvt.f32.s32.to.zero.pseudo %v3192
        %v3209 = vcvt.f32.s32.to.zero.pseudo %v3193
        %v3210 = vcvt.f32.s32.to.zero.pseudo %v3194
        %v3211 = vcvt.f32.s32.to.zero.pseudo %v3195
        %v3212 = vcvt.f32.s32.to.zero.pseudo %v3196
        %v3213 = vpack.c.b16 %v3198, %v3197
        %v3214 = vpack.c.b16 %v3200, %v3199
        %v3215 = vpack.c.b8 %v3214, %v3213
        %v3216 = vpack.c.b16 %v3202, %v3201
        %v3217 = vpack.c.b16 %v3204, %v3203
        %v3218 = vpack.c.b8 %v3217, %v3216
        %v3219 = vpack.c.b16 %v3206, %v3205
        %v3220 = vpack.c.b16 %v3208, %v3207
        %v3221 = vpack.c.b8 %v3220, %v3219
        %v3222 = vpack.c.b16 %v3210, %v3209
        %v3223 = vpack.c.b16 %v3212, %v3211
        %v3224 = vpack.c.b8 %v3223, %v3222
        %s3225 = scalar_lea.vmem %s318, 32 [#allocation11]
        %3226 = vst [vmem:[%s3225] sm:$0xff] %v3215
        %3227 = vst [vmem:[%s3225 + $0x8] sm:$0xff] %v3218
        %3228 = vst [vmem:[%s3225 + $0x10] sm:$0xff] %v3221
        %3229 = vst [vmem:[%s3225 + $0x18] sm:$0xff] %v3224
        %v3230 = vround.ne.pseudo %v3053
        %v3231 = vround.ne.pseudo %v3054
        %v3232 = vround.ne.pseudo %v3055
        %v3233 = vround.ne.pseudo %v3056
        %v3234 = vround.ne.pseudo %v3057
        %v3235 = vround.ne.pseudo %v3058
        %v3236 = vround.ne.pseudo %v3059
        %v3237 = vround.ne.pseudo %v3060
        %v3238 = vround.ne.pseudo %v3061
        %v3239 = vround.ne.pseudo %v3062
        %v3240 = vround.ne.pseudo %v3063
        %v3241 = vround.ne.pseudo %v3064
        %v3242 = vround.ne.pseudo %v3065
        %v3243 = vround.ne.pseudo %v3066
        %v3244 = vround.ne.pseudo %v3067
        %v3245 = vround.ne.pseudo %v3068
        %v3246 = vmax.f32 %v3230, 0.0
        %v3247 = vmax.f32 %v3231, 0.0
        %v3248 = vmax.f32 %v3232, 0.0
        %v3249 = vmax.f32 %v3233, 0.0
        %v3250 = vmax.f32 %v3234, 0.0
        %v3251 = vmax.f32 %v3235, 0.0
        %v3252 = vmax.f32 %v3236, 0.0
        %v3253 = vmax.f32 %v3237, 0.0
        %v3254 = vmax.f32 %v3238, 0.0
        %v3255 = vmax.f32 %v3239, 0.0
        %v3256 = vmax.f32 %v3240, 0.0
        %v3257 = vmax.f32 %v3241, 0.0
        %v3258 = vmax.f32 %v3242, 0.0
        %v3259 = vmax.f32 %v3243, 0.0
        %v3260 = vmax.f32 %v3244, 0.0
        %v3261 = vmax.f32 %v3245, 0.0
        %v3262 = vmin.f32 %v3246, 255.0
        %v3263 = vmin.f32 %v3247, 255.0
        %v3264 = vmin.f32 %v3248, 255.0
        %v3265 = vmin.f32 %v3249, 255.0
        %v3266 = vmin.f32 %v3250, 255.0
        %v3267 = vmin.f32 %v3251, 255.0
        %v3268 = vmin.f32 %v3252, 255.0
        %v3269 = vmin.f32 %v3253, 255.0
        %v3270 = vmin.f32 %v3254, 255.0
        %v3271 = vmin.f32 %v3255, 255.0
        %v3272 = vmin.f32 %v3256, 255.0
        %v3273 = vmin.f32 %v3257, 255.0
        %v3274 = vmin.f32 %v3258, 255.0
        %v3275 = vmin.f32 %v3259, 255.0
        %v3276 = vmin.f32 %v3260, 255.0
        %v3277 = vmin.f32 %v3261, 255.0
        %v3278 = vcvt.f32.s32.to.zero.pseudo %v3262
        %v3279 = vcvt.f32.s32.to.zero.pseudo %v3263
        %v3280 = vcvt.f32.s32.to.zero.pseudo %v3264
        %v3281 = vcvt.f32.s32.to.zero.pseudo %v3265
        %v3282 = vcvt.f32.s32.to.zero.pseudo %v3266
        %v3283 = vcvt.f32.s32.to.zero.pseudo %v3267
        %v3284 = vcvt.f32.s32.to.zero.pseudo %v3268
        %v3285 = vcvt.f32.s32.to.zero.pseudo %v3269
        %v3286 = vcvt.f32.s32.to.zero.pseudo %v3270
        %v3287 = vcvt.f32.s32.to.zero.pseudo %v3271
        %v3288 = vcvt.f32.s32.to.zero.pseudo %v3272
        %v3289 = vcvt.f32.s32.to.zero.pseudo %v3273
        %v3290 = vcvt.f32.s32.to.zero.pseudo %v3274
        %v3291 = vcvt.f32.s32.to.zero.pseudo %v3275
        %v3292 = vcvt.f32.s32.to.zero.pseudo %v3276
        %v3293 = vcvt.f32.s32.to.zero.pseudo %v3277
        %v3294 = vpack.c.b16 %v3279, %v3278
        %v3295 = vpack.c.b16 %v3281, %v3280
        %v3296 = vpack.c.b8 %v3295, %v3294
        %v3297 = vpack.c.b16 %v3283, %v3282
        %v3298 = vpack.c.b16 %v3285, %v3284
        %v3299 = vpack.c.b8 %v3298, %v3297
        %v3300 = vpack.c.b16 %v3287, %v3286
        %v3301 = vpack.c.b16 %v3289, %v3288
        %v3302 = vpack.c.b8 %v3301, %v3300
        %v3303 = vpack.c.b16 %v3291, %v3290
        %v3304 = vpack.c.b16 %v3293, %v3292
        %v3305 = vpack.c.b8 %v3304, %v3303
        %s3306 = scalar_lea.vmem %s318, 64 [#allocation11]
        %3307 = vst [vmem:[%s3306] sm:$0xff] %v3296
        %3308 = vst [vmem:[%s3306 + $0x8] sm:$0xff] %v3299
        %3309 = vst [vmem:[%s3306 + $0x10] sm:$0xff] %v3302
        %3310 = vst [vmem:[%s3306 + $0x18] sm:$0xff] %v3305
        %s3311 = sand.u32 %s158, 1
        %s3312 = scalar_lea.sflag [#allocation4], %s3311
        %s3313 = sand.u32 %s158, 1
        %s3314 = smul.addr %s3313, 96
        %s3315 = scalar_lea.vmem [#allocation11], %s3314
        // Predicated region
        $region61: #{tpu_custom_call.1} parent=39 // pred_check
          %p3316 = pneg %p168
        $region62: #{tpu_custom_call.1} parent=39 // pred_check_branch
          %3318 = sbr.rel (%p3316) target = $region64
        $region63: #{tpu_custom_call.1} parent=39 // pred_region
          %s3319 = smul.u32 4, %s28
          %s3321 = ssub.s32 1536, 1536
          %3322 = vsyncadd %s3312, %s3321
          %s3323 = smul.addr %s3319, 2
          %s3324 = sadd.s32 %s29, %s3323
          %s3325 = smul.addr %s3324, 128
          %s3326 = scalar_lea.hbm %s5, %s3325
          %s3327 = sshll.u32 %s3315, 4
          %s3328 = int_to_ptr.vmem [resolvable:$true] %s3327
          %3333 = dma.vmem_to_hbm [thread:$0]  %s3328, 1536, %s3326, %s3312, 128, 256, 8
        $region64: #{tpu_custom_call.1} parent=39 // pred_fallthru
          _
      $region40: #{tpu_custom_call.1} parent=5 // pred_fallthru
        _
      %p3334 = scmp.le.s32.totalorder 2, %s19
      // Predicated region
      $region65: #{tpu_custom_call.1} parent=5 // pred_check
        %p3335 = pneg %p3334
      $region66: #{tpu_custom_call.1} parent=5 // pred_check_branch
        %3337 = sbr.rel (%p3335) target = $region68
      $region67: #{tpu_custom_call.1} parent=5 // pred_region
        %s3338 = ssub.s32 %s19, 2
        // Predicated region
        $region69: #{tpu_custom_call.1} parent=67 // pred_check
          %p3339 = pneg %p174
        $region70: #{tpu_custom_call.1} parent=67 // pred_check_branch
          %3341 = sbr.rel (%p3339) target = $region72
        $region71: #{tpu_custom_call.1} parent=67 // pred_region
          %s3342 = sand.u32 %s159, 1
          %s3343 = scalar_lea.sflag [#allocation4], %s3342
          %s3344 = sand.u32 %s159, 1
          %s3345 = smul.addr %s3344, 96
          %s3346 = scalar_lea.vmem [#allocation11], %s3345
          %3347 = dma.done %s3343, 1536
        $region72: #{tpu_custom_call.1} parent=67 // pred_fallthru
          _
      $region68: #{tpu_custom_call.1} parent=5 // pred_fallthru
        _
    $region6: #{tpu_custom_call.1} parent=1 // loop_footer
      %s23 = sadd.s32 1, %s19
    $region7: #{tpu_custom_call.1} parent=1 // loop_footer_branch
      %18 = sbr.rel target = $region3
    $region8: #{tpu_custom_call.1} parent=1 // loop_exit
      _
    %3348 = vsyncpa [#allocation3], 1
    %s3349 = scalar_lea.sflag [#allocation3], 1
    %3350 = vsyncpa %s3349, 1
    %3351 = vsyncpa [#allocation6], 1
    %3352 = vsyncpa [#allocation9], 1
    %3353 = vsyncpa [#allocation4], 1
    %s3354 = scalar_lea.sflag [#allocation4], 1
    %3355 = vsyncpa %s3354, 1

</llo_original>
